<compile_context>
chip_gen: v7x
topology: tpu7x:2x2x1
jax: 0.10.0
libtpu: 0.0.40
codegen_flags: <defaults>
</compile_context>

<pallas_src>
import math
import functools

import numpy as np
import jax
import jax.numpy as jnp
from jax.experimental import pallas as pl
from jax.experimental.pallas import tpu as pltpu


MXU_DTYPE = jnp.bfloat16            # operand dtype for all MXU matmuls


# ----------------------------------------------------------------------------
# small helpers
# ----------------------------------------------------------------------------
def _round_up(x, m):
    return (x + m - 1) // m * m


def _vmem_limit_bytes():
    """Generation-aware scoped-VMEM limit (item 10)."""
    cap = 64 * 1024 * 1024
    try:
        info = pltpu.get_tpu_info()
        cap = int(getattr(info, "vmem_capacity_bytes", cap))
    except Exception:
        pass
    if cap >= 100 * 1024 * 1024:        # v5e / v6e: 128 MiB physical
        return 80 * 1024 * 1024
    return 40 * 1024 * 1024             # v7x: 64 MiB physical (leave headroom)


def _pick_row_tile(m, c, vmem_budget):
    """Largest row tile that fits the VMEM budget, keeps >=2 grid steps (item 5)."""
    # stage-1 per-row bytes: double-buffered p1,p2 (bf16, 9C each) + y1,y2 (bf16)
    per_row = 2 * (2 * 9 * c * 2) + 2 * (2 * c * 2)
    for tm in (1024, 512, 256, 128):
        if tm * per_row > vmem_budget:
            continue
        if m > tm or tm == 128:
            return tm
    return 128


def _pick_window_batch(nw, n, c, vmem_budget, max_wb=32):
    """Largest divisor of nw that fits VMEM and keeps >=4 (else >=2) grid steps
    (items 4 / 9 / 12)."""
    per_w = (n * n * 6                       # f32 scores + bf16 probs
             + 2 * (3 * n * c * 2 + n * c * 4)   # double-buffered q,k,z + idn
             + 2 * (n * c * 4))                  # double-buffered out
    cap = int(max(1, min(max_wb, vmem_budget // max(per_w, 1))))
    divs = [d for d in range(1, min(cap, nw) + 1) if nw % d == 0]
    for min_steps in (4, 2, 1):
        ok = [d for d in divs if nw // d >= min_steps]
        if ok:
            return max(ok)
    return 1
    # TODO(synk): for very large windows (n^2 f32 scores > VMEM even at wb=1,
    # e.g. square inputs where ws=H), add a KV grid axis with flash-style
    # online-softmax scratch instead of a single unblocked score tensor.


# ----------------------------------------------------------------------------
# Pallas kernels
# ----------------------------------------------------------------------------
def _conv_stats_kernel(p1_ref, p2_ref, w1_ref, w2_ref,
                       y1_ref, y2_ref, s1_ref, q1_ref, s2_ref, q2_ref):
    # Two dense im2col matmuls (no zero-padded block-diagonal K), f32 accumulation.
    y1 = jnp.dot(p1_ref[...], w1_ref[...], preferred_element_type=jnp.float32)
    y2 = jnp.dot(p2_ref[...], w2_ref[...], preferred_element_type=jnp.float32)
    y1_ref[...] = y1.astype(y1_ref.dtype)          # bf16 round trip to stage 2
    y2_ref[...] = y2.astype(y2_ref.dtype)
    # Per-block BN statistics in f32 (zero-padded rows contribute exactly 0).
    s1_ref[0] = jnp.sum(y1, axis=0, keepdims=True)
    q1_ref[0] = jnp.sum(y1 * y1, axis=0, keepdims=True)
    s2_ref[0] = jnp.sum(y2, axis=0, keepdims=True)
    q2_ref[0] = jnp.sum(y2 * y2, axis=0, keepdims=True)


def pallas_conv_stats(p1, p2, w1, w2, tm, vmem_limit):
    mp, k_in = p1.shape
    c = w1.shape[1]
    g = mp // tm
    row_spec = pl.BlockSpec((tm, k_in), lambda i: (i, 0))
    w_spec = pl.BlockSpec((k_in, c), lambda i: (0, 0))
    stat_spec = pl.BlockSpec((1, 1, c), lambda i: (i, 0, 0))
    y_spec = pl.BlockSpec((tm, c), lambda i: (i, 0))
    return pl.pallas_call(
        _conv_stats_kernel,
        out_shape=(jax.ShapeDtypeStruct((mp, c), MXU_DTYPE),
                   jax.ShapeDtypeStruct((mp, c), MXU_DTYPE),
                   jax.ShapeDtypeStruct((g, 1, c), jnp.float32),
                   jax.ShapeDtypeStruct((g, 1, c), jnp.float32),
                   jax.ShapeDtypeStruct((g, 1, c), jnp.float32),
                   jax.ShapeDtypeStruct((g, 1, c), jnp.float32)),
        grid=(g,),
        in_specs=[row_spec, row_spec, w_spec, w_spec],
        out_specs=(y_spec, y_spec, stat_spec, stat_spec, stat_spec, stat_spec),
        compiler_params=pltpu.CompilerParams(
            dimension_semantics=("parallel",),
            vmem_limit_bytes=vmem_limit),
    )(p1, p2, w1, w2)


def _bn_relu_proj_kernel(y1_ref, y2_ref, sc_ref, sh_ref,
                         wq_ref, wk_ref, wz1_ref, wz2_ref, bqk_ref,
                         q_ref, k_ref, z_ref):
    # Fused BatchNorm(affine) + ReLU on both branches (x1/x2 stay in VMEM only).
    xn1 = jnp.maximum(y1_ref[...].astype(jnp.float32) * sc_ref[0:1, :]
                      + sh_ref[0:1, :], 0.0).astype(wq_ref.dtype)
    xn2 = jnp.maximum(y2_ref[...].astype(jnp.float32) * sc_ref[1:2, :]
                      + sh_ref[1:2, :], 0.0).astype(wq_ref.dtype)
    # q (attn scale folded into wq/bq), k, and z = fusion([x1|x2]) * res_scale.
    q = jnp.dot(xn1, wq_ref[...], preferred_element_type=jnp.float32) + bqk_ref[0:1, :]
    k = jnp.dot(xn2, wk_ref[...], preferred_element_type=jnp.float32) + bqk_ref[1:2, :]
    z = (jnp.dot(xn1, wz1_ref[...], preferred_element_type=jnp.float32)
         + jnp.dot(xn2, wz2_ref[...], preferred_element_type=jnp.float32))
    q_ref[...] = q.astype(q_ref.dtype)
    k_ref[...] = k.astype(k_ref.dtype)
    z_ref[...] = z.astype(z_ref.dtype)


def pallas_bn_relu_proj(y1, y2, sc, sh, wq, wk, wz1, wz2, bqk, tm, vmem_limit):
    mp, c = y1.shape
    g = mp // tm
    row_spec = pl.BlockSpec((tm, c), lambda i: (i, 0))
    vec_spec = pl.BlockSpec((2, c), lambda i: (0, 0))
    w_spec = pl.BlockSpec((c, c), lambda i: (0, 0))
    return pl.pallas_call(
        _bn_relu_proj_kernel,
        out_shape=(jax.ShapeDtypeStruct((mp, c), MXU_DTYPE),
                   jax.ShapeDtypeStruct((mp, c), MXU_DTYPE),
                   jax.ShapeDtypeStruct((mp, c), MXU_DTYPE)),
        grid=(g,),
        in_specs=[row_spec, row_spec, vec_spec, vec_spec,
                  w_spec, w_spec, w_spec, w_spec, vec_spec],
        out_specs=(row_spec, row_spec, row_spec),
        compiler_params=pltpu.CompilerParams(
            dimension_semantics=("parallel",),
            vmem_limit_bytes=vmem_limit),
    )(y1, y2, sc, sh, wq, wk, wz1, wz2, bqk)


def _window_attn_kernel(q_ref, k_ref, z_ref, idn_ref, o_ref):
    # Batched windows per grid step.  Fusion conv + res_scale are already folded
    # into z (per-token linear commutes with attention), so this is just
    # scores -> softmax -> PV -> residual add.
    s = jnp.einsum('bqd,bkd->bqk', q_ref[...], k_ref[...],
                   preferred_element_type=jnp.float32)        # scale folded in q
    s = s - jnp.max(s, axis=-1, keepdims=True)
    p = jnp.exp(s)
    p = p * pl.reciprocal(jnp.sum(p, axis=-1, keepdims=True), approx=True)
    o = jnp.einsum('bqk,bkc->bqc', p.astype(z_ref.dtype), z_ref[...],
                   preferred_element_type=jnp.float32)        # (Wb, n, C)
    o_ref[...] = idn_ref[...] + o


def pallas_window_attention(q_w, k_w, z_w, idn_w, wb, vmem_limit):
    nw, n, c = q_w.shape
    blk = pl.BlockSpec((wb, n, c), lambda i: (i, 0, 0))
    return pl.pallas_call(
        _window_attn_kernel,
        out_shape=jax.ShapeDtypeStruct((nw, n, c), jnp.float32),
        grid=(nw // wb,),
        in_specs=[blk, blk, blk, blk],
        out_specs=blk,
        compiler_params=pltpu.CompilerParams(
            dimension_semantics=("parallel",),
            vmem_limit_bytes=vmem_limit),
    )(q_w, k_w, z_w, idn_w)
    # TODO(synk): when C < 128, present a lane-dense (wb, n*C) out_spec (undo the
    # reshape in the wrapper) to avoid masked vst partial stores.


# ----------------------------------------------------------------------------
# JAX glue (im2col / window bookkeeping)
# ----------------------------------------------------------------------------
def im2col_nhwc(x, ksize=3, dilation=1, padding=1):
    # TODO(synk): move the 3x3 patch gather in-kernel (halo BlockSpec + shifted
    # slices) to cut conv input HBM traffic ~9x on large activations.
    b, h, w, c = x.shape
    xp = jnp.pad(x, ((0, 0), (padding, padding), (padding, padding), (0, 0)))
    patches = []
    for ky in range(ksize):
        for kx in range(ksize):
            patches.append(xp[:, ky * dilation: ky * dilation + h,
                              kx * dilation: kx * dilation + w, :])
    patches = jnp.stack(patches, axis=3)                   # [B,H,W,9,C]
    return patches.reshape(b * h * w, ksize * ksize * c)   # (ky,kx,cin) order


def window_partition(x_nhwc, ws):
    b, h, w, c = x_nhwc.shape
    x = x_nhwc.reshape(b, h // ws, ws, w // ws, ws, c)
    x = jnp.transpose(x, (0, 1, 3, 2, 4, 5))
    return x.reshape(-1, ws * ws, c)


def window_unpartition(windows, ws, b, h, w):
    c = windows.shape[-1]
    x = windows.reshape(b, h // ws, w // ws, ws, ws, c)
    x = jnp.transpose(x, (0, 1, 3, 2, 4, 5))
    return x.reshape(b, h, w, c)


def pad_reflect(x_nhwc, ws):
    b, h, w, c = x_nhwc.shape
    pad_h = (ws - h % ws) % ws
    pad_w = (ws - w % ws) % ws
    xp = jnp.pad(x_nhwc, ((0, 0), (0, pad_h), (0, pad_w), (0, 0)),
                 mode='reflect')
    return xp, pad_h, pad_w


# ----------------------------------------------------------------------------
# forward
# ----------------------------------------------------------------------------
def cross_attention_block(x_nchw, params, min_window=6, num_heads=4):
    x = jnp.transpose(x_nchw, (0, 2, 3, 1)).astype(jnp.float32)   # NCHW -> NHWC
    b, h, w, cin = x.shape
    cout = params['conv1_w'].shape[0]
    assert cin == cout, "residual add requires in_channels == out_channels"

    vlim = _vmem_limit_bytes()
    budget = vlim // 2                    # working-set budget for tile picks

    m = b * h * w
    tm = _pick_row_tile(m, cout, budget)
    mp = _round_up(m, tm)

    # ---- stage 1: dual-branch conv (two dense im2col matmuls) + BN stats ----
    x_bf = x.astype(MXU_DTYPE)            # conv operands are bf16 anyway
    p1 = jnp.pad(im2col_nhwc(x_bf, 3, dilation=1, padding=1), ((0, mp - m), (0, 0)))
    p2 = jnp.pad(im2col_nhwc(x_bf, 3, dilation=2, padding=2), ((0, mp - m), (0, 0)))

    k_in = 9 * cin
    w1m = jnp.transpose(params['conv1_w'], (2, 3, 1, 0)).reshape(k_in, cout)
    w2m = jnp.transpose(params['conv2_w'], (2, 3, 1, 0)).reshape(k_in, cout)

    y1, y2, s1, q1, s2, q2 = pallas_conv_stats(
        p1, p2, w1m.astype(MXU_DTYPE), w2m.astype(MXU_DTYPE), tm, vlim)

    # BatchNorm2d training-mode stats (biased variance) over true token count.
    def bn_affine(s, q, gamma, beta):
        mean = jnp.sum(s, axis=(0, 1)) / m
        var = jnp.sum(q, axis=(0, 1)) / m - mean * mean
        scale = gamma / jnp.sqrt(var + 1e-5)
        return scale, beta - mean * scale

    sc1, sh1 = bn_affine(s1, q1, params['bn1_gamma'], params['bn1_beta'])
    sc2, sh2 = bn_affine(s2, q2, params['bn2_gamma'], params['bn2_beta'])
    sc = jnp.stack([sc1, sc2]).astype(jnp.float32)     # (2, C)
    sh = jnp.stack([sh1, sh2]).astype(jnp.float32)     # (2, C)

    # ---- stage 2: fused BN+ReLU + q / k / z projections ---------------------
    attn_scale = float((cout // num_heads) ** (-0.5))
    wq_t = (params['wq'].T * attn_scale).astype(MXU_DTYPE)       # scale folded in
    wk_t = params['wk'].T.astype(MXU_DTYPE)
    bqk = jnp.stack([params['bq'] * attn_scale, params['bk']]).astype(jnp.float32)

    # Fusion 1x1 conv (C, 2C) split + res_scale folded in: z = [x1|x2] @ Wf^T * rs.
    wf = params['fusion_w'].reshape(cout, 2 * cout)
    rs = params['res_scale'][0]
    wz1_t = (wf[:, :cout].T * rs).astype(MXU_DTYPE)
    wz2_t = (wf[:, cout:].T * rs).astype(MXU_DTYPE)

    q_flat, k_flat, z_flat = pallas_bn_relu_proj(
        y1, y2, sc, sh, wq_t, wk_t, wz1_t, wz2_t, bqk, tm, vlim)

    q = q_flat[:m].reshape(b, h, w, cout)
    k = k_flat[:m].reshape(b, h, w, cout)
    z = z_flat[:m].reshape(b, h, w, cout)

    # ---- stage 3: window-batched attention + residual -----------------------
    ws = max(math.gcd(h, w), min_window)
    pad_h = (ws - h % ws) % ws
    pad_w = (ws - w % ws) % ws

    def rpad(a):  # reflect pad commutes with the per-token ops above
        return jnp.pad(a, ((0, 0), (0, pad_h), (0, pad_w), (0, 0)), mode='reflect')

    q_p, k_p, z_p = rpad(q), rpad(k), rpad(z)
    idn_p = jnp.pad(x, ((0, 0), (0, pad_h), (0, pad_w), (0, 0)))  # cropped later
    hp, wp = h + pad_h, w + pad_w

    q_w = window_partition(q_p, ws)                 # (nw, n, C) bf16
    k_w = window_partition(k_p, ws)
    z_w = window_partition(z_p, ws)
    idn_w = window_partition(idn_p, ws)             # (nw, n, C) f32

    nw, n = q_w.shape[0], ws * ws
    wb = _pick_window_batch(nw, n, cout, budget)

    out_w = pallas_window_attention(q_w, k_w, z_w, idn_w, wb, vlim)

    out = window_unpartition(out_w, ws, b, hp, wp)[:, :h, :w, :]
    return jnp.transpose(out, (0, 3, 1, 2))         # NHWC -> NCHW


# ----------------------------------------------------------------------------
# pure-JAX f32 reference (correctness check only)
# ----------------------------------------------------------------------------
def reference_forward(x_nchw, params, min_window=6, num_heads=4):
    x = jnp.transpose(x_nchw, (0, 2, 3, 1))
    b, h, w, cin = x.shape

    def conv_bn_relu(x, wt, gamma, beta, dil, pad):
        y = jax.lax.conv_general_dilated(
            x, jnp.transpose(wt, (2, 3, 1, 0)), (1, 1),
            [(pad, pad), (pad, pad)], rhs_dilation=(dil, dil),
            dimension_numbers=('NHWC', 'HWIO', 'NHWC'))
        mean = y.mean(axis=(0, 1, 2))
        var = y.var(axis=(0, 1, 2))
        return jnp.maximum((y - mean) / jnp.sqrt(var + 1e-5) * gamma + beta, 0.)

    x1 = conv_bn_relu(x, params['conv1_w'], params['bn1_gamma'],
                      params['bn1_beta'], 1, 1)
    x2 = conv_bn_relu(x, params['conv2_w'], params['bn2_gamma'],
                      params['bn2_beta'], 2, 2)
    cout = x1.shape[-1]
    ws = max(math.gcd(h, w), min_window)
    x1p, _, _ = pad_reflect(x1, ws)
    x2p, _, _ = pad_reflect(x2, ws)
    hp, wp = x1p.shape[1], x1p.shape[2]
    x1w = window_partition(x1p, ws)
    x2w = window_partition(x2p, ws)
    scale = (cout // num_heads) ** (-0.5)
    q = jnp.einsum('wnc,dc->wnd', x1w, params['wq']) + params['bq']
    k = jnp.einsum('wnc,dc->wnd', x2w, params['wk']) + params['bk']
    attn = jax.nn.softmax(jnp.einsum('wnd,wmd->wnm', q, k) * scale, axis=-1)
    o1 = jnp.einsum('wnm,wmc->wnc', attn, x1w)
    o2 = jnp.einsum('wnm,wmc->wnc', attn, x2w)
    x1m = window_unpartition(o1, ws, b, hp, wp)[:, :h, :w, :]
    x2m = window_unpartition(o2, ws, b, hp, wp)[:, :h, :w, :]
    cat = jnp.concatenate([x1m, x2m], axis=-1)
    wf = params['fusion_w'].reshape(cout, 2 * cout)
    fused = jnp.einsum('bhwk,ck->bhwc', cat, wf)
    out = x + params['res_scale'][0] * fused
    return jnp.transpose(out, (0, 3, 1, 2))


# ----------------------------------------------------------------------------
# main
# ----------------------------------------------------------------------------
if __name__ == "__main__":
    B, C, H, W = 2, 8, 14, 22   # gcd(14,22)=2 < min_window=6 -> reflect padding
    key = jax.random.PRNGKey(0)
    ks = jax.random.split(key, 9)

    params = {
        'conv1_w': 0.1 * jax.random.normal(ks[0], (C, C, 3, 3), jnp.float32),
        'conv2_w': 0.1 * jax.random.normal(ks[1], (C, C, 3, 3), jnp.float32),
        'bn1_gamma': jnp.ones((C,), jnp.float32),
        'bn1_beta': jnp.zeros((C,), jnp.float32),
        'bn2_gamma': jnp.ones((C,), jnp.float32),
        'bn2_beta': jnp.zeros((C,), jnp.float32),
        'wq': 0.1 * jax.random.normal(ks[2], (C, C), jnp.float32),   # torch [out,in]
        'bq': 0.01 * jax.random.normal(ks[3], (C,), jnp.float32),
        'wk': 0.1 * jax.random.normal(ks[4], (C, C), jnp.float32),
        'bk': 0.01 * jax.random.normal(ks[5], (C,), jnp.float32),
        'fusion_w': 0.1 * jax.random.normal(ks[6], (C, 2 * C, 1, 1), jnp.float32),
        'res_scale': jnp.full((1,), 0.2, jnp.float32),
    }

    x = jax.random.normal(ks[7], (B, C, H, W), jnp.float32)

    out = cross_attention_block(x, params)
    out = jax.block_until_ready(out)

    ref = reference_forward(x, params)
    np.testing.assert_allclose(np.asarray(out), np.asarray(ref),
                               rtol=3e-2, atol=2e-2)
    print("KERNEL_OK")
</pallas_src>

<mosaic_0001>
module attributes {stable_mosaic.version = 11 : i64} {
  func.func @_conv_stats_kernel(%arg0: i32, %arg1: memref<512x72xbf16, #tpu.memory_space<vmem>>, %arg2: memref<512x72xbf16, #tpu.memory_space<vmem>>, %arg3: memref<72x8xbf16, #tpu.memory_space<vmem>>, %arg4: memref<72x8xbf16, #tpu.memory_space<vmem>>, %arg5: memref<512x8xbf16, #tpu.memory_space<vmem>>, %arg6: memref<512x8xbf16, #tpu.memory_space<vmem>>, %arg7: memref<1x1x8xf32, #tpu.memory_space<vmem>>, %arg8: memref<1x1x8xf32, #tpu.memory_space<vmem>>, %arg9: memref<1x1x8xf32, #tpu.memory_space<vmem>>, %arg10: memref<1x1x8xf32, #tpu.memory_space<vmem>>) attributes {dimension_semantics = [#tpu.dimension_semantics<parallel>], iteration_bounds = array<i64: 2>, scalar_prefetch = 0 : i64, scratch_operands = 0 : i64, tpu.core_type = #tpu.core_type<tc>, window_params = [{transform_indices = @transform_0, window_bounds = array<i64: 512, 72>}, {transform_indices = @transform_1, window_bounds = array<i64: 512, 72>}, {pipeline_mode = #tpu.pipeline_mode<synchronous>, transform_indices = @transform_2, window_bounds = array<i64: 72, 8>}, {pipeline_mode = #tpu.pipeline_mode<synchronous>, transform_indices = @transform_3, window_bounds = array<i64: 72, 8>}, {transform_indices = @transform_4, window_bounds = array<i64: 512, 8>}, {transform_indices = @transform_5, window_bounds = array<i64: 512, 8>}, {transform_indices = @transform_6, window_bounds = array<i64: 1, 1, 8>}, {transform_indices = @transform_7, window_bounds = array<i64: 1, 1, 8>}, {transform_indices = @transform_8, window_bounds = array<i64: 1, 1, 8>}, {transform_indices = @transform_9, window_bounds = array<i64: 1, 1, 8>}]} {
    %c0 = arith.constant 0 : index
    %c0_0 = arith.constant 0 : index
    %0 = vector.load %arg1[%c0, %c0_0] : memref<512x72xbf16, #tpu.memory_space<vmem>>, vector<512x72xbf16>
    %c0_1 = arith.constant 0 : index
    %c0_2 = arith.constant 0 : index
    %1 = vector.load %arg3[%c0_1, %c0_2] : memref<72x8xbf16, #tpu.memory_space<vmem>>, vector<72x8xbf16>
    %cst = arith.constant dense<0.000000e+00> : vector<512x8xf32>
    %2 = tpu.matmul %0, %1, %cst {dimension_numbers = #tpu.dot_dimension_numbers<[1], [0], [0], [1], [0, 0, 1, 1], [], []>} : vector<512x72xbf16>, vector<72x8xbf16>, vector<512x8xf32> -> vector<512x8xf32>
    %c0_3 = arith.constant 0 : index
    %c0_4 = arith.constant 0 : index
    %3 = vector.load %arg2[%c0_3, %c0_4] : memref<512x72xbf16, #tpu.memory_space<vmem>>, vector<512x72xbf16>
    %c0_5 = arith.constant 0 : index
    %c0_6 = arith.constant 0 : index
    %4 = vector.load %arg4[%c0_5, %c0_6] : memref<72x8xbf16, #tpu.memory_space<vmem>>, vector<72x8xbf16>
    %cst_7 = arith.constant dense<0.000000e+00> : vector<512x8xf32>
    %5 = tpu.matmul %3, %4, %cst_7 {dimension_numbers = #tpu.dot_dimension_numbers<[1], [0], [0], [1], [0, 0, 1, 1], [], []>} : vector<512x72xbf16>, vector<72x8xbf16>, vector<512x8xf32> -> vector<512x8xf32>
    %6 = arith.truncf %2 : vector<512x8xf32> to vector<512x8xbf16>
    %c0_8 = arith.constant 0 : index
    %c0_9 = arith.constant 0 : index
    %7 = vector.load %arg5[%c0_8, %c0_9] : memref<512x8xbf16, #tpu.memory_space<vmem>>, vector<512x8xbf16>
    tpu.vector_store %arg5[%c0_8, %c0_9], %6 {strides = array<i32>} : memref<512x8xbf16, #tpu.memory_space<vmem>>, vector<512x8xbf16>,
    %8 = arith.truncf %5 : vector<512x8xf32> to vector<512x8xbf16>
    %c0_10 = arith.constant 0 : index
    %c0_11 = arith.constant 0 : index
    %9 = vector.load %arg6[%c0_10, %c0_11] : memref<512x8xbf16, #tpu.memory_space<vmem>>, vector<512x8xbf16>
    tpu.vector_store %arg6[%c0_10, %c0_11], %8 {strides = array<i32>} : memref<512x8xbf16, #tpu.memory_space<vmem>>, vector<512x8xbf16>,
    %cst_12 = arith.constant dense<0.000000e+00> : vector<8xf32>
    %10 = vector.multi_reduction <add>, %2, %cst_12 [0] : vector<512x8xf32> to vector<8xf32>
    %11 = vector.shape_cast %10 : vector<8xf32> to vector<1x8xf32>
    %c0_13 = arith.constant 0 : index
    %c0_14 = arith.constant 0 : index
    %c0_15 = arith.constant 0 : index
    %12 = vector.load %arg7[%c0_13, %c0_14, %c0_15] : memref<1x1x8xf32, #tpu.memory_space<vmem>>, vector<1x1x8xf32>
    %13 = vector.shape_cast %12 : vector<1x1x8xf32> to vector<1x8xf32>
    %14 = vector.shape_cast %11 : vector<1x8xf32> to vector<1x1x8xf32>
    tpu.vector_store %arg7[%c0_13, %c0_14, %c0_15], %14 {strides = array<i32>} : memref<1x1x8xf32, #tpu.memory_space<vmem>>, vector<1x1x8xf32>,
    %15 = arith.mulf %2, %2 : vector<512x8xf32>
    %cst_16 = arith.constant dense<0.000000e+00> : vector<8xf32>
    %16 = vector.multi_reduction <add>, %15, %cst_16 [0] : vector<512x8xf32> to vector<8xf32>
    %17 = vector.shape_cast %16 : vector<8xf32> to vector<1x8xf32>
    %c0_17 = arith.constant 0 : index
    %c0_18 = arith.constant 0 : index
    %c0_19 = arith.constant 0 : index
    %18 = vector.load %arg8[%c0_17, %c0_18, %c0_19] : memref<1x1x8xf32, #tpu.memory_space<vmem>>, vector<1x1x8xf32>
    %19 = vector.shape_cast %18 : vector<1x1x8xf32> to vector<1x8xf32>
    %20 = vector.shape_cast %17 : vector<1x8xf32> to vector<1x1x8xf32>
    tpu.vector_store %arg8[%c0_17, %c0_18, %c0_19], %20 {strides = array<i32>} : memref<1x1x8xf32, #tpu.memory_space<vmem>>, vector<1x1x8xf32>,
    %cst_20 = arith.constant dense<0.000000e+00> : vector<8xf32>
    %21 = vector.multi_reduction <add>, %5, %cst_20 [0] : vector<512x8xf32> to vector<8xf32>
    %22 = vector.shape_cast %21 : vector<8xf32> to vector<1x8xf32>
    %c0_21 = arith.constant 0 : index
    %c0_22 = arith.constant 0 : index
    %c0_23 = arith.constant 0 : index
    %23 = vector.load %arg9[%c0_21, %c0_22, %c0_23] : memref<1x1x8xf32, #tpu.memory_space<vmem>>, vector<1x1x8xf32>
    %24 = vector.shape_cast %23 : vector<1x1x8xf32> to vector<1x8xf32>
    %25 = vector.shape_cast %22 : vector<1x8xf32> to vector<1x1x8xf32>
    tpu.vector_store %arg9[%c0_21, %c0_22, %c0_23], %25 {strides = array<i32>} : memref<1x1x8xf32, #tpu.memory_space<vmem>>, vector<1x1x8xf32>,
    %26 = arith.mulf %5, %5 : vector<512x8xf32>
    %cst_24 = arith.constant dense<0.000000e+00> : vector<8xf32>
    %27 = vector.multi_reduction <add>, %26, %cst_24 [0] : vector<512x8xf32> to vector<8xf32>
    %28 = vector.shape_cast %27 : vector<8xf32> to vector<1x8xf32>
    %c0_25 = arith.constant 0 : index
    %c0_26 = arith.constant 0 : index
    %c0_27 = arith.constant 0 : index
    %29 = vector.load %arg10[%c0_25, %c0_26, %c0_27] : memref<1x1x8xf32, #tpu.memory_space<vmem>>, vector<1x1x8xf32>
    %30 = vector.shape_cast %29 : vector<1x1x8xf32> to vector<1x8xf32>
    %31 = vector.shape_cast %28 : vector<1x8xf32> to vector<1x1x8xf32>
    tpu.vector_store %arg10[%c0_25, %c0_26, %c0_27], %31 {strides = array<i32>} : memref<1x1x8xf32, #tpu.memory_space<vmem>>, vector<1x1x8xf32>,
    return
  }
  func.func @transform_0(%arg0: i32) -> (i32, i32) {
    %c0_i32 = arith.constant 0 : i32
    %c0_i32_0 = arith.constant 0 : i32
    return %arg0, %c0_i32 : i32, i32
  }
  func.func @transform_1(%arg0: i32) -> (i32, i32) {
    %c0_i32 = arith.constant 0 : i32
    %c0_i32_0 = arith.constant 0 : i32
    return %arg0, %c0_i32 : i32, i32
  }
  func.func @transform_2(%arg0: i32) -> (i32, i32) {
    %c0_i32 = arith.constant 0 : i32
    %c0_i32_0 = arith.constant 0 : i32
    %c0_i32_1 = arith.constant 0 : i32
    return %c0_i32, %c0_i32_0 : i32, i32
  }
  func.func @transform_3(%arg0: i32) -> (i32, i32) {
    %c0_i32 = arith.constant 0 : i32
    %c0_i32_0 = arith.constant 0 : i32
    %c0_i32_1 = arith.constant 0 : i32
    return %c0_i32, %c0_i32_0 : i32, i32
  }
  func.func @transform_4(%arg0: i32) -> (i32, i32) {
    %c0_i32 = arith.constant 0 : i32
    %c0_i32_0 = arith.constant 0 : i32
    return %arg0, %c0_i32 : i32, i32
  }
  func.func @transform_5(%arg0: i32) -> (i32, i32) {
    %c0_i32 = arith.constant 0 : i32
    %c0_i32_0 = arith.constant 0 : i32
    return %arg0, %c0_i32 : i32, i32
  }
  func.func @transform_6(%arg0: i32) -> (i32, i32, i32) {
    %c0_i32 = arith.constant 0 : i32
    %c0_i32_0 = arith.constant 0 : i32
    %c0_i32_1 = arith.constant 0 : i32
    return %arg0, %c0_i32, %c0_i32_0 : i32, i32, i32
  }
  func.func @transform_7(%arg0: i32) -> (i32, i32, i32) {
    %c0_i32 = arith.constant 0 : i32
    %c0_i32_0 = arith.constant 0 : i32
    %c0_i32_1 = arith.constant 0 : i32
    return %arg0, %c0_i32, %c0_i32_0 : i32, i32, i32
  }
  func.func @transform_8(%arg0: i32) -> (i32, i32, i32) {
    %c0_i32 = arith.constant 0 : i32
    %c0_i32_0 = arith.constant 0 : i32
    %c0_i32_1 = arith.constant 0 : i32
    return %arg0, %c0_i32, %c0_i32_0 : i32, i32, i32
  }
  func.func @transform_9(%arg0: i32) -> (i32, i32, i32) {
    %c0_i32 = arith.constant 0 : i32
    %c0_i32_0 = arith.constant 0 : i32
    %c0_i32_1 = arith.constant 0 : i32
    return %arg0, %c0_i32, %c0_i32_0 : i32, i32, i32
  }
}

</mosaic_0001>

<llo_original>
// kernel: tpu_custom_call.1
$region0: #{tpu_custom_call.1}
  #allocation0 [shape = 'u32[]', space=smem, size = 0x4, offset = 0x4, fixed_abs, tag = 'smem constant byte address 0x4 - core index']
  #allocation1 [shape = 'u32[144,128]{1,0:T(1,128)}', space=vmem, size = 0x12000, scoped, tag = 'internal scratch']
  %s0 = inlined_call_operand.vmem [shape: bf16[1024,72], index: 0, kind: input, shape index: {}]
  %s1 = inlined_call_operand.vmem [shape: bf16[1024,72], index: 1, kind: input, shape index: {}]
  %s2 = inlined_call_operand.vmem [shape: bf16[72,8], index: 2, kind: input, shape index: {}]
  %s3 = inlined_call_operand.vmem [shape: bf16[72,8], index: 3, kind: input, shape index: {}]
  %s4 = inlined_call_operand.vmem [shape: bf16[1024,8], index: 4, kind: output, shape index: {0}]
  %s5 = inlined_call_operand.vmem [shape: bf16[1024,8], index: 5, kind: output, shape index: {1}]
  %s6 = inlined_call_operand.hbm [shape: f32[2,1,8], index: 6, kind: output, shape index: {2}]
  %s7 = inlined_call_operand.hbm [shape: f32[2,1,8], index: 7, kind: output, shape index: {3}]
  %s8 = inlined_call_operand.hbm [shape: f32[2,1,8], index: 8, kind: output, shape index: {4}]
  %s9 = inlined_call_operand.hbm [shape: f32[2,1,8], index: 9, kind: output, shape index: {5}]
  %10 = xla_tuple %s4, %s5, %s6, %s7, %s8, %s9
  %s11 = sld [smem:[#allocation0]]
  $region89: #{tpu_custom_call.1} parent=0
    _
  %s13 = ssub.s32 1, %s11
  %s14 = scalar_select 0, %s13, %s11
  $region1: #{tpu_custom_call.1} parent=0
    #allocation2 [shape = 'u8[1024]{0}', space=vmem, size = 0x400, scoped, tag = 'output window, operand 2']
    #allocation3 [shape = 's32[2]{0}', space=sflag, size = 0x8, scoped, tag = 'scoped memory for tpu_custom_call.1']
    #allocation4 [shape = 'u8[1024]{0}', space=vmem, size = 0x400, scoped, tag = 'output window, operand 3']
    #allocation5 [shape = 's32[2]{0}', space=sflag, size = 0x8, scoped, tag = 'scoped memory for tpu_custom_call.1']
    #allocation6 [shape = 'u8[1024]{0}', space=vmem, size = 0x400, scoped, tag = 'output window, operand 4']
    #allocation7 [shape = 'u8[1024]{0}', space=vmem, size = 0x400, scoped, tag = 'output window, operand 5']
    #allocation8 [shape = 's32[2]{0}', space=sflag, size = 0x8, scoped, tag = 'scoped memory for tpu_custom_call.1']
    %15 = vsyncpa [#allocation3], 0
    %s16 = scalar_lea.sflag [#allocation3], 1
    %17 = vsyncpa %s16, 0
    %18 = vsyncpa [#allocation5], 0
    %s19 = scalar_lea.sflag [#allocation5], 1
    %20 = vsyncpa %s19, 0
    %21 = vsyncpa [#allocation8], 0
    %s22 = scalar_lea.sflag [#allocation8], 1
    %23 = vsyncpa %s22, 0
    loop: start=0, step=1, limit=4
    $region2: #{tpu_custom_call.1} parent=1 // loop_pre_header
      _
    $region3: #{tpu_custom_call.1} parent=1 // loop_header
      %s25 = sphi 0, %s29
      %p26 = scmp.ge.s32.totalorder %s25, 4
      %s35 = sphi 0, %s37
      %s38 = sphi 0, %s35
      %s39 = sphi 0, %s38
      %s55 = sphi 0, %s39
      %s61 = sphi 0, %s63
      %s64 = sphi 0, %s61
      %s65 = sphi 0, %s64
      %s81 = sphi 0, %s65
      %s85 = sphi 0, %s85
      %s87 = sphi 0, %s85
      %s88 = sphi 0, %s87
      %s102 = sphi 0, %s88
      %s106 = sphi 0, %s106
      %s108 = sphi 0, %s106
      %s109 = sphi 0, %s108
      %s123 = sphi 0, %s109
      %s129 = sphi 0, %s131
      %s132 = sphi 0, %s129
      %s133 = sphi 0, %s132
      %s149 = sphi 0, %s133
      %s155 = sphi 0, %s157
      %s158 = sphi 0, %s155
      %s159 = sphi 0, %s158
      %s175 = sphi 0, %s159
      %s181 = sphi 0, %s183
      %s184 = sphi 0, %s181
      %s185 = sphi 0, %s184
      %s201 = sphi 0, %s185
      %s207 = sphi 0, %s209
      %s210 = sphi 0, %s207
      %s211 = sphi 0, %s210
      %s227 = sphi 0, %s211
      %s233 = sphi 0, %s235
      %s236 = sphi 0, %s233
      %s237 = sphi 0, %s236
      %s253 = sphi 0, %s237
      %s259 = sphi 0, %s261
      %s262 = sphi 0, %s259
      %s263 = sphi 0, %s262
      %s279 = sphi 0, %s263
    $region4: #{tpu_custom_call.1} parent=1 // loop_header_branch
      %28 = sbr.rel (%p26) target = $region8
    $region5: #{tpu_custom_call.1} parent=1 // loop_body
      %s30 = ssub.s32 %s25, 1
      %s31 = ssub.s32 %s25, 2
      %s32 = sadd.s32 %s25, 1
      %s33 = ssub.s32 %s25, %s32
      %p34 = scmp.eq.s32.totalorder %s33, 0
      %s36 = sadd.s32 %s35, 1
      %s37 = scalar_select %p34, %s35, %s36
      %p40 = pneg %p34
      %p41 = scmp.eq.s32.totalorder %s25, 1
      %p42 = por %p40, %p41
      %p43 = scmp.ne.s32.totalorder %s35, %s38
      %p44 = scmp.eq.s32.totalorder %s25, 0
      %p45 = por %p43, %p44
      %p46 = scmp.ne.s32.totalorder %s35, %s38
      %p47 = scmp.eq.s32.totalorder %s30, 1
      %p48 = por %p46, %p47
      %p49 = scmp.ne.s32.totalorder %s38, %s39
      %p50 = scmp.eq.s32.totalorder %s30, 0
      %p51 = por %p49, %p50
      %p52 = scmp.ne.s32.totalorder %s38, %s39
      %p53 = scmp.eq.s32.totalorder %s31, 1
      %p54 = por %p52, %p53
      %p56 = scmp.ne.s32.totalorder %s39, %s55
      %p57 = scmp.eq.s32.totalorder %s31, 0
      %p58 = por %p56, %p57
      %s59 = ssub.s32 %s25, %s32
      %p60 = scmp.eq.s32.totalorder %s59, 0
      %s62 = sadd.s32 %s61, 1
      %s63 = scalar_select %p60, %s61, %s62
      %p66 = pneg %p60
      %p67 = scmp.eq.s32.totalorder %s25, 1
      %p68 = por %p66, %p67
      %p69 = scmp.ne.s32.totalorder %s61, %s64
      %p70 = scmp.eq.s32.totalorder %s25, 0
      %p71 = por %p69, %p70
      %p72 = scmp.ne.s32.totalorder %s61, %s64
      %p73 = scmp.eq.s32.totalorder %s30, 1
      %p74 = por %p72, %p73
      %p75 = scmp.ne.s32.totalorder %s64, %s65
      %p76 = scmp.eq.s32.totalorder %s30, 0
      %p77 = por %p75, %p76
      %p78 = scmp.ne.s32.totalorder %s64, %s65
      %p79 = scmp.eq.s32.totalorder %s31, 1
      %p80 = por %p78, %p79
      %p82 = scmp.ne.s32.totalorder %s65, %s81
      %p83 = scmp.eq.s32.totalorder %s31, 0
      %p84 = por %p82, %p83
      %s86 = sadd.s32 %s85, 1
      %p89 = scmp.eq.s32.totalorder %s25, 1
      %p90 = scmp.ne.s32.totalorder %s85, %s87
      %p91 = scmp.eq.s32.totalorder %s25, 0
      %p92 = por %p90, %p91
      %p93 = scmp.ne.s32.totalorder %s85, %s87
      %p94 = scmp.eq.s32.totalorder %s30, 1
      %p95 = por %p93, %p94
      %p96 = scmp.ne.s32.totalorder %s87, %s88
      %p97 = scmp.eq.s32.totalorder %s30, 0
      %p98 = por %p96, %p97
      %p99 = scmp.ne.s32.totalorder %s87, %s88
      %p100 = scmp.eq.s32.totalorder %s31, 1
      %p101 = por %p99, %p100
      %p103 = scmp.ne.s32.totalorder %s88, %s102
      %p104 = scmp.eq.s32.totalorder %s31, 0
      %p105 = por %p103, %p104
      %s107 = sadd.s32 %s106, 1
      %p110 = scmp.eq.s32.totalorder %s25, 1
      %p111 = scmp.ne.s32.totalorder %s106, %s108
      %p112 = scmp.eq.s32.totalorder %s25, 0
      %p113 = por %p111, %p112
      %p114 = scmp.ne.s32.totalorder %s106, %s108
      %p115 = scmp.eq.s32.totalorder %s30, 1
      %p116 = por %p114, %p115
      %p117 = scmp.ne.s32.totalorder %s108, %s109
      %p118 = scmp.eq.s32.totalorder %s30, 0
      %p119 = por %p117, %p118
      %p120 = scmp.ne.s32.totalorder %s108, %s109
      %p121 = scmp.eq.s32.totalorder %s31, 1
      %p122 = por %p120, %p121
      %p124 = scmp.ne.s32.totalorder %s109, %s123
      %p125 = scmp.eq.s32.totalorder %s31, 0
      %p126 = por %p124, %p125
      %s127 = ssub.s32 %s25, %s32
      %p128 = scmp.eq.s32.totalorder %s127, 0
      %s130 = sadd.s32 %s129, 1
      %s131 = scalar_select %p128, %s129, %s130
      %p134 = pneg %p128
      %p135 = scmp.eq.s32.totalorder %s25, 1
      %p136 = por %p134, %p135
      %p137 = scmp.ne.s32.totalorder %s129, %s132
      %p138 = scmp.eq.s32.totalorder %s25, 0
      %p139 = por %p137, %p138
      %p140 = scmp.ne.s32.totalorder %s129, %s132
      %p141 = scmp.eq.s32.totalorder %s30, 1
      %p142 = por %p140, %p141
      %p143 = scmp.ne.s32.totalorder %s132, %s133
      %p144 = scmp.eq.s32.totalorder %s30, 0
      %p145 = por %p143, %p144
      %p146 = scmp.ne.s32.totalorder %s132, %s133
      %p147 = scmp.eq.s32.totalorder %s31, 1
      %p148 = por %p146, %p147
      %p150 = scmp.ne.s32.totalorder %s133, %s149
      %p151 = scmp.eq.s32.totalorder %s31, 0
      %p152 = por %p150, %p151
      %s153 = ssub.s32 %s25, %s32
      %p154 = scmp.eq.s32.totalorder %s153, 0
      %s156 = sadd.s32 %s155, 1
      %s157 = scalar_select %p154, %s155, %s156
      %p160 = pneg %p154
      %p161 = scmp.eq.s32.totalorder %s25, 1
      %p162 = por %p160, %p161
      %p163 = scmp.ne.s32.totalorder %s155, %s158
      %p164 = scmp.eq.s32.totalorder %s25, 0
      %p165 = por %p163, %p164
      %p166 = scmp.ne.s32.totalorder %s155, %s158
      %p167 = scmp.eq.s32.totalorder %s30, 1
      %p168 = por %p166, %p167
      %p169 = scmp.ne.s32.totalorder %s158, %s159
      %p170 = scmp.eq.s32.totalorder %s30, 0
      %p171 = por %p169, %p170
      %p172 = scmp.ne.s32.totalorder %s158, %s159
      %p173 = scmp.eq.s32.totalorder %s31, 1
      %p174 = por %p172, %p173
      %p176 = scmp.ne.s32.totalorder %s159, %s175
      %p177 = scmp.eq.s32.totalorder %s31, 0
      %p178 = por %p176, %p177
      %s179 = ssub.s32 %s25, %s32
      %p180 = scmp.eq.s32.totalorder %s179, 0
      %s182 = sadd.s32 %s181, 1
      %s183 = scalar_select %p180, %s181, %s182
      %p186 = pneg %p180
      %p187 = scmp.eq.s32.totalorder %s25, 1
      %p188 = por %p186, %p187
      %p189 = scmp.ne.s32.totalorder %s181, %s184
      %p190 = scmp.eq.s32.totalorder %s25, 0
      %p191 = por %p189, %p190
      %p192 = scmp.ne.s32.totalorder %s181, %s184
      %p193 = scmp.eq.s32.totalorder %s30, 1
      %p194 = por %p192, %p193
      %p195 = scmp.ne.s32.totalorder %s184, %s185
      %p196 = scmp.eq.s32.totalorder %s30, 0
      %p197 = por %p195, %p196
      %p198 = scmp.ne.s32.totalorder %s184, %s185
      %p199 = scmp.eq.s32.totalorder %s31, 1
      %p200 = por %p198, %p199
      %p202 = scmp.ne.s32.totalorder %s185, %s201
      %p203 = scmp.eq.s32.totalorder %s31, 0
      %p204 = por %p202, %p203
      %s205 = ssub.s32 %s25, %s32
      %p206 = scmp.eq.s32.totalorder %s205, 0
      %s208 = sadd.s32 %s207, 1
      %s209 = scalar_select %p206, %s207, %s208
      %p212 = pneg %p206
      %p213 = scmp.eq.s32.totalorder %s25, 1
      %p214 = por %p212, %p213
      %p215 = scmp.ne.s32.totalorder %s207, %s210
      %p216 = scmp.eq.s32.totalorder %s25, 0
      %p217 = por %p215, %p216
      %p218 = scmp.ne.s32.totalorder %s207, %s210
      %p219 = scmp.eq.s32.totalorder %s30, 1
      %p220 = por %p218, %p219
      %p221 = scmp.ne.s32.totalorder %s210, %s211
      %p222 = scmp.eq.s32.totalorder %s30, 0
      %p223 = por %p221, %p222
      %p224 = scmp.ne.s32.totalorder %s210, %s211
      %p225 = scmp.eq.s32.totalorder %s31, 1
      %p226 = por %p224, %p225
      %p228 = scmp.ne.s32.totalorder %s211, %s227
      %p229 = scmp.eq.s32.totalorder %s31, 0
      %p230 = por %p228, %p229
      %s231 = ssub.s32 %s25, %s32
      %p232 = scmp.eq.s32.totalorder %s231, 0
      %s234 = sadd.s32 %s233, 1
      %s235 = scalar_select %p232, %s233, %s234
      %p238 = pneg %p232
      %p239 = scmp.eq.s32.totalorder %s25, 1
      %p240 = por %p238, %p239
      %p241 = scmp.ne.s32.totalorder %s233, %s236
      %p242 = scmp.eq.s32.totalorder %s25, 0
      %p243 = por %p241, %p242
      %p244 = scmp.ne.s32.totalorder %s233, %s236
      %p245 = scmp.eq.s32.totalorder %s30, 1
      %p246 = por %p244, %p245
      %p247 = scmp.ne.s32.totalorder %s236, %s237
      %p248 = scmp.eq.s32.totalorder %s30, 0
      %p249 = por %p247, %p248
      %p250 = scmp.ne.s32.totalorder %s236, %s237
      %p251 = scmp.eq.s32.totalorder %s31, 1
      %p252 = por %p250, %p251
      %p254 = scmp.ne.s32.totalorder %s237, %s253
      %p255 = scmp.eq.s32.totalorder %s31, 0
      %p256 = por %p254, %p255
      %s257 = ssub.s32 %s25, %s32
      %p258 = scmp.eq.s32.totalorder %s257, 0
      %s260 = sadd.s32 %s259, 1
      %s261 = scalar_select %p258, %s259, %s260
      %p264 = pneg %p258
      %p265 = scmp.eq.s32.totalorder %s25, 1
      %p266 = por %p264, %p265
      %p267 = scmp.ne.s32.totalorder %s259, %s262
      %p268 = scmp.eq.s32.totalorder %s25, 0
      %p269 = por %p267, %p268
      %p270 = scmp.ne.s32.totalorder %s259, %s262
      %p271 = scmp.eq.s32.totalorder %s30, 1
      %p272 = por %p270, %p271
      %p273 = scmp.ne.s32.totalorder %s262, %s263
      %p274 = scmp.eq.s32.totalorder %s30, 0
      %p275 = por %p273, %p274
      %p276 = scmp.ne.s32.totalorder %s262, %s263
      %p277 = scmp.eq.s32.totalorder %s31, 1
      %p278 = por %p276, %p277
      %p280 = scmp.ne.s32.totalorder %s263, %s279
      %p281 = scmp.eq.s32.totalorder %s31, 0
      %p282 = por %p280, %p281
      %p283 = scmp.le.s32.totalorder 1, %s25
      %p284 = scmp.lt.s32.totalorder %s25, 3
      %p285 = pnand %p283, %p284
      %p286 = pneg %p285
      // Predicated region
      $region9: #{tpu_custom_call.1} parent=5 // pred_check
        _
      $region10: #{tpu_custom_call.1} parent=5 // pred_check_branch
        %288 = sbr.rel (%p285) target = $region12
      $region11: #{tpu_custom_call.1} parent=5 // pred_region
        %s289 = ssub.s32 %s25, 1
        // Predicated region
        $region13: #{tpu_custom_call.1} parent=11 // pred_check
          %p290 = pneg %p98
        $region14: #{tpu_custom_call.1} parent=11 // pred_check_branch
          %292 = sbr.rel (%p290) target = $region16
        $region15: #{tpu_custom_call.1} parent=11 // pred_region
          _
        $region16: #{tpu_custom_call.1} parent=11 // pred_fallthru
          _
        // Predicated region
        $region17: #{tpu_custom_call.1} parent=11 // pred_check
          %p293 = pneg %p119
        $region18: #{tpu_custom_call.1} parent=11 // pred_check_branch
          %295 = sbr.rel (%p293) target = $region20
        $region19: #{tpu_custom_call.1} parent=11 // pred_region
          _
        $region20: #{tpu_custom_call.1} parent=11 // pred_fallthru
          _
      $region12: #{tpu_custom_call.1} parent=5 // pred_fallthru
        _
      %p296 = scmp.lt.s32.totalorder %s25, 2
      // Predicated region
      $region21: #{tpu_custom_call.1} parent=5 // pred_check
        %p297 = pneg %p296
      $region22: #{tpu_custom_call.1} parent=5 // pred_check_branch
        %299 = sbr.rel (%p297) target = $region24
      $region23: #{tpu_custom_call.1} parent=5 // pred_region
        // Predicated region
        $region25: #{tpu_custom_call.1} parent=23 // pred_check
          %p300 = pneg %p45
        $region26: #{tpu_custom_call.1} parent=23 // pred_check_branch
          %302 = sbr.rel (%p300) target = $region28
        $region27: #{tpu_custom_call.1} parent=23 // pred_region
          %s303 = smul.u32 64, %s25
          %p304 = scmp.lt.s32.totalorder %s303, 127
          %s305 = scalar_select %p304, %s303, 127
          %s306 = smul.addr %s305, 4
          %s307 = scalar_lea.vmem %s0, %s306
          %s308 = smul.u32 64, %s25
        $region28: #{tpu_custom_call.1} parent=23 // pred_fallthru
          _
        // Predicated region
        $region29: #{tpu_custom_call.1} parent=23 // pred_check
          %p309 = pneg %p71
        $region30: #{tpu_custom_call.1} parent=23 // pred_check_branch
          %311 = sbr.rel (%p309) target = $region32
        $region31: #{tpu_custom_call.1} parent=23 // pred_region
          %s312 = smul.u32 64, %s25
          %p313 = scmp.lt.s32.totalorder %s312, 127
          %s314 = scalar_select %p313, %s312, 127
          %s315 = smul.addr %s314, 4
          %s316 = scalar_lea.vmem %s1, %s315
          %s317 = smul.u32 64, %s25
        $region32: #{tpu_custom_call.1} parent=23 // pred_fallthru
          _
      $region24: #{tpu_custom_call.1} parent=5 // pred_fallthru
        _
      %p318 = scmp.le.s32.totalorder 1, %s25
      %p319 = scmp.lt.s32.totalorder %s25, 3
      %p320 = pnand %p318, %p319
      %p321 = pneg %p320
      // Predicated region
      $region33: #{tpu_custom_call.1} parent=5 // pred_check
        _
      $region34: #{tpu_custom_call.1} parent=5 // pred_check_branch
        %323 = sbr.rel (%p320) target = $region36
      $region35: #{tpu_custom_call.1} parent=5 // pred_region
        %s324 = ssub.s32 %s25, 1
        %s325 = smul.u32 64, %s30
        %p326 = scmp.lt.s32.totalorder %s325, 127
        %s327 = scalar_select %p326, %s325, 127
        %s328 = smul.addr %s327, 4
        %s329 = scalar_lea.vmem %s0, %s328
        %p330 = pneg %p51
        %p331 = pneg %p48
        %s332 = smul.u32 64, %s30
        %p333 = scmp.lt.s32.totalorder %s332, 127
        %s334 = scalar_select %p333, %s332, 127
        %s335 = smul.addr %s334, 4
        %s336 = scalar_lea.vmem %s1, %s335
        %p337 = pneg %p77
        %p338 = pneg %p74
        %p339 = pneg %p98
        %p340 = pneg %p95
        %p341 = pneg %p119
        %p342 = pneg %p116
        %p343 = pneg %p145
        %p344 = pneg %p142
        %s345 = smul.u32 64, %s30
        %p346 = scmp.lt.s32.totalorder %s345, 127
        %s347 = scalar_select %p346, %s345, 127
        %s348 = smul.addr %s347, 4
        %s349 = scalar_lea.vmem %s4, %s348
        %p350 = pneg %p171
        %p351 = pneg %p168
        %s352 = smul.u32 64, %s30
        %p353 = scmp.lt.s32.totalorder %s352, 127
        %s354 = scalar_select %p353, %s352, 127
        %s355 = smul.addr %s354, 4
        %s356 = scalar_lea.vmem %s5, %s355
        %p357 = pneg %p197
        %p358 = pneg %p194
        %s359 = sand.u32 %s184, 1
        %s360 = scalar_lea.sflag [#allocation3], %s359
        %s361 = sand.u32 %s184, 1
        %s362 = scalar_lea.vmem [#allocation2], %s361
        %p363 = pneg %p223
        %p364 = pneg %p220
        %s365 = sand.u32 %s30, 1
        %s366 = scalar_lea.sflag [#allocation5], %s365
        %s367 = sand.u32 %s210, 1
        %s368 = scalar_lea.vmem [#allocation4], %s367
        %p369 = pneg %p249
        %p370 = pneg %p246
        %s371 = sand.u32 %s30, 1
        %s372 = scalar_lea.sflag [#allocation5], %s371
        %s373 = sand.u32 %s236, 1
        %s374 = scalar_lea.vmem [#allocation6], %s373
        %p375 = pneg %p275
        %p376 = pneg %p272
        %s377 = sand.u32 %s262, 1
        %s378 = scalar_lea.sflag [#allocation8], %s377
        %s379 = sand.u32 %s262, 1
        %s380 = scalar_lea.vmem [#allocation7], %s379
        %s381 = smul.u32 64, %s30
        %p382 = scmp.lt.s32.totalorder %s381, 127
        %s383 = scalar_select %p382, %s381, 127
        %s384 = smul.addr %s383, 4
        %s385 = scalar_lea.vmem %s0, %s384
        %s386 = smul.u32 64, %s30
        %s387 = smul.u32 64, %s30
        %p388 = scmp.lt.s32.totalorder %s387, 127
        %s389 = scalar_select %p388, %s387, 127
        %s390 = smul.addr %s389, 4
        %s391 = scalar_lea.vmem %s1, %s390
        %s392 = smul.u32 64, %s30
        %s393 = smul.u32 64, %s30
        %p394 = scmp.lt.s32.totalorder %s393, 127
        %s395 = scalar_select %p394, %s393, 127
        %s396 = smul.addr %s395, 4
        %s397 = scalar_lea.vmem %s4, %s396
        %s398 = smul.u32 64, %s30
        %s399 = smul.u32 64, %s30
        %p400 = scmp.lt.s32.totalorder %s399, 127
        %s401 = scalar_select %p400, %s399, 127
        %s402 = smul.addr %s401, 4
        %s403 = scalar_lea.vmem %s5, %s402
        %s404 = smul.u32 64, %s30
        %v406 = vld [vmem:[%s385] sm:$0xf]
        %v407 = vld [vmem:[%s385 + $0x4] sm:$0xf]
        %v408 = vld [vmem:[%s385 + $0x8] sm:$0xf]
        %v409 = vld [vmem:[%s385 + $0xc] sm:$0xf]
        %v410 = vld [vmem:[%s385 + $0x10] sm:$0xf]
        %v411 = vld [vmem:[%s385 + $0x14] sm:$0xf]
        %v412 = vld [vmem:[%s385 + $0x18] sm:$0xf]
        %v413 = vld [vmem:[%s385 + $0x1c] sm:$0xf]
        %v414 = vld [vmem:[%s385 + $0x20] sm:$0xf]
        %v415 = vld [vmem:[%s385 + $0x24] sm:$0xf]
        %v416 = vld [vmem:[%s385 + $0x28] sm:$0xf]
        %v417 = vld [vmem:[%s385 + $0x2c] sm:$0xf]
        %v418 = vld [vmem:[%s385 + $0x30] sm:$0xf]
        %v419 = vld [vmem:[%s385 + $0x34] sm:$0xf]
        %v420 = vld [vmem:[%s385 + $0x38] sm:$0xf]
        %v421 = vld [vmem:[%s385 + $0x3c] sm:$0xf]
        %v422 = vld [vmem:[%s385 + $0x40] sm:$0xf]
        %v423 = vld [vmem:[%s385 + $0x44] sm:$0xf]
        %v424 = vld [vmem:[%s385 + $0x48] sm:$0xf]
        %v425 = vld [vmem:[%s385 + $0x4c] sm:$0xf]
        %v426 = vld [vmem:[%s385 + $0x50] sm:$0xf]
        %v427 = vld [vmem:[%s385 + $0x54] sm:$0xf]
        %v428 = vld [vmem:[%s385 + $0x58] sm:$0xf]
        %v429 = vld [vmem:[%s385 + $0x5c] sm:$0xf]
        %v430 = vld [vmem:[%s385 + $0x60] sm:$0xf]
        %v431 = vld [vmem:[%s385 + $0x64] sm:$0xf]
        %v432 = vld [vmem:[%s385 + $0x68] sm:$0xf]
        %v433 = vld [vmem:[%s385 + $0x6c] sm:$0xf]
        %v434 = vld [vmem:[%s385 + $0x70] sm:$0xf]
        %v435 = vld [vmem:[%s385 + $0x74] sm:$0xf]
        %v436 = vld [vmem:[%s385 + $0x78] sm:$0xf]
        %v437 = vld [vmem:[%s385 + $0x7c] sm:$0xf]
        %v438 = vld [vmem:[%s385 + $0x80] sm:$0xf]
        %v439 = vld [vmem:[%s385 + $0x84] sm:$0xf]
        %v440 = vld [vmem:[%s385 + $0x88] sm:$0xf]
        %v441 = vld [vmem:[%s385 + $0x8c] sm:$0xf]
        %v442 = vld [vmem:[%s385 + $0x90] sm:$0xf]
        %v443 = vld [vmem:[%s385 + $0x94] sm:$0xf]
        %v444 = vld [vmem:[%s385 + $0x98] sm:$0xf]
        %v445 = vld [vmem:[%s385 + $0x9c] sm:$0xf]
        %v446 = vld [vmem:[%s385 + $0xa0] sm:$0xf]
        %v447 = vld [vmem:[%s385 + $0xa4] sm:$0xf]
        %v448 = vld [vmem:[%s385 + $0xa8] sm:$0xf]
        %v449 = vld [vmem:[%s385 + $0xac] sm:$0xf]
        %v450 = vld [vmem:[%s385 + $0xb0] sm:$0xf]
        %v451 = vld [vmem:[%s385 + $0xb4] sm:$0xf]
        %v452 = vld [vmem:[%s385 + $0xb8] sm:$0xf]
        %v453 = vld [vmem:[%s385 + $0xbc] sm:$0xf]
        %v454 = vld [vmem:[%s385 + $0xc0] sm:$0xf]
        %v455 = vld [vmem:[%s385 + $0xc4] sm:$0xf]
        %v456 = vld [vmem:[%s385 + $0xc8] sm:$0xf]
        %v457 = vld [vmem:[%s385 + $0xcc] sm:$0xf]
        %v458 = vld [vmem:[%s385 + $0xd0] sm:$0xf]
        %v459 = vld [vmem:[%s385 + $0xd4] sm:$0xf]
        %v460 = vld [vmem:[%s385 + $0xd8] sm:$0xf]
        %v461 = vld [vmem:[%s385 + $0xdc] sm:$0xf]
        %v462 = vld [vmem:[%s385 + $0xe0] sm:$0xf]
        %v463 = vld [vmem:[%s385 + $0xe4] sm:$0xf]
        %v464 = vld [vmem:[%s385 + $0xe8] sm:$0xf]
        %v465 = vld [vmem:[%s385 + $0xec] sm:$0xf]
        %v466 = vld [vmem:[%s385 + $0xf0] sm:$0xf]
        %v467 = vld [vmem:[%s385 + $0xf4] sm:$0xf]
        %v468 = vld [vmem:[%s385 + $0xf8] sm:$0xf]
        %v469 = vld [vmem:[%s385 + $0xfc] sm:$0xf]
        %v470 = vld [vmem:[%s2] sm:$0xf]
        %v471 = vld [vmem:[%s2 + $0x4] sm:$0xf]
        %v472 = vld [vmem:[%s2 + $0x8] sm:$0xf]
        %v473 = vld [vmem:[%s2 + $0xc] sm:$0xf]
        %v474 = vld [vmem:[%s2 + $0x10] sm:$0xf]
        %v475 = vld [vmem:[%s2 + $0x14] sm:$0xf]
        %v476 = vld [vmem:[%s2 + $0x18] sm:$0xf]
        %v477 = vld [vmem:[%s2 + $0x1c] sm:$0xf]
        %v478 = vld [vmem:[%s2 + $0x20] sm:$0xf]
        %v543 = vunpack.c.l.b16 %v406
        %v544 = vunpack.c.l.b16 %v407
        %v545 = vunpack.c.l.b16 %v408
        %v546 = vunpack.c.l.b16 %v409
        %v547 = vunpack.c.l.b16 %v410
        %v548 = vunpack.c.l.b16 %v411
        %v549 = vunpack.c.l.b16 %v412
        %v550 = vunpack.c.l.b16 %v413
        %v551 = vunpack.c.l.b16 %v414
        %v552 = vunpack.c.l.b16 %v415
        %v553 = vunpack.c.l.b16 %v416
        %v554 = vunpack.c.l.b16 %v417
        %v555 = vunpack.c.l.b16 %v418
        %v556 = vunpack.c.l.b16 %v419
        %v557 = vunpack.c.l.b16 %v420
        %v558 = vunpack.c.l.b16 %v421
        %v559 = vunpack.c.l.b16 %v422
        %v560 = vunpack.c.l.b16 %v423
        %v561 = vunpack.c.l.b16 %v424
        %v562 = vunpack.c.l.b16 %v425
        %v563 = vunpack.c.l.b16 %v426
        %v564 = vunpack.c.l.b16 %v427
        %v565 = vunpack.c.l.b16 %v428
        %v566 = vunpack.c.l.b16 %v429
        %v567 = vunpack.c.l.b16 %v430
        %v568 = vunpack.c.l.b16 %v431
        %v569 = vunpack.c.l.b16 %v432
        %v570 = vunpack.c.l.b16 %v433
        %v571 = vunpack.c.l.b16 %v434
        %v572 = vunpack.c.l.b16 %v435
        %v573 = vunpack.c.l.b16 %v436
        %v574 = vunpack.c.l.b16 %v437
        %v575 = vunpack.c.l.b16 %v438
        %v576 = vunpack.c.l.b16 %v439
        %v577 = vunpack.c.l.b16 %v440
        %v578 = vunpack.c.l.b16 %v441
        %v579 = vunpack.c.l.b16 %v442
        %v580 = vunpack.c.l.b16 %v443
        %v581 = vunpack.c.l.b16 %v444
        %v582 = vunpack.c.l.b16 %v445
        %v583 = vunpack.c.l.b16 %v446
        %v584 = vunpack.c.l.b16 %v447
        %v585 = vunpack.c.l.b16 %v448
        %v586 = vunpack.c.l.b16 %v449
        %v587 = vunpack.c.l.b16 %v450
        %v588 = vunpack.c.l.b16 %v451
        %v589 = vunpack.c.l.b16 %v452
        %v590 = vunpack.c.l.b16 %v453
        %v591 = vunpack.c.l.b16 %v454
        %v592 = vunpack.c.l.b16 %v455
        %v593 = vunpack.c.l.b16 %v456
        %v594 = vunpack.c.l.b16 %v457
        %v595 = vunpack.c.l.b16 %v458
        %v596 = vunpack.c.l.b16 %v459
        %v597 = vunpack.c.l.b16 %v460
        %v598 = vunpack.c.l.b16 %v461
        %v599 = vunpack.c.l.b16 %v462
        %v600 = vunpack.c.l.b16 %v463
        %v601 = vunpack.c.l.b16 %v464
        %v602 = vunpack.c.l.b16 %v465
        %v603 = vunpack.c.l.b16 %v466
        %v604 = vunpack.c.l.b16 %v467
        %v605 = vunpack.c.l.b16 %v468
        %v606 = vunpack.c.l.b16 %v469
        %v607 = vpack.c.b16 %v544, %v543
        %v608 = vpack.c.b16 %v546, %v545
        %v609 = vpack.c.b16 %v548, %v547
        %v610 = vpack.c.b16 %v550, %v549
        %v611 = vpack.c.b16 %v552, %v551
        %v612 = vpack.c.b16 %v554, %v553
        %v613 = vpack.c.b16 %v556, %v555
        %v614 = vpack.c.b16 %v558, %v557
        %v615 = vpack.c.b16 %v560, %v559
        %v616 = vpack.c.b16 %v562, %v561
        %v617 = vpack.c.b16 %v564, %v563
        %v618 = vpack.c.b16 %v566, %v565
        %v619 = vpack.c.b16 %v568, %v567
        %v620 = vpack.c.b16 %v570, %v569
        %v621 = vpack.c.b16 %v572, %v571
        %v622 = vpack.c.b16 %v574, %v573
        %v623 = vpack.c.b16 %v576, %v575
        %v624 = vpack.c.b16 %v578, %v577
        %v625 = vpack.c.b16 %v580, %v579
        %v626 = vpack.c.b16 %v582, %v581
        %v627 = vpack.c.b16 %v584, %v583
        %v628 = vpack.c.b16 %v586, %v585
        %v629 = vpack.c.b16 %v588, %v587
        %v630 = vpack.c.b16 %v590, %v589
        %v631 = vpack.c.b16 %v592, %v591
        %v632 = vpack.c.b16 %v594, %v593
        %v633 = vpack.c.b16 %v596, %v595
        %v634 = vpack.c.b16 %v598, %v597
        %v635 = vpack.c.b16 %v600, %v599
        %v636 = vpack.c.b16 %v602, %v601
        %v637 = vpack.c.b16 %v604, %v603
        %v638 = vpack.c.b16 %v606, %v605
        %v648 = vunpack.c.l.b16 %v470
        %v649 = vunpack.c.l.b16 %v471
        %v650 = vunpack.c.l.b16 %v472
        %v651 = vunpack.c.l.b16 %v473
        %v652 = vunpack.c.l.b16 %v474
        %v653 = vunpack.c.l.b16 %v475
        %v654 = vunpack.c.l.b16 %v476
        %v655 = vunpack.c.l.b16 %v477
        %v656 = vunpack.c.l.b16 %v478
        %v657 = vpack.c.b16 %v649, %v648
        %v658 = vpack.c.b16 %v651, %v650
        %v659 = vpack.c.b16 %v653, %v652
        %v660 = vpack.c.b16 %v655, %v654
        %v661 = vpack.c.b16 %v656, %v656
        %vm666 = vcmask 588800
        %v668 = vsel %vm666, %v607, 0
        %v671 = vsel %vm666, %v608, 0
        %v674 = vsel %vm666, %v609, 0
        %v677 = vsel %vm666, %v610, 0
        %v680 = vsel %vm666, %v611, 0
        %v683 = vsel %vm666, %v612, 0
        %v686 = vsel %vm666, %v613, 0
        %v689 = vsel %vm666, %v614, 0
        %v692 = vsel %vm666, %v615, 0
        %v695 = vsel %vm666, %v616, 0
        %v698 = vsel %vm666, %v617, 0
        %v701 = vsel %vm666, %v618, 0
        %v704 = vsel %vm666, %v619, 0
        %v707 = vsel %vm666, %v620, 0
        %v710 = vsel %vm666, %v621, 0
        %v713 = vsel %vm666, %v622, 0
        %v716 = vsel %vm666, %v623, 0
        %v719 = vsel %vm666, %v624, 0
        %v722 = vsel %vm666, %v625, 0
        %v725 = vsel %vm666, %v626, 0
        %v728 = vsel %vm666, %v627, 0
        %v731 = vsel %vm666, %v628, 0
        %v734 = vsel %vm666, %v629, 0
        %v737 = vsel %vm666, %v630, 0
        %v740 = vsel %vm666, %v631, 0
        %v743 = vsel %vm666, %v632, 0
        %v746 = vsel %vm666, %v633, 0
        %v749 = vsel %vm666, %v634, 0
        %v752 = vsel %vm666, %v635, 0
        %v755 = vsel %vm666, %v636, 0
        %v758 = vsel %vm666, %v637, 0
        %v761 = vsel %vm666, %v638, 0
        %vm763 = vcmask 1043456
        %v765 = vsel %vm763, %v661, 0
        %767 = vmatprep.subr.bf16.mxu0 0
        %768 = vmatpush1.bf16.msra.mxu0 %v657
        %769 = vmatprep.subr.bf16.mxu0 0
        %770 = vmatpush1.bf16.msra.mxu0 %v658
        %771 = vmatprep.subr.bf16.mxu0 0
        %772 = vmatpush1.bf16.msra.mxu0 %v659
        %773 = vmatprep.subr.bf16.mxu0 0
        %774 = vmatpush1.bf16.msra.mxu0 %v660
        %775 = vmatprep.subr.bf16.mxu0 0
        %776 = vmatpush1.bf16.msra.mxu0 %v765
        %777 = vmatprep.subr.bf16.mxu0 0
        %778 = vmatpush1.bf16.msra.mxu0 0
        %779 = vmatprep.subr.bf16.mxu0 0
        %780 = vmatpush1.bf16.msra.mxu0 0
        %781 = vmatprep.subr.bf16.mxu0 0
        %782 = vmatpush1.bf16.msra.mxu0 0
        %783 = vmatprep.subr.bf16.mxu0 0
        %784 = vmatpush1.bf16.msra.mxu0 0
        %785 = vmatprep.subr.bf16.mxu0 0
        %786 = vmatpush1.bf16.msra.mxu0 0
        %787 = vmatprep.subr.bf16.mxu0 0
        %788 = vmatpush1.bf16.msra.mxu0 0
        %789 = vmatprep.subr.bf16.mxu0 0
        %790 = vmatpush1.bf16.msra.mxu0 0
        %791 = vmatprep.subr.bf16.mxu0 0
        %792 = vmatpush1.bf16.msra.mxu0 0
        %793 = vmatprep.subr.bf16.mxu0 0
        %794 = vmatpush1.bf16.msra.mxu0 0
        %795 = vmatprep.subr.bf16.mxu0 0
        %796 = vmatpush1.bf16.msra.mxu0 0
        %797 = vmatprep.subr.bf16.mxu0 0
        %798 = vmatpush1.bf16.msra.mxu0 0
        %799 = vmatprep.mubr.bf16.mxu0 0
        %800 = vmatmul.mubr.bf16.gmra.mrb[0].mxu0 %v668
        %v801 = vpop.f32.mrb[0].mxu0
        %v802 = vadd.f32 0.0, %v801
        %v803 = vpop.f32.mrb[0].mxu0
        %v804 = vpop.f32.mrb[0].mxu0
        %v805 = vadd.f32 0.0, %v804
        %v806 = vpop.f32.mrb[0].mxu0
        %807 = vmatprep.mubr.bf16.mxu0 0
        %808 = vmatmul.mubr.bf16.gmra.mrb[0].mxu0 %v671
        %v809 = vpop.f32.mrb[0].mxu0
        %v810 = vadd.f32 0.0, %v809
        %v811 = vpop.f32.mrb[0].mxu0
        %v812 = vpop.f32.mrb[0].mxu0
        %v813 = vadd.f32 0.0, %v812
        %v814 = vpop.f32.mrb[0].mxu0
        %815 = vmatprep.mubr.bf16.mxu0 0
        %816 = vmatmul.mubr.bf16.gmra.mrb[0].mxu0 %v674
        %v817 = vpop.f32.mrb[0].mxu0
        %v818 = vadd.f32 0.0, %v817
        %v819 = vpop.f32.mrb[0].mxu0
        %v820 = vpop.f32.mrb[0].mxu0
        %v821 = vadd.f32 0.0, %v820
        %v822 = vpop.f32.mrb[0].mxu0
        %823 = vmatprep.mubr.bf16.mxu0 0
        %824 = vmatmul.mubr.bf16.gmra.mrb[0].mxu0 %v677
        %v825 = vpop.f32.mrb[0].mxu0
        %v826 = vadd.f32 0.0, %v825
        %v827 = vpop.f32.mrb[0].mxu0
        %v828 = vpop.f32.mrb[0].mxu0
        %v829 = vadd.f32 0.0, %v828
        %v830 = vpop.f32.mrb[0].mxu0
        %831 = vmatprep.mubr.bf16.mxu0 0
        %832 = vmatmul.mubr.bf16.gmra.mrb[0].mxu0 %v680
        %v833 = vpop.f32.mrb[0].mxu0
        %v834 = vadd.f32 0.0, %v833
        %v835 = vpop.f32.mrb[0].mxu0
        %v836 = vpop.f32.mrb[0].mxu0
        %v837 = vadd.f32 0.0, %v836
        %v838 = vpop.f32.mrb[0].mxu0
        %839 = vmatprep.mubr.bf16.mxu0 0
        %840 = vmatmul.mubr.bf16.gmra.mrb[0].mxu0 %v683
        %v841 = vpop.f32.mrb[0].mxu0
        %v842 = vadd.f32 0.0, %v841
        %v843 = vpop.f32.mrb[0].mxu0
        %v844 = vpop.f32.mrb[0].mxu0
        %v845 = vadd.f32 0.0, %v844
        %v846 = vpop.f32.mrb[0].mxu0
        %847 = vmatprep.mubr.bf16.mxu0 0
        %848 = vmatmul.mubr.bf16.gmra.mrb[0].mxu0 %v686
        %v849 = vpop.f32.mrb[0].mxu0
        %v850 = vadd.f32 0.0, %v849
        %v851 = vpop.f32.mrb[0].mxu0
        %v852 = vpop.f32.mrb[0].mxu0
        %v853 = vadd.f32 0.0, %v852
        %v854 = vpop.f32.mrb[0].mxu0
        %855 = vmatprep.mubr.bf16.mxu0 0
        %856 = vmatmul.mubr.bf16.gmra.mrb[0].mxu0 %v689
        %v857 = vpop.f32.mrb[0].mxu0
        %v858 = vadd.f32 0.0, %v857
        %v859 = vpop.f32.mrb[0].mxu0
        %v860 = vpop.f32.mrb[0].mxu0
        %v861 = vadd.f32 0.0, %v860
        %v862 = vpop.f32.mrb[0].mxu0
        %863 = vmatprep.mubr.bf16.mxu0 0
        %864 = vmatmul.mubr.bf16.gmra.mrb[0].mxu0 %v692
        %v865 = vpop.f32.mrb[0].mxu0
        %v866 = vadd.f32 0.0, %v865
        %v867 = vpop.f32.mrb[0].mxu0
        %v868 = vpop.f32.mrb[0].mxu0
        %v869 = vadd.f32 0.0, %v868
        %v870 = vpop.f32.mrb[0].mxu0
        %871 = vmatprep.mubr.bf16.mxu0 0
        %872 = vmatmul.mubr.bf16.gmra.mrb[0].mxu0 %v695
        %v873 = vpop.f32.mrb[0].mxu0
        %v874 = vadd.f32 0.0, %v873
        %v875 = vpop.f32.mrb[0].mxu0
        %v876 = vpop.f32.mrb[0].mxu0
        %v877 = vadd.f32 0.0, %v876
        %v878 = vpop.f32.mrb[0].mxu0
        %879 = vmatprep.mubr.bf16.mxu0 0
        %880 = vmatmul.mubr.bf16.gmra.mrb[0].mxu0 %v698
        %v881 = vpop.f32.mrb[0].mxu0
        %v882 = vadd.f32 0.0, %v881
        %v883 = vpop.f32.mrb[0].mxu0
        %v884 = vpop.f32.mrb[0].mxu0
        %v885 = vadd.f32 0.0, %v884
        %v886 = vpop.f32.mrb[0].mxu0
        %887 = vmatprep.mubr.bf16.mxu0 0
        %888 = vmatmul.mubr.bf16.gmra.mrb[0].mxu0 %v701
        %v889 = vpop.f32.mrb[0].mxu0
        %v890 = vadd.f32 0.0, %v889
        %v891 = vpop.f32.mrb[0].mxu0
        %v892 = vpop.f32.mrb[0].mxu0
        %v893 = vadd.f32 0.0, %v892
        %v894 = vpop.f32.mrb[0].mxu0
        %895 = vmatprep.mubr.bf16.mxu0 0
        %896 = vmatmul.mubr.bf16.gmra.mrb[0].mxu0 %v704
        %v897 = vpop.f32.mrb[0].mxu0
        %v898 = vadd.f32 0.0, %v897
        %v899 = vpop.f32.mrb[0].mxu0
        %v900 = vpop.f32.mrb[0].mxu0
        %v901 = vadd.f32 0.0, %v900
        %v902 = vpop.f32.mrb[0].mxu0
        %903 = vmatprep.mubr.bf16.mxu0 0
        %904 = vmatmul.mubr.bf16.gmra.mrb[0].mxu0 %v707
        %v905 = vpop.f32.mrb[0].mxu0
        %v906 = vadd.f32 0.0, %v905
        %v907 = vpop.f32.mrb[0].mxu0
        %v908 = vpop.f32.mrb[0].mxu0
        %v909 = vadd.f32 0.0, %v908
        %v910 = vpop.f32.mrb[0].mxu0
        %911 = vmatprep.mubr.bf16.mxu0 0
        %912 = vmatmul.mubr.bf16.gmra.mrb[0].mxu0 %v710
        %v913 = vpop.f32.mrb[0].mxu0
        %v914 = vadd.f32 0.0, %v913
        %v915 = vpop.f32.mrb[0].mxu0
        %v916 = vpop.f32.mrb[0].mxu0
        %v917 = vadd.f32 0.0, %v916
        %v918 = vpop.f32.mrb[0].mxu0
        %919 = vmatprep.mubr.bf16.mxu0 0
        %920 = vmatmul.mubr.bf16.gmra.mrb[0].mxu0 %v713
        %v921 = vpop.f32.mrb[0].mxu0
        %v922 = vadd.f32 0.0, %v921
        %v923 = vpop.f32.mrb[0].mxu0
        %v924 = vpop.f32.mrb[0].mxu0
        %v925 = vadd.f32 0.0, %v924
        %v926 = vpop.f32.mrb[0].mxu0
        %927 = vmatprep.mubr.bf16.mxu0 0
        %928 = vmatmul.mubr.bf16.gmra.mrb[0].mxu0 %v716
        %v929 = vpop.f32.mrb[0].mxu0
        %v930 = vadd.f32 0.0, %v929
        %v931 = vpop.f32.mrb[0].mxu0
        %v932 = vpop.f32.mrb[0].mxu0
        %v933 = vadd.f32 0.0, %v932
        %v934 = vpop.f32.mrb[0].mxu0
        %935 = vmatprep.mubr.bf16.mxu0 0
        %936 = vmatmul.mubr.bf16.gmra.mrb[0].mxu0 %v719
        %v937 = vpop.f32.mrb[0].mxu0
        %v938 = vadd.f32 0.0, %v937
        %v939 = vpop.f32.mrb[0].mxu0
        %v940 = vpop.f32.mrb[0].mxu0
        %v941 = vadd.f32 0.0, %v940
        %v942 = vpop.f32.mrb[0].mxu0
        %943 = vmatprep.mubr.bf16.mxu0 0
        %944 = vmatmul.mubr.bf16.gmra.mrb[0].mxu0 %v722
        %v945 = vpop.f32.mrb[0].mxu0
        %v946 = vadd.f32 0.0, %v945
        %v947 = vpop.f32.mrb[0].mxu0
        %v948 = vpop.f32.mrb[0].mxu0
        %v949 = vadd.f32 0.0, %v948
        %v950 = vpop.f32.mrb[0].mxu0
        %951 = vmatprep.mubr.bf16.mxu0 0
        %952 = vmatmul.mubr.bf16.gmra.mrb[0].mxu0 %v725
        %v953 = vpop.f32.mrb[0].mxu0
        %v954 = vadd.f32 0.0, %v953
        %v955 = vpop.f32.mrb[0].mxu0
        %v956 = vpop.f32.mrb[0].mxu0
        %v957 = vadd.f32 0.0, %v956
        %v958 = vpop.f32.mrb[0].mxu0
        %959 = vmatprep.mubr.bf16.mxu0 0
        %960 = vmatmul.mubr.bf16.gmra.mrb[0].mxu0 %v728
        %v961 = vpop.f32.mrb[0].mxu0
        %v962 = vadd.f32 0.0, %v961
        %v963 = vpop.f32.mrb[0].mxu0
        %v964 = vpop.f32.mrb[0].mxu0
        %v965 = vadd.f32 0.0, %v964
        %v966 = vpop.f32.mrb[0].mxu0
        %967 = vmatprep.mubr.bf16.mxu0 0
        %968 = vmatmul.mubr.bf16.gmra.mrb[0].mxu0 %v731
        %v969 = vpop.f32.mrb[0].mxu0
        %v970 = vadd.f32 0.0, %v969
        %v971 = vpop.f32.mrb[0].mxu0
        %v972 = vpop.f32.mrb[0].mxu0
        %v973 = vadd.f32 0.0, %v972
        %v974 = vpop.f32.mrb[0].mxu0
        %975 = vmatprep.mubr.bf16.mxu0 0
        %976 = vmatmul.mubr.bf16.gmra.mrb[0].mxu0 %v734
        %v977 = vpop.f32.mrb[0].mxu0
        %v978 = vadd.f32 0.0, %v977
        %v979 = vpop.f32.mrb[0].mxu0
        %v980 = vpop.f32.mrb[0].mxu0
        %v981 = vadd.f32 0.0, %v980
        %v982 = vpop.f32.mrb[0].mxu0
        %983 = vmatprep.mubr.bf16.mxu0 0
        %984 = vmatmul.mubr.bf16.gmra.mrb[0].mxu0 %v737
        %v985 = vpop.f32.mrb[0].mxu0
        %v986 = vadd.f32 0.0, %v985
        %v987 = vpop.f32.mrb[0].mxu0
        %v988 = vpop.f32.mrb[0].mxu0
        %v989 = vadd.f32 0.0, %v988
        %v990 = vpop.f32.mrb[0].mxu0
        %991 = vmatprep.mubr.bf16.mxu0 0
        %992 = vmatmul.mubr.bf16.gmra.mrb[0].mxu0 %v740
        %v993 = vpop.f32.mrb[0].mxu0
        %v994 = vadd.f32 0.0, %v993
        %v995 = vpop.f32.mrb[0].mxu0
        %v996 = vpop.f32.mrb[0].mxu0
        %v997 = vadd.f32 0.0, %v996
        %v998 = vpop.f32.mrb[0].mxu0
        %999 = vmatprep.mubr.bf16.mxu0 0
        %1000 = vmatmul.mubr.bf16.gmra.mrb[0].mxu0 %v743
        %v1001 = vpop.f32.mrb[0].mxu0
        %v1002 = vadd.f32 0.0, %v1001
        %v1003 = vpop.f32.mrb[0].mxu0
        %v1004 = vpop.f32.mrb[0].mxu0
        %v1005 = vadd.f32 0.0, %v1004
        %v1006 = vpop.f32.mrb[0].mxu0
        %1007 = vmatprep.mubr.bf16.mxu0 0
        %1008 = vmatmul.mubr.bf16.gmra.mrb[0].mxu0 %v746
        %v1009 = vpop.f32.mrb[0].mxu0
        %v1010 = vadd.f32 0.0, %v1009
        %v1011 = vpop.f32.mrb[0].mxu0
        %v1012 = vpop.f32.mrb[0].mxu0
        %v1013 = vadd.f32 0.0, %v1012
        %v1014 = vpop.f32.mrb[0].mxu0
        %1015 = vmatprep.mubr.bf16.mxu0 0
        %1016 = vmatmul.mubr.bf16.gmra.mrb[0].mxu0 %v749
        %v1017 = vpop.f32.mrb[0].mxu0
        %v1018 = vadd.f32 0.0, %v1017
        %v1019 = vpop.f32.mrb[0].mxu0
        %v1020 = vpop.f32.mrb[0].mxu0
        %v1021 = vadd.f32 0.0, %v1020
        %v1022 = vpop.f32.mrb[0].mxu0
        %1023 = vmatprep.mubr.bf16.mxu0 0
        %1024 = vmatmul.mubr.bf16.gmra.mrb[0].mxu0 %v752
        %v1025 = vpop.f32.mrb[0].mxu0
        %v1026 = vadd.f32 0.0, %v1025
        %v1027 = vpop.f32.mrb[0].mxu0
        %v1028 = vpop.f32.mrb[0].mxu0
        %v1029 = vadd.f32 0.0, %v1028
        %v1030 = vpop.f32.mrb[0].mxu0
        %1031 = vmatprep.mubr.bf16.mxu0 0
        %1032 = vmatmul.mubr.bf16.gmra.mrb[0].mxu0 %v755
        %v1033 = vpop.f32.mrb[0].mxu0
        %v1034 = vadd.f32 0.0, %v1033
        %v1035 = vpop.f32.mrb[0].mxu0
        %v1036 = vpop.f32.mrb[0].mxu0
        %v1037 = vadd.f32 0.0, %v1036
        %v1038 = vpop.f32.mrb[0].mxu0
        %1039 = vmatprep.mubr.bf16.mxu0 0
        %1040 = vmatmul.mubr.bf16.gmra.mrb[0].mxu0 %v758
        %v1041 = vpop.f32.mrb[0].mxu0
        %v1042 = vadd.f32 0.0, %v1041
        %v1043 = vpop.f32.mrb[0].mxu0
        %v1044 = vpop.f32.mrb[0].mxu0
        %v1045 = vadd.f32 0.0, %v1044
        %v1046 = vpop.f32.mrb[0].mxu0
        %1047 = vmatprep.mubr.bf16.mxu0 0
        %1048 = vmatmul.mubr.bf16.gmra.mrb[0].mxu0 %v761
        %v1049 = vpop.f32.mrb[0].mxu0
        %v1050 = vadd.f32 0.0, %v1049
        %v1051 = vpop.f32.mrb[0].mxu0
        %v1052 = vpop.f32.mrb[0].mxu0
        %v1053 = vadd.f32 0.0, %v1052
        %v1054 = vpop.f32.mrb[0].mxu0
        %1055 = vdwg.mxu0
        %v1056 = vld [vmem:[%s391] sm:$0xf]
        %v1057 = vld [vmem:[%s391 + $0x4] sm:$0xf]
        %v1058 = vld [vmem:[%s391 + $0x8] sm:$0xf]
        %v1059 = vld [vmem:[%s391 + $0xc] sm:$0xf]
        %v1060 = vld [vmem:[%s391 + $0x10] sm:$0xf]
        %v1061 = vld [vmem:[%s391 + $0x14] sm:$0xf]
        %v1062 = vld [vmem:[%s391 + $0x18] sm:$0xf]
        %v1063 = vld [vmem:[%s391 + $0x1c] sm:$0xf]
        %v1064 = vld [vmem:[%s391 + $0x20] sm:$0xf]
        %v1065 = vld [vmem:[%s391 + $0x24] sm:$0xf]
        %v1066 = vld [vmem:[%s391 + $0x28] sm:$0xf]
        %v1067 = vld [vmem:[%s391 + $0x2c] sm:$0xf]
        %v1068 = vld [vmem:[%s391 + $0x30] sm:$0xf]
        %v1069 = vld [vmem:[%s391 + $0x34] sm:$0xf]
        %v1070 = vld [vmem:[%s391 + $0x38] sm:$0xf]
        %v1071 = vld [vmem:[%s391 + $0x3c] sm:$0xf]
        %v1072 = vld [vmem:[%s391 + $0x40] sm:$0xf]
        %v1073 = vld [vmem:[%s391 + $0x44] sm:$0xf]
        %v1074 = vld [vmem:[%s391 + $0x48] sm:$0xf]
        %v1075 = vld [vmem:[%s391 + $0x4c] sm:$0xf]
        %v1076 = vld [vmem:[%s391 + $0x50] sm:$0xf]
        %v1077 = vld [vmem:[%s391 + $0x54] sm:$0xf]
        %v1078 = vld [vmem:[%s391 + $0x58] sm:$0xf]
        %v1079 = vld [vmem:[%s391 + $0x5c] sm:$0xf]
        %v1080 = vld [vmem:[%s391 + $0x60] sm:$0xf]
        %v1081 = vld [vmem:[%s391 + $0x64] sm:$0xf]
        %v1082 = vld [vmem:[%s391 + $0x68] sm:$0xf]
        %v1083 = vld [vmem:[%s391 + $0x6c] sm:$0xf]
        %v1084 = vld [vmem:[%s391 + $0x70] sm:$0xf]
        %v1085 = vld [vmem:[%s391 + $0x74] sm:$0xf]
        %v1086 = vld [vmem:[%s391 + $0x78] sm:$0xf]
        %v1087 = vld [vmem:[%s391 + $0x7c] sm:$0xf]
        %v1088 = vld [vmem:[%s391 + $0x80] sm:$0xf]
        %v1089 = vld [vmem:[%s391 + $0x84] sm:$0xf]
        %v1090 = vld [vmem:[%s391 + $0x88] sm:$0xf]
        %v1091 = vld [vmem:[%s391 + $0x8c] sm:$0xf]
        %v1092 = vld [vmem:[%s391 + $0x90] sm:$0xf]
        %v1093 = vld [vmem:[%s391 + $0x94] sm:$0xf]
        %v1094 = vld [vmem:[%s391 + $0x98] sm:$0xf]
        %v1095 = vld [vmem:[%s391 + $0x9c] sm:$0xf]
        %v1096 = vld [vmem:[%s391 + $0xa0] sm:$0xf]
        %v1097 = vld [vmem:[%s391 + $0xa4] sm:$0xf]
        %v1098 = vld [vmem:[%s391 + $0xa8] sm:$0xf]
        %v1099 = vld [vmem:[%s391 + $0xac] sm:$0xf]
        %v1100 = vld [vmem:[%s391 + $0xb0] sm:$0xf]
        %v1101 = vld [vmem:[%s391 + $0xb4] sm:$0xf]
        %v1102 = vld [vmem:[%s391 + $0xb8] sm:$0xf]
        %v1103 = vld [vmem:[%s391 + $0xbc] sm:$0xf]
        %v1104 = vld [vmem:[%s391 + $0xc0] sm:$0xf]
        %v1105 = vld [vmem:[%s391 + $0xc4] sm:$0xf]
        %v1106 = vld [vmem:[%s391 + $0xc8] sm:$0xf]
        %v1107 = vld [vmem:[%s391 + $0xcc] sm:$0xf]
        %v1108 = vld [vmem:[%s391 + $0xd0] sm:$0xf]
        %v1109 = vld [vmem:[%s391 + $0xd4] sm:$0xf]
        %v1110 = vld [vmem:[%s391 + $0xd8] sm:$0xf]
        %v1111 = vld [vmem:[%s391 + $0xdc] sm:$0xf]
        %v1112 = vld [vmem:[%s391 + $0xe0] sm:$0xf]
        %v1113 = vld [vmem:[%s391 + $0xe4] sm:$0xf]
        %v1114 = vld [vmem:[%s391 + $0xe8] sm:$0xf]
        %v1115 = vld [vmem:[%s391 + $0xec] sm:$0xf]
        %v1116 = vld [vmem:[%s391 + $0xf0] sm:$0xf]
        %v1117 = vld [vmem:[%s391 + $0xf4] sm:$0xf]
        %v1118 = vld [vmem:[%s391 + $0xf8] sm:$0xf]
        %v1119 = vld [vmem:[%s391 + $0xfc] sm:$0xf]
        %v1120 = vld [vmem:[%s3] sm:$0xf]
        %v1121 = vld [vmem:[%s3 + $0x4] sm:$0xf]
        %v1122 = vld [vmem:[%s3 + $0x8] sm:$0xf]
        %v1123 = vld [vmem:[%s3 + $0xc] sm:$0xf]
        %v1124 = vld [vmem:[%s3 + $0x10] sm:$0xf]
        %v1125 = vld [vmem:[%s3 + $0x14] sm:$0xf]
        %v1126 = vld [vmem:[%s3 + $0x18] sm:$0xf]
        %v1127 = vld [vmem:[%s3 + $0x1c] sm:$0xf]
        %v1128 = vld [vmem:[%s3 + $0x20] sm:$0xf]
        %v1193 = vunpack.c.l.b16 %v1056
        %v1194 = vunpack.c.l.b16 %v1057
        %v1195 = vunpack.c.l.b16 %v1058
        %v1196 = vunpack.c.l.b16 %v1059
        %v1197 = vunpack.c.l.b16 %v1060
        %v1198 = vunpack.c.l.b16 %v1061
        %v1199 = vunpack.c.l.b16 %v1062
        %v1200 = vunpack.c.l.b16 %v1063
        %v1201 = vunpack.c.l.b16 %v1064
        %v1202 = vunpack.c.l.b16 %v1065
        %v1203 = vunpack.c.l.b16 %v1066
        %v1204 = vunpack.c.l.b16 %v1067
        %v1205 = vunpack.c.l.b16 %v1068
        %v1206 = vunpack.c.l.b16 %v1069
        %v1207 = vunpack.c.l.b16 %v1070
        %v1208 = vunpack.c.l.b16 %v1071
        %v1209 = vunpack.c.l.b16 %v1072
        %v1210 = vunpack.c.l.b16 %v1073
        %v1211 = vunpack.c.l.b16 %v1074
        %v1212 = vunpack.c.l.b16 %v1075
        %v1213 = vunpack.c.l.b16 %v1076
        %v1214 = vunpack.c.l.b16 %v1077
        %v1215 = vunpack.c.l.b16 %v1078
        %v1216 = vunpack.c.l.b16 %v1079
        %v1217 = vunpack.c.l.b16 %v1080
        %v1218 = vunpack.c.l.b16 %v1081
        %v1219 = vunpack.c.l.b16 %v1082
        %v1220 = vunpack.c.l.b16 %v1083
        %v1221 = vunpack.c.l.b16 %v1084
        %v1222 = vunpack.c.l.b16 %v1085
        %v1223 = vunpack.c.l.b16 %v1086
        %v1224 = vunpack.c.l.b16 %v1087
        %v1225 = vunpack.c.l.b16 %v1088
        %v1226 = vunpack.c.l.b16 %v1089
        %v1227 = vunpack.c.l.b16 %v1090
        %v1228 = vunpack.c.l.b16 %v1091
        %v1229 = vunpack.c.l.b16 %v1092
        %v1230 = vunpack.c.l.b16 %v1093
        %v1231 = vunpack.c.l.b16 %v1094
        %v1232 = vunpack.c.l.b16 %v1095
        %v1233 = vunpack.c.l.b16 %v1096
        %v1234 = vunpack.c.l.b16 %v1097
        %v1235 = vunpack.c.l.b16 %v1098
        %v1236 = vunpack.c.l.b16 %v1099
        %v1237 = vunpack.c.l.b16 %v1100
        %v1238 = vunpack.c.l.b16 %v1101
        %v1239 = vunpack.c.l.b16 %v1102
        %v1240 = vunpack.c.l.b16 %v1103
        %v1241 = vunpack.c.l.b16 %v1104
        %v1242 = vunpack.c.l.b16 %v1105
        %v1243 = vunpack.c.l.b16 %v1106
        %v1244 = vunpack.c.l.b16 %v1107
        %v1245 = vunpack.c.l.b16 %v1108
        %v1246 = vunpack.c.l.b16 %v1109
        %v1247 = vunpack.c.l.b16 %v1110
        %v1248 = vunpack.c.l.b16 %v1111
        %v1249 = vunpack.c.l.b16 %v1112
        %v1250 = vunpack.c.l.b16 %v1113
        %v1251 = vunpack.c.l.b16 %v1114
        %v1252 = vunpack.c.l.b16 %v1115
        %v1253 = vunpack.c.l.b16 %v1116
        %v1254 = vunpack.c.l.b16 %v1117
        %v1255 = vunpack.c.l.b16 %v1118
        %v1256 = vunpack.c.l.b16 %v1119
        %v1257 = vpack.c.b16 %v1194, %v1193
        %v1258 = vpack.c.b16 %v1196, %v1195
        %v1259 = vpack.c.b16 %v1198, %v1197
        %v1260 = vpack.c.b16 %v1200, %v1199
        %v1261 = vpack.c.b16 %v1202, %v1201
        %v1262 = vpack.c.b16 %v1204, %v1203
        %v1263 = vpack.c.b16 %v1206, %v1205
        %v1264 = vpack.c.b16 %v1208, %v1207
        %v1265 = vpack.c.b16 %v1210, %v1209
        %v1266 = vpack.c.b16 %v1212, %v1211
        %v1267 = vpack.c.b16 %v1214, %v1213
        %v1268 = vpack.c.b16 %v1216, %v1215
        %v1269 = vpack.c.b16 %v1218, %v1217
        %v1270 = vpack.c.b16 %v1220, %v1219
        %v1271 = vpack.c.b16 %v1222, %v1221
        %v1272 = vpack.c.b16 %v1224, %v1223
        %v1273 = vpack.c.b16 %v1226, %v1225
        %v1274 = vpack.c.b16 %v1228, %v1227
        %v1275 = vpack.c.b16 %v1230, %v1229
        %v1276 = vpack.c.b16 %v1232, %v1231
        %v1277 = vpack.c.b16 %v1234, %v1233
        %v1278 = vpack.c.b16 %v1236, %v1235
        %v1279 = vpack.c.b16 %v1238, %v1237
        %v1280 = vpack.c.b16 %v1240, %v1239
        %v1281 = vpack.c.b16 %v1242, %v1241
        %v1282 = vpack.c.b16 %v1244, %v1243
        %v1283 = vpack.c.b16 %v1246, %v1245
        %v1284 = vpack.c.b16 %v1248, %v1247
        %v1285 = vpack.c.b16 %v1250, %v1249
        %v1286 = vpack.c.b16 %v1252, %v1251
        %v1287 = vpack.c.b16 %v1254, %v1253
        %v1288 = vpack.c.b16 %v1256, %v1255
        %v1298 = vunpack.c.l.b16 %v1120
        %v1299 = vunpack.c.l.b16 %v1121
        %v1300 = vunpack.c.l.b16 %v1122
        %v1301 = vunpack.c.l.b16 %v1123
        %v1302 = vunpack.c.l.b16 %v1124
        %v1303 = vunpack.c.l.b16 %v1125
        %v1304 = vunpack.c.l.b16 %v1126
        %v1305 = vunpack.c.l.b16 %v1127
        %v1306 = vunpack.c.l.b16 %v1128
        %v1307 = vpack.c.b16 %v1299, %v1298
        %v1308 = vpack.c.b16 %v1301, %v1300
        %v1309 = vpack.c.b16 %v1303, %v1302
        %v1310 = vpack.c.b16 %v1305, %v1304
        %v1311 = vpack.c.b16 %v1306, %v1306
        %v1317 = vsel %vm666, %v1257, 0
        %v1320 = vsel %vm666, %v1258, 0
        %v1323 = vsel %vm666, %v1259, 0
        %v1326 = vsel %vm666, %v1260, 0
        %v1329 = vsel %vm666, %v1261, 0
        %v1332 = vsel %vm666, %v1262, 0
        %v1335 = vsel %vm666, %v1263, 0
        %v1338 = vsel %vm666, %v1264, 0
        %v1341 = vsel %vm666, %v1265, 0
        %v1344 = vsel %vm666, %v1266, 0
        %v1347 = vsel %vm666, %v1267, 0
        %v1350 = vsel %vm666, %v1268, 0
        %v1353 = vsel %vm666, %v1269, 0
        %v1356 = vsel %vm666, %v1270, 0
        %v1359 = vsel %vm666, %v1271, 0
        %v1362 = vsel %vm666, %v1272, 0
        %v1365 = vsel %vm666, %v1273, 0
        %v1368 = vsel %vm666, %v1274, 0
        %v1371 = vsel %vm666, %v1275, 0
        %v1374 = vsel %vm666, %v1276, 0
        %v1377 = vsel %vm666, %v1277, 0
        %v1380 = vsel %vm666, %v1278, 0
        %v1383 = vsel %vm666, %v1279, 0
        %v1386 = vsel %vm666, %v1280, 0
        %v1389 = vsel %vm666, %v1281, 0
        %v1392 = vsel %vm666, %v1282, 0
        %v1395 = vsel %vm666, %v1283, 0
        %v1398 = vsel %vm666, %v1284, 0
        %v1401 = vsel %vm666, %v1285, 0
        %v1404 = vsel %vm666, %v1286, 0
        %v1407 = vsel %vm666, %v1287, 0
        %v1410 = vsel %vm666, %v1288, 0
        %v1413 = vsel %vm763, %v1311, 0
        %1415 = vmatprep.subr.bf16.mxu0 0
        %1416 = vmatpush1.bf16.msra.mxu0 %v1307
        %1417 = vmatprep.subr.bf16.mxu0 0
        %1418 = vmatpush1.bf16.msra.mxu0 %v1308
        %1419 = vmatprep.subr.bf16.mxu0 0
        %1420 = vmatpush1.bf16.msra.mxu0 %v1309
        %1421 = vmatprep.subr.bf16.mxu0 0
        %1422 = vmatpush1.bf16.msra.mxu0 %v1310
        %1423 = vmatprep.subr.bf16.mxu0 0
        %1424 = vmatpush1.bf16.msra.mxu0 %v1413
        %1425 = vmatprep.subr.bf16.mxu0 0
        %1426 = vmatpush1.bf16.msra.mxu0 0
        %1427 = vmatprep.subr.bf16.mxu0 0
        %1428 = vmatpush1.bf16.msra.mxu0 0
        %1429 = vmatprep.subr.bf16.mxu0 0
        %1430 = vmatpush1.bf16.msra.mxu0 0
        %1431 = vmatprep.subr.bf16.mxu0 0
        %1432 = vmatpush1.bf16.msra.mxu0 0
        %1433 = vmatprep.subr.bf16.mxu0 0
        %1434 = vmatpush1.bf16.msra.mxu0 0
        %1435 = vmatprep.subr.bf16.mxu0 0
        %1436 = vmatpush1.bf16.msra.mxu0 0
        %1437 = vmatprep.subr.bf16.mxu0 0
        %1438 = vmatpush1.bf16.msra.mxu0 0
        %1439 = vmatprep.subr.bf16.mxu0 0
        %1440 = vmatpush1.bf16.msra.mxu0 0
        %1441 = vmatprep.subr.bf16.mxu0 0
        %1442 = vmatpush1.bf16.msra.mxu0 0
        %1443 = vmatprep.subr.bf16.mxu0 0
        %1444 = vmatpush1.bf16.msra.mxu0 0
        %1445 = vmatprep.subr.bf16.mxu0 0
        %1446 = vmatpush1.bf16.msra.mxu0 0
        %1447 = vmatprep.mubr.bf16.mxu0 0
        %1448 = vmatmul.mubr.bf16.gmra.mrb[0].mxu0 %v1317
        %v1449 = vpop.f32.mrb[0].mxu0
        %v1450 = vadd.f32 0.0, %v1449
        %v1451 = vpop.f32.mrb[0].mxu0
        %v1452 = vpop.f32.mrb[0].mxu0
        %v1453 = vadd.f32 0.0, %v1452
        %v1454 = vpop.f32.mrb[0].mxu0
        %1455 = vmatprep.mubr.bf16.mxu0 0
        %1456 = vmatmul.mubr.bf16.gmra.mrb[0].mxu0 %v1320
        %v1457 = vpop.f32.mrb[0].mxu0
        %v1458 = vadd.f32 0.0, %v1457
        %v1459 = vpop.f32.mrb[0].mxu0
        %v1460 = vpop.f32.mrb[0].mxu0
        %v1461 = vadd.f32 0.0, %v1460
        %v1462 = vpop.f32.mrb[0].mxu0
        %1463 = vmatprep.mubr.bf16.mxu0 0
        %1464 = vmatmul.mubr.bf16.gmra.mrb[0].mxu0 %v1323
        %v1465 = vpop.f32.mrb[0].mxu0
        %v1466 = vadd.f32 0.0, %v1465
        %v1467 = vpop.f32.mrb[0].mxu0
        %v1468 = vpop.f32.mrb[0].mxu0
        %v1469 = vadd.f32 0.0, %v1468
        %v1470 = vpop.f32.mrb[0].mxu0
        %1471 = vmatprep.mubr.bf16.mxu0 0
        %1472 = vmatmul.mubr.bf16.gmra.mrb[0].mxu0 %v1326
        %v1473 = vpop.f32.mrb[0].mxu0
        %v1474 = vadd.f32 0.0, %v1473
        %v1475 = vpop.f32.mrb[0].mxu0
        %v1476 = vpop.f32.mrb[0].mxu0
        %v1477 = vadd.f32 0.0, %v1476
        %v1478 = vpop.f32.mrb[0].mxu0
        %1479 = vmatprep.mubr.bf16.mxu0 0
        %1480 = vmatmul.mubr.bf16.gmra.mrb[0].mxu0 %v1329
        %v1481 = vpop.f32.mrb[0].mxu0
        %v1482 = vadd.f32 0.0, %v1481
        %v1483 = vpop.f32.mrb[0].mxu0
        %v1484 = vpop.f32.mrb[0].mxu0
        %v1485 = vadd.f32 0.0, %v1484
        %v1486 = vpop.f32.mrb[0].mxu0
        %1487 = vmatprep.mubr.bf16.mxu0 0
        %1488 = vmatmul.mubr.bf16.gmra.mrb[0].mxu0 %v1332
        %v1489 = vpop.f32.mrb[0].mxu0
        %v1490 = vadd.f32 0.0, %v1489
        %v1491 = vpop.f32.mrb[0].mxu0
        %v1492 = vpop.f32.mrb[0].mxu0
        %v1493 = vadd.f32 0.0, %v1492
        %v1494 = vpop.f32.mrb[0].mxu0
        %1495 = vmatprep.mubr.bf16.mxu0 0
        %1496 = vmatmul.mubr.bf16.gmra.mrb[0].mxu0 %v1335
        %v1497 = vpop.f32.mrb[0].mxu0
        %v1498 = vadd.f32 0.0, %v1497
        %v1499 = vpop.f32.mrb[0].mxu0
        %v1500 = vpop.f32.mrb[0].mxu0
        %v1501 = vadd.f32 0.0, %v1500
        %v1502 = vpop.f32.mrb[0].mxu0
        %1503 = vmatprep.mubr.bf16.mxu0 0
        %1504 = vmatmul.mubr.bf16.gmra.mrb[0].mxu0 %v1338
        %v1505 = vpop.f32.mrb[0].mxu0
        %v1506 = vadd.f32 0.0, %v1505
        %v1507 = vpop.f32.mrb[0].mxu0
        %v1508 = vpop.f32.mrb[0].mxu0
        %v1509 = vadd.f32 0.0, %v1508
        %v1510 = vpop.f32.mrb[0].mxu0
        %1511 = vmatprep.mubr.bf16.mxu0 0
        %1512 = vmatmul.mubr.bf16.gmra.mrb[0].mxu0 %v1341
        %v1513 = vpop.f32.mrb[0].mxu0
        %v1514 = vadd.f32 0.0, %v1513
        %v1515 = vpop.f32.mrb[0].mxu0
        %v1516 = vpop.f32.mrb[0].mxu0
        %v1517 = vadd.f32 0.0, %v1516
        %v1518 = vpop.f32.mrb[0].mxu0
        %1519 = vmatprep.mubr.bf16.mxu0 0
        %1520 = vmatmul.mubr.bf16.gmra.mrb[0].mxu0 %v1344
        %v1521 = vpop.f32.mrb[0].mxu0
        %v1522 = vadd.f32 0.0, %v1521
        %v1523 = vpop.f32.mrb[0].mxu0
        %v1524 = vpop.f32.mrb[0].mxu0
        %v1525 = vadd.f32 0.0, %v1524
        %v1526 = vpop.f32.mrb[0].mxu0
        %1527 = vmatprep.mubr.bf16.mxu0 0
        %1528 = vmatmul.mubr.bf16.gmra.mrb[0].mxu0 %v1347
        %v1529 = vpop.f32.mrb[0].mxu0
        %v1530 = vadd.f32 0.0, %v1529
        %v1531 = vpop.f32.mrb[0].mxu0
        %v1532 = vpop.f32.mrb[0].mxu0
        %v1533 = vadd.f32 0.0, %v1532
        %v1534 = vpop.f32.mrb[0].mxu0
        %1535 = vmatprep.mubr.bf16.mxu0 0
        %1536 = vmatmul.mubr.bf16.gmra.mrb[0].mxu0 %v1350
        %v1537 = vpop.f32.mrb[0].mxu0
        %v1538 = vadd.f32 0.0, %v1537
        %v1539 = vpop.f32.mrb[0].mxu0
        %v1540 = vpop.f32.mrb[0].mxu0
        %v1541 = vadd.f32 0.0, %v1540
        %v1542 = vpop.f32.mrb[0].mxu0
        %1543 = vmatprep.mubr.bf16.mxu0 0
        %1544 = vmatmul.mubr.bf16.gmra.mrb[0].mxu0 %v1353
        %v1545 = vpop.f32.mrb[0].mxu0
        %v1546 = vadd.f32 0.0, %v1545
        %v1547 = vpop.f32.mrb[0].mxu0
        %v1548 = vpop.f32.mrb[0].mxu0
        %v1549 = vadd.f32 0.0, %v1548
        %v1550 = vpop.f32.mrb[0].mxu0
        %1551 = vmatprep.mubr.bf16.mxu0 0
        %1552 = vmatmul.mubr.bf16.gmra.mrb[0].mxu0 %v1356
        %v1553 = vpop.f32.mrb[0].mxu0
        %v1554 = vadd.f32 0.0, %v1553
        %v1555 = vpop.f32.mrb[0].mxu0
        %v1556 = vpop.f32.mrb[0].mxu0
        %v1557 = vadd.f32 0.0, %v1556
        %v1558 = vpop.f32.mrb[0].mxu0
        %1559 = vmatprep.mubr.bf16.mxu0 0
        %1560 = vmatmul.mubr.bf16.gmra.mrb[0].mxu0 %v1359
        %v1561 = vpop.f32.mrb[0].mxu0
        %v1562 = vadd.f32 0.0, %v1561
        %v1563 = vpop.f32.mrb[0].mxu0
        %v1564 = vpop.f32.mrb[0].mxu0
        %v1565 = vadd.f32 0.0, %v1564
        %v1566 = vpop.f32.mrb[0].mxu0
        %1567 = vmatprep.mubr.bf16.mxu0 0
        %1568 = vmatmul.mubr.bf16.gmra.mrb[0].mxu0 %v1362
        %v1569 = vpop.f32.mrb[0].mxu0
        %v1570 = vadd.f32 0.0, %v1569
        %v1571 = vpop.f32.mrb[0].mxu0
        %v1572 = vpop.f32.mrb[0].mxu0
        %v1573 = vadd.f32 0.0, %v1572
        %v1574 = vpop.f32.mrb[0].mxu0
        %1575 = vmatprep.mubr.bf16.mxu0 0
        %1576 = vmatmul.mubr.bf16.gmra.mrb[0].mxu0 %v1365
        %v1577 = vpop.f32.mrb[0].mxu0
        %v1578 = vadd.f32 0.0, %v1577
        %v1579 = vpop.f32.mrb[0].mxu0
        %v1580 = vpop.f32.mrb[0].mxu0
        %v1581 = vadd.f32 0.0, %v1580
        %v1582 = vpop.f32.mrb[0].mxu0
        %1583 = vmatprep.mubr.bf16.mxu0 0
        %1584 = vmatmul.mubr.bf16.gmra.mrb[0].mxu0 %v1368
        %v1585 = vpop.f32.mrb[0].mxu0
        %v1586 = vadd.f32 0.0, %v1585
        %v1587 = vpop.f32.mrb[0].mxu0
        %v1588 = vpop.f32.mrb[0].mxu0
        %v1589 = vadd.f32 0.0, %v1588
        %v1590 = vpop.f32.mrb[0].mxu0
        %1591 = vmatprep.mubr.bf16.mxu0 0
        %1592 = vmatmul.mubr.bf16.gmra.mrb[0].mxu0 %v1371
        %v1593 = vpop.f32.mrb[0].mxu0
        %v1594 = vadd.f32 0.0, %v1593
        %v1595 = vpop.f32.mrb[0].mxu0
        %v1596 = vpop.f32.mrb[0].mxu0
        %v1597 = vadd.f32 0.0, %v1596
        %v1598 = vpop.f32.mrb[0].mxu0
        %1599 = vmatprep.mubr.bf16.mxu0 0
        %1600 = vmatmul.mubr.bf16.gmra.mrb[0].mxu0 %v1374
        %v1601 = vpop.f32.mrb[0].mxu0
        %v1602 = vadd.f32 0.0, %v1601
        %v1603 = vpop.f32.mrb[0].mxu0
        %v1604 = vpop.f32.mrb[0].mxu0
        %v1605 = vadd.f32 0.0, %v1604
        %v1606 = vpop.f32.mrb[0].mxu0
        %1607 = vmatprep.mubr.bf16.mxu0 0
        %1608 = vmatmul.mubr.bf16.gmra.mrb[0].mxu0 %v1377
        %v1609 = vpop.f32.mrb[0].mxu0
        %v1610 = vadd.f32 0.0, %v1609
        %v1611 = vpop.f32.mrb[0].mxu0
        %v1612 = vpop.f32.mrb[0].mxu0
        %v1613 = vadd.f32 0.0, %v1612
        %v1614 = vpop.f32.mrb[0].mxu0
        %1615 = vmatprep.mubr.bf16.mxu0 0
        %1616 = vmatmul.mubr.bf16.gmra.mrb[0].mxu0 %v1380
        %v1617 = vpop.f32.mrb[0].mxu0
        %v1618 = vadd.f32 0.0, %v1617
        %v1619 = vpop.f32.mrb[0].mxu0
        %v1620 = vpop.f32.mrb[0].mxu0
        %v1621 = vadd.f32 0.0, %v1620
        %v1622 = vpop.f32.mrb[0].mxu0
        %1623 = vmatprep.mubr.bf16.mxu0 0
        %1624 = vmatmul.mubr.bf16.gmra.mrb[0].mxu0 %v1383
        %v1625 = vpop.f32.mrb[0].mxu0
        %v1626 = vadd.f32 0.0, %v1625
        %v1627 = vpop.f32.mrb[0].mxu0
        %v1628 = vpop.f32.mrb[0].mxu0
        %v1629 = vadd.f32 0.0, %v1628
        %v1630 = vpop.f32.mrb[0].mxu0
        %1631 = vmatprep.mubr.bf16.mxu0 0
        %1632 = vmatmul.mubr.bf16.gmra.mrb[0].mxu0 %v1386
        %v1633 = vpop.f32.mrb[0].mxu0
        %v1634 = vadd.f32 0.0, %v1633
        %v1635 = vpop.f32.mrb[0].mxu0
        %v1636 = vpop.f32.mrb[0].mxu0
        %v1637 = vadd.f32 0.0, %v1636
        %v1638 = vpop.f32.mrb[0].mxu0
        %1639 = vmatprep.mubr.bf16.mxu0 0
        %1640 = vmatmul.mubr.bf16.gmra.mrb[0].mxu0 %v1389
        %v1641 = vpop.f32.mrb[0].mxu0
        %v1642 = vadd.f32 0.0, %v1641
        %v1643 = vpop.f32.mrb[0].mxu0
        %v1644 = vpop.f32.mrb[0].mxu0
        %v1645 = vadd.f32 0.0, %v1644
        %v1646 = vpop.f32.mrb[0].mxu0
        %1647 = vmatprep.mubr.bf16.mxu0 0
        %1648 = vmatmul.mubr.bf16.gmra.mrb[0].mxu0 %v1392
        %v1649 = vpop.f32.mrb[0].mxu0
        %v1650 = vadd.f32 0.0, %v1649
        %v1651 = vpop.f32.mrb[0].mxu0
        %v1652 = vpop.f32.mrb[0].mxu0
        %v1653 = vadd.f32 0.0, %v1652
        %v1654 = vpop.f32.mrb[0].mxu0
        %1655 = vmatprep.mubr.bf16.mxu0 0
        %1656 = vmatmul.mubr.bf16.gmra.mrb[0].mxu0 %v1395
        %v1657 = vpop.f32.mrb[0].mxu0
        %v1658 = vadd.f32 0.0, %v1657
        %v1659 = vpop.f32.mrb[0].mxu0
        %v1660 = vpop.f32.mrb[0].mxu0
        %v1661 = vadd.f32 0.0, %v1660
        %v1662 = vpop.f32.mrb[0].mxu0
        %1663 = vmatprep.mubr.bf16.mxu0 0
        %1664 = vmatmul.mubr.bf16.gmra.mrb[0].mxu0 %v1398
        %v1665 = vpop.f32.mrb[0].mxu0
        %v1666 = vadd.f32 0.0, %v1665
        %v1667 = vpop.f32.mrb[0].mxu0
        %v1668 = vpop.f32.mrb[0].mxu0
        %v1669 = vadd.f32 0.0, %v1668
        %v1670 = vpop.f32.mrb[0].mxu0
        %1671 = vmatprep.mubr.bf16.mxu0 0
        %1672 = vmatmul.mubr.bf16.gmra.mrb[0].mxu0 %v1401
        %v1673 = vpop.f32.mrb[0].mxu0
        %v1674 = vadd.f32 0.0, %v1673
        %v1675 = vpop.f32.mrb[0].mxu0
        %v1676 = vpop.f32.mrb[0].mxu0
        %v1677 = vadd.f32 0.0, %v1676
        %v1678 = vpop.f32.mrb[0].mxu0
        %1679 = vmatprep.mubr.bf16.mxu0 0
        %1680 = vmatmul.mubr.bf16.gmra.mrb[0].mxu0 %v1404
        %v1681 = vpop.f32.mrb[0].mxu0
        %v1682 = vadd.f32 0.0, %v1681
        %v1683 = vpop.f32.mrb[0].mxu0
        %v1684 = vpop.f32.mrb[0].mxu0
        %v1685 = vadd.f32 0.0, %v1684
        %v1686 = vpop.f32.mrb[0].mxu0
        %1687 = vmatprep.mubr.bf16.mxu0 0
        %1688 = vmatmul.mubr.bf16.gmra.mrb[0].mxu0 %v1407
        %v1689 = vpop.f32.mrb[0].mxu0
        %v1690 = vadd.f32 0.0, %v1689
        %v1691 = vpop.f32.mrb[0].mxu0
        %v1692 = vpop.f32.mrb[0].mxu0
        %v1693 = vadd.f32 0.0, %v1692
        %v1694 = vpop.f32.mrb[0].mxu0
        %1695 = vmatprep.mubr.bf16.mxu0 0
        %1696 = vmatmul.mubr.bf16.gmra.mrb[0].mxu0 %v1410
        %v1697 = vpop.f32.mrb[0].mxu0
        %v1698 = vadd.f32 0.0, %v1697
        %v1699 = vpop.f32.mrb[0].mxu0
        %v1700 = vpop.f32.mrb[0].mxu0
        %v1701 = vadd.f32 0.0, %v1700
        %v1702 = vpop.f32.mrb[0].mxu0
        %1703 = vdwg.mxu0
        %v1704 = vpack.c.bf16 %v805, %v802
        %v1705 = vpack.c.bf16 %v813, %v810
        %v1706 = vpack.c.bf16 %v821, %v818
        %v1707 = vpack.c.bf16 %v829, %v826
        %v1708 = vpack.c.bf16 %v837, %v834
        %v1709 = vpack.c.bf16 %v845, %v842
        %v1710 = vpack.c.bf16 %v853, %v850
        %v1711 = vpack.c.bf16 %v861, %v858
        %v1712 = vpack.c.bf16 %v869, %v866
        %v1713 = vpack.c.bf16 %v877, %v874
        %v1714 = vpack.c.bf16 %v885, %v882
        %v1715 = vpack.c.bf16 %v893, %v890
        %v1716 = vpack.c.bf16 %v901, %v898
        %v1717 = vpack.c.bf16 %v909, %v906
        %v1718 = vpack.c.bf16 %v917, %v914
        %v1719 = vpack.c.bf16 %v925, %v922
        %v1720 = vpack.c.bf16 %v933, %v930
        %v1721 = vpack.c.bf16 %v941, %v938
        %v1722 = vpack.c.bf16 %v949, %v946
        %v1723 = vpack.c.bf16 %v957, %v954
        %v1724 = vpack.c.bf16 %v965, %v962
        %v1725 = vpack.c.bf16 %v973, %v970
        %v1726 = vpack.c.bf16 %v981, %v978
        %v1727 = vpack.c.bf16 %v989, %v986
        %v1728 = vpack.c.bf16 %v997, %v994
        %v1729 = vpack.c.bf16 %v1005, %v1002
        %v1730 = vpack.c.bf16 %v1013, %v1010
        %v1731 = vpack.c.bf16 %v1021, %v1018
        %v1732 = vpack.c.bf16 %v1029, %v1026
        %v1733 = vpack.c.bf16 %v1037, %v1034
        %v1734 = vpack.c.bf16 %v1045, %v1042
        %v1735 = vpack.c.bf16 %v1053, %v1050
        %v1768 = vunpack.c.l.b16 %v1704
        %v1769 = vunpack.c.h.b16 %v1704
        %v1770 = vunpack.c.l.b16 %v1705
        %v1771 = vunpack.c.h.b16 %v1705
        %v1772 = vunpack.c.l.b16 %v1706
        %v1773 = vunpack.c.h.b16 %v1706
        %v1774 = vunpack.c.l.b16 %v1707
        %v1775 = vunpack.c.h.b16 %v1707
        %v1776 = vunpack.c.l.b16 %v1708
        %v1777 = vunpack.c.h.b16 %v1708
        %v1778 = vunpack.c.l.b16 %v1709
        %v1779 = vunpack.c.h.b16 %v1709
        %v1780 = vunpack.c.l.b16 %v1710
        %v1781 = vunpack.c.h.b16 %v1710
        %v1782 = vunpack.c.l.b16 %v1711
        %v1783 = vunpack.c.h.b16 %v1711
        %v1784 = vunpack.c.l.b16 %v1712
        %v1785 = vunpack.c.h.b16 %v1712
        %v1786 = vunpack.c.l.b16 %v1713
        %v1787 = vunpack.c.h.b16 %v1713
        %v1788 = vunpack.c.l.b16 %v1714
        %v1789 = vunpack.c.h.b16 %v1714
        %v1790 = vunpack.c.l.b16 %v1715
        %v1791 = vunpack.c.h.b16 %v1715
        %v1792 = vunpack.c.l.b16 %v1716
        %v1793 = vunpack.c.h.b16 %v1716
        %v1794 = vunpack.c.l.b16 %v1717
        %v1795 = vunpack.c.h.b16 %v1717
        %v1796 = vunpack.c.l.b16 %v1718
        %v1797 = vunpack.c.h.b16 %v1718
        %v1798 = vunpack.c.l.b16 %v1719
        %v1799 = vunpack.c.h.b16 %v1719
        %v1800 = vunpack.c.l.b16 %v1720
        %v1801 = vunpack.c.h.b16 %v1720
        %v1802 = vunpack.c.l.b16 %v1721
        %v1803 = vunpack.c.h.b16 %v1721
        %v1804 = vunpack.c.l.b16 %v1722
        %v1805 = vunpack.c.h.b16 %v1722
        %v1806 = vunpack.c.l.b16 %v1723
        %v1807 = vunpack.c.h.b16 %v1723
        %v1808 = vunpack.c.l.b16 %v1724
        %v1809 = vunpack.c.h.b16 %v1724
        %v1810 = vunpack.c.l.b16 %v1725
        %v1811 = vunpack.c.h.b16 %v1725
        %v1812 = vunpack.c.l.b16 %v1726
        %v1813 = vunpack.c.h.b16 %v1726
        %v1814 = vunpack.c.l.b16 %v1727
        %v1815 = vunpack.c.h.b16 %v1727
        %v1816 = vunpack.c.l.b16 %v1728
        %v1817 = vunpack.c.h.b16 %v1728
        %v1818 = vunpack.c.l.b16 %v1729
        %v1819 = vunpack.c.h.b16 %v1729
        %v1820 = vunpack.c.l.b16 %v1730
        %v1821 = vunpack.c.h.b16 %v1730
        %v1822 = vunpack.c.l.b16 %v1731
        %v1823 = vunpack.c.h.b16 %v1731
        %v1824 = vunpack.c.l.b16 %v1732
        %v1825 = vunpack.c.h.b16 %v1732
        %v1826 = vunpack.c.l.b16 %v1733
        %v1827 = vunpack.c.h.b16 %v1733
        %v1828 = vunpack.c.l.b16 %v1734
        %v1829 = vunpack.c.h.b16 %v1734
        %v1830 = vunpack.c.l.b16 %v1735
        %v1831 = vunpack.c.h.b16 %v1735
        %v1832 = vpack.c.b16 %v1768, %v1768
        %v1833 = vpack.c.b16 %v1769, %v1769
        %v1834 = vpack.c.b16 %v1770, %v1770
        %v1835 = vpack.c.b16 %v1771, %v1771
        %v1836 = vpack.c.b16 %v1772, %v1772
        %v1837 = vpack.c.b16 %v1773, %v1773
        %v1838 = vpack.c.b16 %v1774, %v1774
        %v1839 = vpack.c.b16 %v1775, %v1775
        %v1840 = vpack.c.b16 %v1776, %v1776
        %v1841 = vpack.c.b16 %v1777, %v1777
        %v1842 = vpack.c.b16 %v1778, %v1778
        %v1843 = vpack.c.b16 %v1779, %v1779
        %v1844 = vpack.c.b16 %v1780, %v1780
        %v1845 = vpack.c.b16 %v1781, %v1781
        %v1846 = vpack.c.b16 %v1782, %v1782
        %v1847 = vpack.c.b16 %v1783, %v1783
        %v1848 = vpack.c.b16 %v1784, %v1784
        %v1849 = vpack.c.b16 %v1785, %v1785
        %v1850 = vpack.c.b16 %v1786, %v1786
        %v1851 = vpack.c.b16 %v1787, %v1787
        %v1852 = vpack.c.b16 %v1788, %v1788
        %v1853 = vpack.c.b16 %v1789, %v1789
        %v1854 = vpack.c.b16 %v1790, %v1790
        %v1855 = vpack.c.b16 %v1791, %v1791
        %v1856 = vpack.c.b16 %v1792, %v1792
        %v1857 = vpack.c.b16 %v1793, %v1793
        %v1858 = vpack.c.b16 %v1794, %v1794
        %v1859 = vpack.c.b16 %v1795, %v1795
        %v1860 = vpack.c.b16 %v1796, %v1796
        %v1861 = vpack.c.b16 %v1797, %v1797
        %v1862 = vpack.c.b16 %v1798, %v1798
        %v1863 = vpack.c.b16 %v1799, %v1799
        %v1864 = vpack.c.b16 %v1800, %v1800
        %v1865 = vpack.c.b16 %v1801, %v1801
        %v1866 = vpack.c.b16 %v1802, %v1802
        %v1867 = vpack.c.b16 %v1803, %v1803
        %v1868 = vpack.c.b16 %v1804, %v1804
        %v1869 = vpack.c.b16 %v1805, %v1805
        %v1870 = vpack.c.b16 %v1806, %v1806
        %v1871 = vpack.c.b16 %v1807, %v1807
        %v1872 = vpack.c.b16 %v1808, %v1808
        %v1873 = vpack.c.b16 %v1809, %v1809
        %v1874 = vpack.c.b16 %v1810, %v1810
        %v1875 = vpack.c.b16 %v1811, %v1811
        %v1876 = vpack.c.b16 %v1812, %v1812
        %v1877 = vpack.c.b16 %v1813, %v1813
        %v1878 = vpack.c.b16 %v1814, %v1814
        %v1879 = vpack.c.b16 %v1815, %v1815
        %v1880 = vpack.c.b16 %v1816, %v1816
        %v1881 = vpack.c.b16 %v1817, %v1817
        %v1882 = vpack.c.b16 %v1818, %v1818
        %v1883 = vpack.c.b16 %v1819, %v1819
        %v1884 = vpack.c.b16 %v1820, %v1820
        %v1885 = vpack.c.b16 %v1821, %v1821
        %v1886 = vpack.c.b16 %v1822, %v1822
        %v1887 = vpack.c.b16 %v1823, %v1823
        %v1888 = vpack.c.b16 %v1824, %v1824
        %v1889 = vpack.c.b16 %v1825, %v1825
        %v1890 = vpack.c.b16 %v1826, %v1826
        %v1891 = vpack.c.b16 %v1827, %v1827
        %v1892 = vpack.c.b16 %v1828, %v1828
        %v1893 = vpack.c.b16 %v1829, %v1829
        %v1894 = vpack.c.b16 %v1830, %v1830
        %v1895 = vpack.c.b16 %v1831, %v1831
        %vm1960 = vcmask 60416
        %1961 = vst.msk [vmem:[%s397] sm:$0xf] %vm1960, %v1832
        %1962 = vst.msk [vmem:[%s397 + $0x4] sm:$0xf] %vm1960, %v1833
        %1963 = vst.msk [vmem:[%s397 + $0x8] sm:$0xf] %vm1960, %v1834
        %1964 = vst.msk [vmem:[%s397 + $0xc] sm:$0xf] %vm1960, %v1835
        %1965 = vst.msk [vmem:[%s397 + $0x10] sm:$0xf] %vm1960, %v1836
        %1966 = vst.msk [vmem:[%s397 + $0x14] sm:$0xf] %vm1960, %v1837
        %1967 = vst.msk [vmem:[%s397 + $0x18] sm:$0xf] %vm1960, %v1838
        %1968 = vst.msk [vmem:[%s397 + $0x1c] sm:$0xf] %vm1960, %v1839
        %1969 = vst.msk [vmem:[%s397 + $0x20] sm:$0xf] %vm1960, %v1840
        %1970 = vst.msk [vmem:[%s397 + $0x24] sm:$0xf] %vm1960, %v1841
        %1971 = vst.msk [vmem:[%s397 + $0x28] sm:$0xf] %vm1960, %v1842
        %1972 = vst.msk [vmem:[%s397 + $0x2c] sm:$0xf] %vm1960, %v1843
        %1973 = vst.msk [vmem:[%s397 + $0x30] sm:$0xf] %vm1960, %v1844
        %1974 = vst.msk [vmem:[%s397 + $0x34] sm:$0xf] %vm1960, %v1845
        %1975 = vst.msk [vmem:[%s397 + $0x38] sm:$0xf] %vm1960, %v1846
        %1976 = vst.msk [vmem:[%s397 + $0x3c] sm:$0xf] %vm1960, %v1847
        %1977 = vst.msk [vmem:[%s397 + $0x40] sm:$0xf] %vm1960, %v1848
        %1978 = vst.msk [vmem:[%s397 + $0x44] sm:$0xf] %vm1960, %v1849
        %1979 = vst.msk [vmem:[%s397 + $0x48] sm:$0xf] %vm1960, %v1850
        %1980 = vst.msk [vmem:[%s397 + $0x4c] sm:$0xf] %vm1960, %v1851
        %1981 = vst.msk [vmem:[%s397 + $0x50] sm:$0xf] %vm1960, %v1852
        %1982 = vst.msk [vmem:[%s397 + $0x54] sm:$0xf] %vm1960, %v1853
        %1983 = vst.msk [vmem:[%s397 + $0x58] sm:$0xf] %vm1960, %v1854
        %1984 = vst.msk [vmem:[%s397 + $0x5c] sm:$0xf] %vm1960, %v1855
        %1985 = vst.msk [vmem:[%s397 + $0x60] sm:$0xf] %vm1960, %v1856
        %1986 = vst.msk [vmem:[%s397 + $0x64] sm:$0xf] %vm1960, %v1857
        %1987 = vst.msk [vmem:[%s397 + $0x68] sm:$0xf] %vm1960, %v1858
        %1988 = vst.msk [vmem:[%s397 + $0x6c] sm:$0xf] %vm1960, %v1859
        %1989 = vst.msk [vmem:[%s397 + $0x70] sm:$0xf] %vm1960, %v1860
        %1990 = vst.msk [vmem:[%s397 + $0x74] sm:$0xf] %vm1960, %v1861
        %1991 = vst.msk [vmem:[%s397 + $0x78] sm:$0xf] %vm1960, %v1862
        %1992 = vst.msk [vmem:[%s397 + $0x7c] sm:$0xf] %vm1960, %v1863
        %1993 = vst.msk [vmem:[%s397 + $0x80] sm:$0xf] %vm1960, %v1864
        %1994 = vst.msk [vmem:[%s397 + $0x84] sm:$0xf] %vm1960, %v1865
        %1995 = vst.msk [vmem:[%s397 + $0x88] sm:$0xf] %vm1960, %v1866
        %1996 = vst.msk [vmem:[%s397 + $0x8c] sm:$0xf] %vm1960, %v1867
        %1997 = vst.msk [vmem:[%s397 + $0x90] sm:$0xf] %vm1960, %v1868
        %1998 = vst.msk [vmem:[%s397 + $0x94] sm:$0xf] %vm1960, %v1869
        %1999 = vst.msk [vmem:[%s397 + $0x98] sm:$0xf] %vm1960, %v1870
        %2000 = vst.msk [vmem:[%s397 + $0x9c] sm:$0xf] %vm1960, %v1871
        %2001 = vst.msk [vmem:[%s397 + $0xa0] sm:$0xf] %vm1960, %v1872
        %2002 = vst.msk [vmem:[%s397 + $0xa4] sm:$0xf] %vm1960, %v1873
        %2003 = vst.msk [vmem:[%s397 + $0xa8] sm:$0xf] %vm1960, %v1874
        %2004 = vst.msk [vmem:[%s397 + $0xac] sm:$0xf] %vm1960, %v1875
        %2005 = vst.msk [vmem:[%s397 + $0xb0] sm:$0xf] %vm1960, %v1876
        %2006 = vst.msk [vmem:[%s397 + $0xb4] sm:$0xf] %vm1960, %v1877
        %2007 = vst.msk [vmem:[%s397 + $0xb8] sm:$0xf] %vm1960, %v1878
        %2008 = vst.msk [vmem:[%s397 + $0xbc] sm:$0xf] %vm1960, %v1879
        %2009 = vst.msk [vmem:[%s397 + $0xc0] sm:$0xf] %vm1960, %v1880
        %2010 = vst.msk [vmem:[%s397 + $0xc4] sm:$0xf] %vm1960, %v1881
        %2011 = vst.msk [vmem:[%s397 + $0xc8] sm:$0xf] %vm1960, %v1882
        %2012 = vst.msk [vmem:[%s397 + $0xcc] sm:$0xf] %vm1960, %v1883
        %2013 = vst.msk [vmem:[%s397 + $0xd0] sm:$0xf] %vm1960, %v1884
        %2014 = vst.msk [vmem:[%s397 + $0xd4] sm:$0xf] %vm1960, %v1885
        %2015 = vst.msk [vmem:[%s397 + $0xd8] sm:$0xf] %vm1960, %v1886
        %2016 = vst.msk [vmem:[%s397 + $0xdc] sm:$0xf] %vm1960, %v1887
        %2017 = vst.msk [vmem:[%s397 + $0xe0] sm:$0xf] %vm1960, %v1888
        %2018 = vst.msk [vmem:[%s397 + $0xe4] sm:$0xf] %vm1960, %v1889
        %2019 = vst.msk [vmem:[%s397 + $0xe8] sm:$0xf] %vm1960, %v1890
        %2020 = vst.msk [vmem:[%s397 + $0xec] sm:$0xf] %vm1960, %v1891
        %2021 = vst.msk [vmem:[%s397 + $0xf0] sm:$0xf] %vm1960, %v1892
        %2022 = vst.msk [vmem:[%s397 + $0xf4] sm:$0xf] %vm1960, %v1893
        %2023 = vst.msk [vmem:[%s397 + $0xf8] sm:$0xf] %vm1960, %v1894
        %2024 = vst.msk [vmem:[%s397 + $0xfc] sm:$0xf] %vm1960, %v1895
        %v2025 = vpack.c.bf16 %v1453, %v1450
        %v2026 = vpack.c.bf16 %v1461, %v1458
        %v2027 = vpack.c.bf16 %v1469, %v1466
        %v2028 = vpack.c.bf16 %v1477, %v1474
        %v2029 = vpack.c.bf16 %v1485, %v1482
        %v2030 = vpack.c.bf16 %v1493, %v1490
        %v2031 = vpack.c.bf16 %v1501, %v1498
        %v2032 = vpack.c.bf16 %v1509, %v1506
        %v2033 = vpack.c.bf16 %v1517, %v1514
        %v2034 = vpack.c.bf16 %v1525, %v1522
        %v2035 = vpack.c.bf16 %v1533, %v1530
        %v2036 = vpack.c.bf16 %v1541, %v1538
        %v2037 = vpack.c.bf16 %v1549, %v1546
        %v2038 = vpack.c.bf16 %v1557, %v1554
        %v2039 = vpack.c.bf16 %v1565, %v1562
        %v2040 = vpack.c.bf16 %v1573, %v1570
        %v2041 = vpack.c.bf16 %v1581, %v1578
        %v2042 = vpack.c.bf16 %v1589, %v1586
        %v2043 = vpack.c.bf16 %v1597, %v1594
        %v2044 = vpack.c.bf16 %v1605, %v1602
        %v2045 = vpack.c.bf16 %v1613, %v1610
        %v2046 = vpack.c.bf16 %v1621, %v1618
        %v2047 = vpack.c.bf16 %v1629, %v1626
        %v2048 = vpack.c.bf16 %v1637, %v1634
        %v2049 = vpack.c.bf16 %v1645, %v1642
        %v2050 = vpack.c.bf16 %v1653, %v1650
        %v2051 = vpack.c.bf16 %v1661, %v1658
        %v2052 = vpack.c.bf16 %v1669, %v1666
        %v2053 = vpack.c.bf16 %v1677, %v1674
        %v2054 = vpack.c.bf16 %v1685, %v1682
        %v2055 = vpack.c.bf16 %v1693, %v1690
        %v2056 = vpack.c.bf16 %v1701, %v1698
        %v2089 = vunpack.c.l.b16 %v2025
        %v2090 = vunpack.c.h.b16 %v2025
        %v2091 = vunpack.c.l.b16 %v2026
        %v2092 = vunpack.c.h.b16 %v2026
        %v2093 = vunpack.c.l.b16 %v2027
        %v2094 = vunpack.c.h.b16 %v2027
        %v2095 = vunpack.c.l.b16 %v2028
        %v2096 = vunpack.c.h.b16 %v2028
        %v2097 = vunpack.c.l.b16 %v2029
        %v2098 = vunpack.c.h.b16 %v2029
        %v2099 = vunpack.c.l.b16 %v2030
        %v2100 = vunpack.c.h.b16 %v2030
        %v2101 = vunpack.c.l.b16 %v2031
        %v2102 = vunpack.c.h.b16 %v2031
        %v2103 = vunpack.c.l.b16 %v2032
        %v2104 = vunpack.c.h.b16 %v2032
        %v2105 = vunpack.c.l.b16 %v2033
        %v2106 = vunpack.c.h.b16 %v2033
        %v2107 = vunpack.c.l.b16 %v2034
        %v2108 = vunpack.c.h.b16 %v2034
        %v2109 = vunpack.c.l.b16 %v2035
        %v2110 = vunpack.c.h.b16 %v2035
        %v2111 = vunpack.c.l.b16 %v2036
        %v2112 = vunpack.c.h.b16 %v2036
        %v2113 = vunpack.c.l.b16 %v2037
        %v2114 = vunpack.c.h.b16 %v2037
        %v2115 = vunpack.c.l.b16 %v2038
        %v2116 = vunpack.c.h.b16 %v2038
        %v2117 = vunpack.c.l.b16 %v2039
        %v2118 = vunpack.c.h.b16 %v2039
        %v2119 = vunpack.c.l.b16 %v2040
        %v2120 = vunpack.c.h.b16 %v2040
        %v2121 = vunpack.c.l.b16 %v2041
        %v2122 = vunpack.c.h.b16 %v2041
        %v2123 = vunpack.c.l.b16 %v2042
        %v2124 = vunpack.c.h.b16 %v2042
        %v2125 = vunpack.c.l.b16 %v2043
        %v2126 = vunpack.c.h.b16 %v2043
        %v2127 = vunpack.c.l.b16 %v2044
        %v2128 = vunpack.c.h.b16 %v2044
        %v2129 = vunpack.c.l.b16 %v2045
        %v2130 = vunpack.c.h.b16 %v2045
        %v2131 = vunpack.c.l.b16 %v2046
        %v2132 = vunpack.c.h.b16 %v2046
        %v2133 = vunpack.c.l.b16 %v2047
        %v2134 = vunpack.c.h.b16 %v2047
        %v2135 = vunpack.c.l.b16 %v2048
        %v2136 = vunpack.c.h.b16 %v2048
        %v2137 = vunpack.c.l.b16 %v2049
        %v2138 = vunpack.c.h.b16 %v2049
        %v2139 = vunpack.c.l.b16 %v2050
        %v2140 = vunpack.c.h.b16 %v2050
        %v2141 = vunpack.c.l.b16 %v2051
        %v2142 = vunpack.c.h.b16 %v2051
        %v2143 = vunpack.c.l.b16 %v2052
        %v2144 = vunpack.c.h.b16 %v2052
        %v2145 = vunpack.c.l.b16 %v2053
        %v2146 = vunpack.c.h.b16 %v2053
        %v2147 = vunpack.c.l.b16 %v2054
        %v2148 = vunpack.c.h.b16 %v2054
        %v2149 = vunpack.c.l.b16 %v2055
        %v2150 = vunpack.c.h.b16 %v2055
        %v2151 = vunpack.c.l.b16 %v2056
        %v2152 = vunpack.c.h.b16 %v2056
        %v2153 = vpack.c.b16 %v2089, %v2089
        %v2154 = vpack.c.b16 %v2090, %v2090
        %v2155 = vpack.c.b16 %v2091, %v2091
        %v2156 = vpack.c.b16 %v2092, %v2092
        %v2157 = vpack.c.b16 %v2093, %v2093
        %v2158 = vpack.c.b16 %v2094, %v2094
        %v2159 = vpack.c.b16 %v2095, %v2095
        %v2160 = vpack.c.b16 %v2096, %v2096
        %v2161 = vpack.c.b16 %v2097, %v2097
        %v2162 = vpack.c.b16 %v2098, %v2098
        %v2163 = vpack.c.b16 %v2099, %v2099
        %v2164 = vpack.c.b16 %v2100, %v2100
        %v2165 = vpack.c.b16 %v2101, %v2101
        %v2166 = vpack.c.b16 %v2102, %v2102
        %v2167 = vpack.c.b16 %v2103, %v2103
        %v2168 = vpack.c.b16 %v2104, %v2104
        %v2169 = vpack.c.b16 %v2105, %v2105
        %v2170 = vpack.c.b16 %v2106, %v2106
        %v2171 = vpack.c.b16 %v2107, %v2107
        %v2172 = vpack.c.b16 %v2108, %v2108
        %v2173 = vpack.c.b16 %v2109, %v2109
        %v2174 = vpack.c.b16 %v2110, %v2110
        %v2175 = vpack.c.b16 %v2111, %v2111
        %v2176 = vpack.c.b16 %v2112, %v2112
        %v2177 = vpack.c.b16 %v2113, %v2113
        %v2178 = vpack.c.b16 %v2114, %v2114
        %v2179 = vpack.c.b16 %v2115, %v2115
        %v2180 = vpack.c.b16 %v2116, %v2116
        %v2181 = vpack.c.b16 %v2117, %v2117
        %v2182 = vpack.c.b16 %v2118, %v2118
        %v2183 = vpack.c.b16 %v2119, %v2119
        %v2184 = vpack.c.b16 %v2120, %v2120
        %v2185 = vpack.c.b16 %v2121, %v2121
        %v2186 = vpack.c.b16 %v2122, %v2122
        %v2187 = vpack.c.b16 %v2123, %v2123
        %v2188 = vpack.c.b16 %v2124, %v2124
        %v2189 = vpack.c.b16 %v2125, %v2125
        %v2190 = vpack.c.b16 %v2126, %v2126
        %v2191 = vpack.c.b16 %v2127, %v2127
        %v2192 = vpack.c.b16 %v2128, %v2128
        %v2193 = vpack.c.b16 %v2129, %v2129
        %v2194 = vpack.c.b16 %v2130, %v2130
        %v2195 = vpack.c.b16 %v2131, %v2131
        %v2196 = vpack.c.b16 %v2132, %v2132
        %v2197 = vpack.c.b16 %v2133, %v2133
        %v2198 = vpack.c.b16 %v2134, %v2134
        %v2199 = vpack.c.b16 %v2135, %v2135
        %v2200 = vpack.c.b16 %v2136, %v2136
        %v2201 = vpack.c.b16 %v2137, %v2137
        %v2202 = vpack.c.b16 %v2138, %v2138
        %v2203 = vpack.c.b16 %v2139, %v2139
        %v2204 = vpack.c.b16 %v2140, %v2140
        %v2205 = vpack.c.b16 %v2141, %v2141
        %v2206 = vpack.c.b16 %v2142, %v2142
        %v2207 = vpack.c.b16 %v2143, %v2143
        %v2208 = vpack.c.b16 %v2144, %v2144
        %v2209 = vpack.c.b16 %v2145, %v2145
        %v2210 = vpack.c.b16 %v2146, %v2146
        %v2211 = vpack.c.b16 %v2147, %v2147
        %v2212 = vpack.c.b16 %v2148, %v2148
        %v2213 = vpack.c.b16 %v2149, %v2149
        %v2214 = vpack.c.b16 %v2150, %v2150
        %v2215 = vpack.c.b16 %v2151, %v2151
        %v2216 = vpack.c.b16 %v2152, %v2152
        %2281 = vst.msk [vmem:[%s403] sm:$0xf] %vm1960, %v2153
        %2282 = vst.msk [vmem:[%s403 + $0x4] sm:$0xf] %vm1960, %v2154
        %2283 = vst.msk [vmem:[%s403 + $0x8] sm:$0xf] %vm1960, %v2155
        %2284 = vst.msk [vmem:[%s403 + $0xc] sm:$0xf] %vm1960, %v2156
        %2285 = vst.msk [vmem:[%s403 + $0x10] sm:$0xf] %vm1960, %v2157
        %2286 = vst.msk [vmem:[%s403 + $0x14] sm:$0xf] %vm1960, %v2158
        %2287 = vst.msk [vmem:[%s403 + $0x18] sm:$0xf] %vm1960, %v2159
        %2288 = vst.msk [vmem:[%s403 + $0x1c] sm:$0xf] %vm1960, %v2160
        %2289 = vst.msk [vmem:[%s403 + $0x20] sm:$0xf] %vm1960, %v2161
        %2290 = vst.msk [vmem:[%s403 + $0x24] sm:$0xf] %vm1960, %v2162
        %2291 = vst.msk [vmem:[%s403 + $0x28] sm:$0xf] %vm1960, %v2163
        %2292 = vst.msk [vmem:[%s403 + $0x2c] sm:$0xf] %vm1960, %v2164
        %2293 = vst.msk [vmem:[%s403 + $0x30] sm:$0xf] %vm1960, %v2165
        %2294 = vst.msk [vmem:[%s403 + $0x34] sm:$0xf] %vm1960, %v2166
        %2295 = vst.msk [vmem:[%s403 + $0x38] sm:$0xf] %vm1960, %v2167
        %2296 = vst.msk [vmem:[%s403 + $0x3c] sm:$0xf] %vm1960, %v2168
        %2297 = vst.msk [vmem:[%s403 + $0x40] sm:$0xf] %vm1960, %v2169
        %2298 = vst.msk [vmem:[%s403 + $0x44] sm:$0xf] %vm1960, %v2170
        %2299 = vst.msk [vmem:[%s403 + $0x48] sm:$0xf] %vm1960, %v2171
        %2300 = vst.msk [vmem:[%s403 + $0x4c] sm:$0xf] %vm1960, %v2172
        %2301 = vst.msk [vmem:[%s403 + $0x50] sm:$0xf] %vm1960, %v2173
        %2302 = vst.msk [vmem:[%s403 + $0x54] sm:$0xf] %vm1960, %v2174
        %2303 = vst.msk [vmem:[%s403 + $0x58] sm:$0xf] %vm1960, %v2175
        %2304 = vst.msk [vmem:[%s403 + $0x5c] sm:$0xf] %vm1960, %v2176
        %2305 = vst.msk [vmem:[%s403 + $0x60] sm:$0xf] %vm1960, %v2177
        %2306 = vst.msk [vmem:[%s403 + $0x64] sm:$0xf] %vm1960, %v2178
        %2307 = vst.msk [vmem:[%s403 + $0x68] sm:$0xf] %vm1960, %v2179
        %2308 = vst.msk [vmem:[%s403 + $0x6c] sm:$0xf] %vm1960, %v2180
        %2309 = vst.msk [vmem:[%s403 + $0x70] sm:$0xf] %vm1960, %v2181
        %2310 = vst.msk [vmem:[%s403 + $0x74] sm:$0xf] %vm1960, %v2182
        %2311 = vst.msk [vmem:[%s403 + $0x78] sm:$0xf] %vm1960, %v2183
        %2312 = vst.msk [vmem:[%s403 + $0x7c] sm:$0xf] %vm1960, %v2184
        %2313 = vst.msk [vmem:[%s403 + $0x80] sm:$0xf] %vm1960, %v2185
        %2314 = vst.msk [vmem:[%s403 + $0x84] sm:$0xf] %vm1960, %v2186
        %2315 = vst.msk [vmem:[%s403 + $0x88] sm:$0xf] %vm1960, %v2187
        %2316 = vst.msk [vmem:[%s403 + $0x8c] sm:$0xf] %vm1960, %v2188
        %2317 = vst.msk [vmem:[%s403 + $0x90] sm:$0xf] %vm1960, %v2189
        %2318 = vst.msk [vmem:[%s403 + $0x94] sm:$0xf] %vm1960, %v2190
        %2319 = vst.msk [vmem:[%s403 + $0x98] sm:$0xf] %vm1960, %v2191
        %2320 = vst.msk [vmem:[%s403 + $0x9c] sm:$0xf] %vm1960, %v2192
        %2321 = vst.msk [vmem:[%s403 + $0xa0] sm:$0xf] %vm1960, %v2193
        %2322 = vst.msk [vmem:[%s403 + $0xa4] sm:$0xf] %vm1960, %v2194
        %2323 = vst.msk [vmem:[%s403 + $0xa8] sm:$0xf] %vm1960, %v2195
        %2324 = vst.msk [vmem:[%s403 + $0xac] sm:$0xf] %vm1960, %v2196
        %2325 = vst.msk [vmem:[%s403 + $0xb0] sm:$0xf] %vm1960, %v2197
        %2326 = vst.msk [vmem:[%s403 + $0xb4] sm:$0xf] %vm1960, %v2198
        %2327 = vst.msk [vmem:[%s403 + $0xb8] sm:$0xf] %vm1960, %v2199
        %2328 = vst.msk [vmem:[%s403 + $0xbc] sm:$0xf] %vm1960, %v2200
        %2329 = vst.msk [vmem:[%s403 + $0xc0] sm:$0xf] %vm1960, %v2201
        %2330 = vst.msk [vmem:[%s403 + $0xc4] sm:$0xf] %vm1960, %v2202
        %2331 = vst.msk [vmem:[%s403 + $0xc8] sm:$0xf] %vm1960, %v2203
        %2332 = vst.msk [vmem:[%s403 + $0xcc] sm:$0xf] %vm1960, %v2204
        %2333 = vst.msk [vmem:[%s403 + $0xd0] sm:$0xf] %vm1960, %v2205
        %2334 = vst.msk [vmem:[%s403 + $0xd4] sm:$0xf] %vm1960, %v2206
        %2335 = vst.msk [vmem:[%s403 + $0xd8] sm:$0xf] %vm1960, %v2207
        %2336 = vst.msk [vmem:[%s403 + $0xdc] sm:$0xf] %vm1960, %v2208
        %2337 = vst.msk [vmem:[%s403 + $0xe0] sm:$0xf] %vm1960, %v2209
        %2338 = vst.msk [vmem:[%s403 + $0xe4] sm:$0xf] %vm1960, %v2210
        %2339 = vst.msk [vmem:[%s403 + $0xe8] sm:$0xf] %vm1960, %v2211
        %2340 = vst.msk [vmem:[%s403 + $0xec] sm:$0xf] %vm1960, %v2212
        %2341 = vst.msk [vmem:[%s403 + $0xf0] sm:$0xf] %vm1960, %v2213
        %2342 = vst.msk [vmem:[%s403 + $0xf4] sm:$0xf] %vm1960, %v2214
        %2343 = vst.msk [vmem:[%s403 + $0xf8] sm:$0xf] %vm1960, %v2215
        %2344 = vst.msk [vmem:[%s403 + $0xfc] sm:$0xf] %vm1960, %v2216
        %vm2345 = vcmask 64512
        %v2346 = vsel %vm2345, %v802, 0.0
        %v2347 = vsel %vm2345, %v805, 0.0
        %v2348 = vadd.f32 %v2346, %v2347
        %v2349 = vsel %vm2345, %v810, 0.0
        %v2350 = vadd.f32 %v2348, %v2349
        %v2351 = vsel %vm2345, %v813, 0.0
        %v2352 = vadd.f32 %v2350, %v2351
        %v2353 = vsel %vm2345, %v818, 0.0
        %v2354 = vadd.f32 %v2352, %v2353
        %v2355 = vsel %vm2345, %v821, 0.0
        %v2356 = vadd.f32 %v2354, %v2355
        %v2357 = vsel %vm2345, %v826, 0.0
        %v2358 = vadd.f32 %v2356, %v2357
        %v2359 = vsel %vm2345, %v829, 0.0
        %v2360 = vadd.f32 %v2358, %v2359
        %v2361 = vsel %vm2345, %v834, 0.0
        %v2362 = vadd.f32 %v2360, %v2361
        %v2363 = vsel %vm2345, %v837, 0.0
        %v2364 = vadd.f32 %v2362, %v2363
        %v2365 = vsel %vm2345, %v842, 0.0
        %v2366 = vadd.f32 %v2364, %v2365
        %v2367 = vsel %vm2345, %v845, 0.0
        %v2368 = vadd.f32 %v2366, %v2367
        %v2369 = vsel %vm2345, %v850, 0.0
        %v2370 = vadd.f32 %v2368, %v2369
        %v2371 = vsel %vm2345, %v853, 0.0
        %v2372 = vadd.f32 %v2370, %v2371
        %v2373 = vsel %vm2345, %v858, 0.0
        %v2374 = vadd.f32 %v2372, %v2373
        %v2375 = vsel %vm2345, %v861, 0.0
        %v2376 = vadd.f32 %v2374, %v2375
        %v2377 = vsel %vm2345, %v866, 0.0
        %v2378 = vadd.f32 %v2376, %v2377
        %v2379 = vsel %vm2345, %v869, 0.0
        %v2380 = vadd.f32 %v2378, %v2379
        %v2381 = vsel %vm2345, %v874, 0.0
        %v2382 = vadd.f32 %v2380, %v2381
        %v2383 = vsel %vm2345, %v877, 0.0
        %v2384 = vadd.f32 %v2382, %v2383
        %v2385 = vsel %vm2345, %v882, 0.0
        %v2386 = vadd.f32 %v2384, %v2385
        %v2387 = vsel %vm2345, %v885, 0.0
        %v2388 = vadd.f32 %v2386, %v2387
        %v2389 = vsel %vm2345, %v890, 0.0
        %v2390 = vadd.f32 %v2388, %v2389
        %v2391 = vsel %vm2345, %v893, 0.0
        %v2392 = vadd.f32 %v2390, %v2391
        %v2393 = vsel %vm2345, %v898, 0.0
        %v2394 = vadd.f32 %v2392, %v2393
        %v2395 = vsel %vm2345, %v901, 0.0
        %v2396 = vadd.f32 %v2394, %v2395
        %v2397 = vsel %vm2345, %v906, 0.0
        %v2398 = vadd.f32 %v2396, %v2397
        %v2399 = vsel %vm2345, %v909, 0.0
        %v2400 = vadd.f32 %v2398, %v2399
        %v2401 = vsel %vm2345, %v914, 0.0
        %v2402 = vadd.f32 %v2400, %v2401
        %v2403 = vsel %vm2345, %v917, 0.0
        %v2404 = vadd.f32 %v2402, %v2403
        %v2405 = vsel %vm2345, %v922, 0.0
        %v2406 = vadd.f32 %v2404, %v2405
        %v2407 = vsel %vm2345, %v925, 0.0
        %v2408 = vadd.f32 %v2406, %v2407
        %v2409 = vsel %vm2345, %v930, 0.0
        %v2410 = vadd.f32 %v2408, %v2409
        %v2411 = vsel %vm2345, %v933, 0.0
        %v2412 = vadd.f32 %v2410, %v2411
        %v2413 = vsel %vm2345, %v938, 0.0
        %v2414 = vadd.f32 %v2412, %v2413
        %v2415 = vsel %vm2345, %v941, 0.0
        %v2416 = vadd.f32 %v2414, %v2415
        %v2417 = vsel %vm2345, %v946, 0.0
        %v2418 = vadd.f32 %v2416, %v2417
        %v2419 = vsel %vm2345, %v949, 0.0
        %v2420 = vadd.f32 %v2418, %v2419
        %v2421 = vsel %vm2345, %v954, 0.0
        %v2422 = vadd.f32 %v2420, %v2421
        %v2423 = vsel %vm2345, %v957, 0.0
        %v2424 = vadd.f32 %v2422, %v2423
        %v2425 = vsel %vm2345, %v962, 0.0
        %v2426 = vadd.f32 %v2424, %v2425
        %v2427 = vsel %vm2345, %v965, 0.0
        %v2428 = vadd.f32 %v2426, %v2427
        %v2429 = vsel %vm2345, %v970, 0.0
        %v2430 = vadd.f32 %v2428, %v2429
        %v2431 = vsel %vm2345, %v973, 0.0
        %v2432 = vadd.f32 %v2430, %v2431
        %v2433 = vsel %vm2345, %v978, 0.0
        %v2434 = vadd.f32 %v2432, %v2433
        %v2435 = vsel %vm2345, %v981, 0.0
        %v2436 = vadd.f32 %v2434, %v2435
        %v2437 = vsel %vm2345, %v986, 0.0
        %v2438 = vadd.f32 %v2436, %v2437
        %v2439 = vsel %vm2345, %v989, 0.0
        %v2440 = vadd.f32 %v2438, %v2439
        %v2441 = vsel %vm2345, %v994, 0.0
        %v2442 = vadd.f32 %v2440, %v2441
        %v2443 = vsel %vm2345, %v997, 0.0
        %v2444 = vadd.f32 %v2442, %v2443
        %v2445 = vsel %vm2345, %v1002, 0.0
        %v2446 = vadd.f32 %v2444, %v2445
        %v2447 = vsel %vm2345, %v1005, 0.0
        %v2448 = vadd.f32 %v2446, %v2447
        %v2449 = vsel %vm2345, %v1010, 0.0
        %v2450 = vadd.f32 %v2448, %v2449
        %v2451 = vsel %vm2345, %v1013, 0.0
        %v2452 = vadd.f32 %v2450, %v2451
        %v2453 = vsel %vm2345, %v1018, 0.0
        %v2454 = vadd.f32 %v2452, %v2453
        %v2455 = vsel %vm2345, %v1021, 0.0
        %v2456 = vadd.f32 %v2454, %v2455
        %v2457 = vsel %vm2345, %v1026, 0.0
        %v2458 = vadd.f32 %v2456, %v2457
        %v2459 = vsel %vm2345, %v1029, 0.0
        %v2460 = vadd.f32 %v2458, %v2459
        %v2461 = vsel %vm2345, %v1034, 0.0
        %v2462 = vadd.f32 %v2460, %v2461
        %v2463 = vsel %vm2345, %v1037, 0.0
        %v2464 = vadd.f32 %v2462, %v2463
        %v2465 = vsel %vm2345, %v1042, 0.0
        %v2466 = vadd.f32 %v2464, %v2465
        %v2467 = vsel %vm2345, %v1045, 0.0
        %v2468 = vadd.f32 %v2466, %v2467
        %v2469 = vsel %vm2345, %v1050, 0.0
        %v2470 = vadd.f32 %v2468, %v2469
        %v2471 = vsel %vm2345, %v1053, 0.0
        %v2472 = vadd.f32 %v2470, %v2471
        %v2473 = vrot.slane %v2472, 4
        %v2474 = vadd.f32 %v2472, %v2473
        %v2475 = vrot.slane %v2474, 2
        %v2476 = vadd.f32 %v2474, %v2475
        %v2477 = vrot.slane %v2476, 1
        %v2478 = vadd.f32 %v2476, %v2477
        %vm2479 = vcmask 57344
        %2480 = vst.msk [vmem:[%s362] sm:$0x1] %vm2479, %v2478
        %v2481 = vmul.f32 %v802, %v802
        %v2482 = vmul.f32 %v805, %v805
        %v2483 = vmul.f32 %v810, %v810
        %v2484 = vmul.f32 %v813, %v813
        %v2485 = vmul.f32 %v818, %v818
        %v2486 = vmul.f32 %v821, %v821
        %v2487 = vmul.f32 %v826, %v826
        %v2488 = vmul.f32 %v829, %v829
        %v2489 = vmul.f32 %v834, %v834
        %v2490 = vmul.f32 %v837, %v837
        %v2491 = vmul.f32 %v842, %v842
        %v2492 = vmul.f32 %v845, %v845
        %v2493 = vmul.f32 %v850, %v850
        %v2494 = vmul.f32 %v853, %v853
        %v2495 = vmul.f32 %v858, %v858
        %v2496 = vmul.f32 %v861, %v861
        %v2497 = vmul.f32 %v866, %v866
        %v2498 = vmul.f32 %v869, %v869
        %v2499 = vmul.f32 %v874, %v874
        %v2500 = vmul.f32 %v877, %v877
        %v2501 = vmul.f32 %v882, %v882
        %v2502 = vmul.f32 %v885, %v885
        %v2503 = vmul.f32 %v890, %v890
        %v2504 = vmul.f32 %v893, %v893
        %v2505 = vmul.f32 %v898, %v898
        %v2506 = vmul.f32 %v901, %v901
        %v2507 = vmul.f32 %v906, %v906
        %v2508 = vmul.f32 %v909, %v909
        %v2509 = vmul.f32 %v914, %v914
        %v2510 = vmul.f32 %v917, %v917
        %v2511 = vmul.f32 %v922, %v922
        %v2512 = vmul.f32 %v925, %v925
        %v2513 = vmul.f32 %v930, %v930
        %v2514 = vmul.f32 %v933, %v933
        %v2515 = vmul.f32 %v938, %v938
        %v2516 = vmul.f32 %v941, %v941
        %v2517 = vmul.f32 %v946, %v946
        %v2518 = vmul.f32 %v949, %v949
        %v2519 = vmul.f32 %v954, %v954
        %v2520 = vmul.f32 %v957, %v957
        %v2521 = vmul.f32 %v962, %v962
        %v2522 = vmul.f32 %v965, %v965
        %v2523 = vmul.f32 %v970, %v970
        %v2524 = vmul.f32 %v973, %v973
        %v2525 = vmul.f32 %v978, %v978
        %v2526 = vmul.f32 %v981, %v981
        %v2527 = vmul.f32 %v986, %v986
        %v2528 = vmul.f32 %v989, %v989
        %v2529 = vmul.f32 %v994, %v994
        %v2530 = vmul.f32 %v997, %v997
        %v2531 = vmul.f32 %v1002, %v1002
        %v2532 = vmul.f32 %v1005, %v1005
        %v2533 = vmul.f32 %v1010, %v1010
        %v2534 = vmul.f32 %v1013, %v1013
        %v2535 = vmul.f32 %v1018, %v1018
        %v2536 = vmul.f32 %v1021, %v1021
        %v2537 = vmul.f32 %v1026, %v1026
        %v2538 = vmul.f32 %v1029, %v1029
        %v2539 = vmul.f32 %v1034, %v1034
        %v2540 = vmul.f32 %v1037, %v1037
        %v2541 = vmul.f32 %v1042, %v1042
        %v2542 = vmul.f32 %v1045, %v1045
        %v2543 = vmul.f32 %v1050, %v1050
        %v2544 = vmul.f32 %v1053, %v1053
        %v2545 = vsel %vm2345, %v2481, 0.0
        %v2546 = vsel %vm2345, %v2482, 0.0
        %v2547 = vadd.f32 %v2545, %v2546
        %v2548 = vsel %vm2345, %v2483, 0.0
        %v2549 = vadd.f32 %v2547, %v2548
        %v2550 = vsel %vm2345, %v2484, 0.0
        %v2551 = vadd.f32 %v2549, %v2550
        %v2552 = vsel %vm2345, %v2485, 0.0
        %v2553 = vadd.f32 %v2551, %v2552
        %v2554 = vsel %vm2345, %v2486, 0.0
        %v2555 = vadd.f32 %v2553, %v2554
        %v2556 = vsel %vm2345, %v2487, 0.0
        %v2557 = vadd.f32 %v2555, %v2556
        %v2558 = vsel %vm2345, %v2488, 0.0
        %v2559 = vadd.f32 %v2557, %v2558
        %v2560 = vsel %vm2345, %v2489, 0.0
        %v2561 = vadd.f32 %v2559, %v2560
        %v2562 = vsel %vm2345, %v2490, 0.0
        %v2563 = vadd.f32 %v2561, %v2562
        %v2564 = vsel %vm2345, %v2491, 0.0
        %v2565 = vadd.f32 %v2563, %v2564
        %v2566 = vsel %vm2345, %v2492, 0.0
        %v2567 = vadd.f32 %v2565, %v2566
        %v2568 = vsel %vm2345, %v2493, 0.0
        %v2569 = vadd.f32 %v2567, %v2568
        %v2570 = vsel %vm2345, %v2494, 0.0
        %v2571 = vadd.f32 %v2569, %v2570
        %v2572 = vsel %vm2345, %v2495, 0.0
        %v2573 = vadd.f32 %v2571, %v2572
        %v2574 = vsel %vm2345, %v2496, 0.0
        %v2575 = vadd.f32 %v2573, %v2574
        %v2576 = vsel %vm2345, %v2497, 0.0
        %v2577 = vadd.f32 %v2575, %v2576
        %v2578 = vsel %vm2345, %v2498, 0.0
        %v2579 = vadd.f32 %v2577, %v2578
        %v2580 = vsel %vm2345, %v2499, 0.0
        %v2581 = vadd.f32 %v2579, %v2580
        %v2582 = vsel %vm2345, %v2500, 0.0
        %v2583 = vadd.f32 %v2581, %v2582
        %v2584 = vsel %vm2345, %v2501, 0.0
        %v2585 = vadd.f32 %v2583, %v2584
        %v2586 = vsel %vm2345, %v2502, 0.0
        %v2587 = vadd.f32 %v2585, %v2586
        %v2588 = vsel %vm2345, %v2503, 0.0
        %v2589 = vadd.f32 %v2587, %v2588
        %v2590 = vsel %vm2345, %v2504, 0.0
        %v2591 = vadd.f32 %v2589, %v2590
        %v2592 = vsel %vm2345, %v2505, 0.0
        %v2593 = vadd.f32 %v2591, %v2592
        %v2594 = vsel %vm2345, %v2506, 0.0
        %v2595 = vadd.f32 %v2593, %v2594
        %v2596 = vsel %vm2345, %v2507, 0.0
        %v2597 = vadd.f32 %v2595, %v2596
        %v2598 = vsel %vm2345, %v2508, 0.0
        %v2599 = vadd.f32 %v2597, %v2598
        %v2600 = vsel %vm2345, %v2509, 0.0
        %v2601 = vadd.f32 %v2599, %v2600
        %v2602 = vsel %vm2345, %v2510, 0.0
        %v2603 = vadd.f32 %v2601, %v2602
        %v2604 = vsel %vm2345, %v2511, 0.0
        %v2605 = vadd.f32 %v2603, %v2604
        %v2606 = vsel %vm2345, %v2512, 0.0
        %v2607 = vadd.f32 %v2605, %v2606
        %v2608 = vsel %vm2345, %v2513, 0.0
        %v2609 = vadd.f32 %v2607, %v2608
        %v2610 = vsel %vm2345, %v2514, 0.0
        %v2611 = vadd.f32 %v2609, %v2610
        %v2612 = vsel %vm2345, %v2515, 0.0
        %v2613 = vadd.f32 %v2611, %v2612
        %v2614 = vsel %vm2345, %v2516, 0.0
        %v2615 = vadd.f32 %v2613, %v2614
        %v2616 = vsel %vm2345, %v2517, 0.0
        %v2617 = vadd.f32 %v2615, %v2616
        %v2618 = vsel %vm2345, %v2518, 0.0
        %v2619 = vadd.f32 %v2617, %v2618
        %v2620 = vsel %vm2345, %v2519, 0.0
        %v2621 = vadd.f32 %v2619, %v2620
        %v2622 = vsel %vm2345, %v2520, 0.0
        %v2623 = vadd.f32 %v2621, %v2622
        %v2624 = vsel %vm2345, %v2521, 0.0
        %v2625 = vadd.f32 %v2623, %v2624
        %v2626 = vsel %vm2345, %v2522, 0.0
        %v2627 = vadd.f32 %v2625, %v2626
        %v2628 = vsel %vm2345, %v2523, 0.0
        %v2629 = vadd.f32 %v2627, %v2628
        %v2630 = vsel %vm2345, %v2524, 0.0
        %v2631 = vadd.f32 %v2629, %v2630
        %v2632 = vsel %vm2345, %v2525, 0.0
        %v2633 = vadd.f32 %v2631, %v2632
        %v2634 = vsel %vm2345, %v2526, 0.0
        %v2635 = vadd.f32 %v2633, %v2634
        %v2636 = vsel %vm2345, %v2527, 0.0
        %v2637 = vadd.f32 %v2635, %v2636
        %v2638 = vsel %vm2345, %v2528, 0.0
        %v2639 = vadd.f32 %v2637, %v2638
        %v2640 = vsel %vm2345, %v2529, 0.0
        %v2641 = vadd.f32 %v2639, %v2640
        %v2642 = vsel %vm2345, %v2530, 0.0
        %v2643 = vadd.f32 %v2641, %v2642
        %v2644 = vsel %vm2345, %v2531, 0.0
        %v2645 = vadd.f32 %v2643, %v2644
        %v2646 = vsel %vm2345, %v2532, 0.0
        %v2647 = vadd.f32 %v2645, %v2646
        %v2648 = vsel %vm2345, %v2533, 0.0
        %v2649 = vadd.f32 %v2647, %v2648
        %v2650 = vsel %vm2345, %v2534, 0.0
        %v2651 = vadd.f32 %v2649, %v2650
        %v2652 = vsel %vm2345, %v2535, 0.0
        %v2653 = vadd.f32 %v2651, %v2652
        %v2654 = vsel %vm2345, %v2536, 0.0
        %v2655 = vadd.f32 %v2653, %v2654
        %v2656 = vsel %vm2345, %v2537, 0.0
        %v2657 = vadd.f32 %v2655, %v2656
        %v2658 = vsel %vm2345, %v2538, 0.0
        %v2659 = vadd.f32 %v2657, %v2658
        %v2660 = vsel %vm2345, %v2539, 0.0
        %v2661 = vadd.f32 %v2659, %v2660
        %v2662 = vsel %vm2345, %v2540, 0.0
        %v2663 = vadd.f32 %v2661, %v2662
        %v2664 = vsel %vm2345, %v2541, 0.0
        %v2665 = vadd.f32 %v2663, %v2664
        %v2666 = vsel %vm2345, %v2542, 0.0
        %v2667 = vadd.f32 %v2665, %v2666
        %v2668 = vsel %vm2345, %v2543, 0.0
        %v2669 = vadd.f32 %v2667, %v2668
        %v2670 = vsel %vm2345, %v2544, 0.0
        %v2671 = vadd.f32 %v2669, %v2670
        %v2672 = vrot.slane %v2671, 4
        %v2673 = vadd.f32 %v2671, %v2672
        %v2674 = vrot.slane %v2673, 2
        %v2675 = vadd.f32 %v2673, %v2674
        %v2676 = vrot.slane %v2675, 1
        %v2677 = vadd.f32 %v2675, %v2676
        %2678 = vst.msk [vmem:[%s368] sm:$0x1] %vm2479, %v2677
        %v2679 = vsel %vm2345, %v1450, 0.0
        %v2680 = vsel %vm2345, %v1453, 0.0
        %v2681 = vadd.f32 %v2679, %v2680
        %v2682 = vsel %vm2345, %v1458, 0.0
        %v2683 = vadd.f32 %v2681, %v2682
        %v2684 = vsel %vm2345, %v1461, 0.0
        %v2685 = vadd.f32 %v2683, %v2684
        %v2686 = vsel %vm2345, %v1466, 0.0
        %v2687 = vadd.f32 %v2685, %v2686
        %v2688 = vsel %vm2345, %v1469, 0.0
        %v2689 = vadd.f32 %v2687, %v2688
        %v2690 = vsel %vm2345, %v1474, 0.0
        %v2691 = vadd.f32 %v2689, %v2690
        %v2692 = vsel %vm2345, %v1477, 0.0
        %v2693 = vadd.f32 %v2691, %v2692
        %v2694 = vsel %vm2345, %v1482, 0.0
        %v2695 = vadd.f32 %v2693, %v2694
        %v2696 = vsel %vm2345, %v1485, 0.0
        %v2697 = vadd.f32 %v2695, %v2696
        %v2698 = vsel %vm2345, %v1490, 0.0
        %v2699 = vadd.f32 %v2697, %v2698
        %v2700 = vsel %vm2345, %v1493, 0.0
        %v2701 = vadd.f32 %v2699, %v2700
        %v2702 = vsel %vm2345, %v1498, 0.0
        %v2703 = vadd.f32 %v2701, %v2702
        %v2704 = vsel %vm2345, %v1501, 0.0
        %v2705 = vadd.f32 %v2703, %v2704
        %v2706 = vsel %vm2345, %v1506, 0.0
        %v2707 = vadd.f32 %v2705, %v2706
        %v2708 = vsel %vm2345, %v1509, 0.0
        %v2709 = vadd.f32 %v2707, %v2708
        %v2710 = vsel %vm2345, %v1514, 0.0
        %v2711 = vadd.f32 %v2709, %v2710
        %v2712 = vsel %vm2345, %v1517, 0.0
        %v2713 = vadd.f32 %v2711, %v2712
        %v2714 = vsel %vm2345, %v1522, 0.0
        %v2715 = vadd.f32 %v2713, %v2714
        %v2716 = vsel %vm2345, %v1525, 0.0
        %v2717 = vadd.f32 %v2715, %v2716
        %v2718 = vsel %vm2345, %v1530, 0.0
        %v2719 = vadd.f32 %v2717, %v2718
        %v2720 = vsel %vm2345, %v1533, 0.0
        %v2721 = vadd.f32 %v2719, %v2720
        %v2722 = vsel %vm2345, %v1538, 0.0
        %v2723 = vadd.f32 %v2721, %v2722
        %v2724 = vsel %vm2345, %v1541, 0.0
        %v2725 = vadd.f32 %v2723, %v2724
        %v2726 = vsel %vm2345, %v1546, 0.0
        %v2727 = vadd.f32 %v2725, %v2726
        %v2728 = vsel %vm2345, %v1549, 0.0
        %v2729 = vadd.f32 %v2727, %v2728
        %v2730 = vsel %vm2345, %v1554, 0.0
        %v2731 = vadd.f32 %v2729, %v2730
        %v2732 = vsel %vm2345, %v1557, 0.0
        %v2733 = vadd.f32 %v2731, %v2732
        %v2734 = vsel %vm2345, %v1562, 0.0
        %v2735 = vadd.f32 %v2733, %v2734
        %v2736 = vsel %vm2345, %v1565, 0.0
        %v2737 = vadd.f32 %v2735, %v2736
        %v2738 = vsel %vm2345, %v1570, 0.0
        %v2739 = vadd.f32 %v2737, %v2738
        %v2740 = vsel %vm2345, %v1573, 0.0
        %v2741 = vadd.f32 %v2739, %v2740
        %v2742 = vsel %vm2345, %v1578, 0.0
        %v2743 = vadd.f32 %v2741, %v2742
        %v2744 = vsel %vm2345, %v1581, 0.0
        %v2745 = vadd.f32 %v2743, %v2744
        %v2746 = vsel %vm2345, %v1586, 0.0
        %v2747 = vadd.f32 %v2745, %v2746
        %v2748 = vsel %vm2345, %v1589, 0.0
        %v2749 = vadd.f32 %v2747, %v2748
        %v2750 = vsel %vm2345, %v1594, 0.0
        %v2751 = vadd.f32 %v2749, %v2750
        %v2752 = vsel %vm2345, %v1597, 0.0
        %v2753 = vadd.f32 %v2751, %v2752
        %v2754 = vsel %vm2345, %v1602, 0.0
        %v2755 = vadd.f32 %v2753, %v2754
        %v2756 = vsel %vm2345, %v1605, 0.0
        %v2757 = vadd.f32 %v2755, %v2756
        %v2758 = vsel %vm2345, %v1610, 0.0
        %v2759 = vadd.f32 %v2757, %v2758
        %v2760 = vsel %vm2345, %v1613, 0.0
        %v2761 = vadd.f32 %v2759, %v2760
        %v2762 = vsel %vm2345, %v1618, 0.0
        %v2763 = vadd.f32 %v2761, %v2762
        %v2764 = vsel %vm2345, %v1621, 0.0
        %v2765 = vadd.f32 %v2763, %v2764
        %v2766 = vsel %vm2345, %v1626, 0.0
        %v2767 = vadd.f32 %v2765, %v2766
        %v2768 = vsel %vm2345, %v1629, 0.0
        %v2769 = vadd.f32 %v2767, %v2768
        %v2770 = vsel %vm2345, %v1634, 0.0
        %v2771 = vadd.f32 %v2769, %v2770
        %v2772 = vsel %vm2345, %v1637, 0.0
        %v2773 = vadd.f32 %v2771, %v2772
        %v2774 = vsel %vm2345, %v1642, 0.0
        %v2775 = vadd.f32 %v2773, %v2774
        %v2776 = vsel %vm2345, %v1645, 0.0
        %v2777 = vadd.f32 %v2775, %v2776
        %v2778 = vsel %vm2345, %v1650, 0.0
        %v2779 = vadd.f32 %v2777, %v2778
        %v2780 = vsel %vm2345, %v1653, 0.0
        %v2781 = vadd.f32 %v2779, %v2780
        %v2782 = vsel %vm2345, %v1658, 0.0
        %v2783 = vadd.f32 %v2781, %v2782
        %v2784 = vsel %vm2345, %v1661, 0.0
        %v2785 = vadd.f32 %v2783, %v2784
        %v2786 = vsel %vm2345, %v1666, 0.0
        %v2787 = vadd.f32 %v2785, %v2786
        %v2788 = vsel %vm2345, %v1669, 0.0
        %v2789 = vadd.f32 %v2787, %v2788
        %v2790 = vsel %vm2345, %v1674, 0.0
        %v2791 = vadd.f32 %v2789, %v2790
        %v2792 = vsel %vm2345, %v1677, 0.0
        %v2793 = vadd.f32 %v2791, %v2792
        %v2794 = vsel %vm2345, %v1682, 0.0
        %v2795 = vadd.f32 %v2793, %v2794
        %v2796 = vsel %vm2345, %v1685, 0.0
        %v2797 = vadd.f32 %v2795, %v2796
        %v2798 = vsel %vm2345, %v1690, 0.0
        %v2799 = vadd.f32 %v2797, %v2798
        %v2800 = vsel %vm2345, %v1693, 0.0
        %v2801 = vadd.f32 %v2799, %v2800
        %v2802 = vsel %vm2345, %v1698, 0.0
        %v2803 = vadd.f32 %v2801, %v2802
        %v2804 = vsel %vm2345, %v1701, 0.0
        %v2805 = vadd.f32 %v2803, %v2804
        %v2806 = vrot.slane %v2805, 4
        %v2807 = vadd.f32 %v2805, %v2806
        %v2808 = vrot.slane %v2807, 2
        %v2809 = vadd.f32 %v2807, %v2808
        %v2810 = vrot.slane %v2809, 1
        %v2811 = vadd.f32 %v2809, %v2810
        %2812 = vst.msk [vmem:[%s374] sm:$0x1] %vm2479, %v2811
        %v2813 = vmul.f32 %v1450, %v1450
        %v2814 = vmul.f32 %v1453, %v1453
        %v2815 = vmul.f32 %v1458, %v1458
        %v2816 = vmul.f32 %v1461, %v1461
        %v2817 = vmul.f32 %v1466, %v1466
        %v2818 = vmul.f32 %v1469, %v1469
        %v2819 = vmul.f32 %v1474, %v1474
        %v2820 = vmul.f32 %v1477, %v1477
        %v2821 = vmul.f32 %v1482, %v1482
        %v2822 = vmul.f32 %v1485, %v1485
        %v2823 = vmul.f32 %v1490, %v1490
        %v2824 = vmul.f32 %v1493, %v1493
        %v2825 = vmul.f32 %v1498, %v1498
        %v2826 = vmul.f32 %v1501, %v1501
        %v2827 = vmul.f32 %v1506, %v1506
        %v2828 = vmul.f32 %v1509, %v1509
        %v2829 = vmul.f32 %v1514, %v1514
        %v2830 = vmul.f32 %v1517, %v1517
        %v2831 = vmul.f32 %v1522, %v1522
        %v2832 = vmul.f32 %v1525, %v1525
        %v2833 = vmul.f32 %v1530, %v1530
        %v2834 = vmul.f32 %v1533, %v1533
        %v2835 = vmul.f32 %v1538, %v1538
        %v2836 = vmul.f32 %v1541, %v1541
        %v2837 = vmul.f32 %v1546, %v1546
        %v2838 = vmul.f32 %v1549, %v1549
        %v2839 = vmul.f32 %v1554, %v1554
        %v2840 = vmul.f32 %v1557, %v1557
        %v2841 = vmul.f32 %v1562, %v1562
        %v2842 = vmul.f32 %v1565, %v1565
        %v2843 = vmul.f32 %v1570, %v1570
        %v2844 = vmul.f32 %v1573, %v1573
        %v2845 = vmul.f32 %v1578, %v1578
        %v2846 = vmul.f32 %v1581, %v1581
        %v2847 = vmul.f32 %v1586, %v1586
        %v2848 = vmul.f32 %v1589, %v1589
        %v2849 = vmul.f32 %v1594, %v1594
        %v2850 = vmul.f32 %v1597, %v1597
        %v2851 = vmul.f32 %v1602, %v1602
        %v2852 = vmul.f32 %v1605, %v1605
        %v2853 = vmul.f32 %v1610, %v1610
        %v2854 = vmul.f32 %v1613, %v1613
        %v2855 = vmul.f32 %v1618, %v1618
        %v2856 = vmul.f32 %v1621, %v1621
        %v2857 = vmul.f32 %v1626, %v1626
        %v2858 = vmul.f32 %v1629, %v1629
        %v2859 = vmul.f32 %v1634, %v1634
        %v2860 = vmul.f32 %v1637, %v1637
        %v2861 = vmul.f32 %v1642, %v1642
        %v2862 = vmul.f32 %v1645, %v1645
        %v2863 = vmul.f32 %v1650, %v1650
        %v2864 = vmul.f32 %v1653, %v1653
        %v2865 = vmul.f32 %v1658, %v1658
        %v2866 = vmul.f32 %v1661, %v1661
        %v2867 = vmul.f32 %v1666, %v1666
        %v2868 = vmul.f32 %v1669, %v1669
        %v2869 = vmul.f32 %v1674, %v1674
        %v2870 = vmul.f32 %v1677, %v1677
        %v2871 = vmul.f32 %v1682, %v1682
        %v2872 = vmul.f32 %v1685, %v1685
        %v2873 = vmul.f32 %v1690, %v1690
        %v2874 = vmul.f32 %v1693, %v1693
        %v2875 = vmul.f32 %v1698, %v1698
        %v2876 = vmul.f32 %v1701, %v1701
        %v2877 = vsel %vm2345, %v2813, 0.0
        %v2878 = vsel %vm2345, %v2814, 0.0
        %v2879 = vadd.f32 %v2877, %v2878
        %v2880 = vsel %vm2345, %v2815, 0.0
        %v2881 = vadd.f32 %v2879, %v2880
        %v2882 = vsel %vm2345, %v2816, 0.0
        %v2883 = vadd.f32 %v2881, %v2882
        %v2884 = vsel %vm2345, %v2817, 0.0
        %v2885 = vadd.f32 %v2883, %v2884
        %v2886 = vsel %vm2345, %v2818, 0.0
        %v2887 = vadd.f32 %v2885, %v2886
        %v2888 = vsel %vm2345, %v2819, 0.0
        %v2889 = vadd.f32 %v2887, %v2888
        %v2890 = vsel %vm2345, %v2820, 0.0
        %v2891 = vadd.f32 %v2889, %v2890
        %v2892 = vsel %vm2345, %v2821, 0.0
        %v2893 = vadd.f32 %v2891, %v2892
        %v2894 = vsel %vm2345, %v2822, 0.0
        %v2895 = vadd.f32 %v2893, %v2894
        %v2896 = vsel %vm2345, %v2823, 0.0
        %v2897 = vadd.f32 %v2895, %v2896
        %v2898 = vsel %vm2345, %v2824, 0.0
        %v2899 = vadd.f32 %v2897, %v2898
        %v2900 = vsel %vm2345, %v2825, 0.0
        %v2901 = vadd.f32 %v2899, %v2900
        %v2902 = vsel %vm2345, %v2826, 0.0
        %v2903 = vadd.f32 %v2901, %v2902
        %v2904 = vsel %vm2345, %v2827, 0.0
        %v2905 = vadd.f32 %v2903, %v2904
        %v2906 = vsel %vm2345, %v2828, 0.0
        %v2907 = vadd.f32 %v2905, %v2906
        %v2908 = vsel %vm2345, %v2829, 0.0
        %v2909 = vadd.f32 %v2907, %v2908
        %v2910 = vsel %vm2345, %v2830, 0.0
        %v2911 = vadd.f32 %v2909, %v2910
        %v2912 = vsel %vm2345, %v2831, 0.0
        %v2913 = vadd.f32 %v2911, %v2912
        %v2914 = vsel %vm2345, %v2832, 0.0
        %v2915 = vadd.f32 %v2913, %v2914
        %v2916 = vsel %vm2345, %v2833, 0.0
        %v2917 = vadd.f32 %v2915, %v2916
        %v2918 = vsel %vm2345, %v2834, 0.0
        %v2919 = vadd.f32 %v2917, %v2918
        %v2920 = vsel %vm2345, %v2835, 0.0
        %v2921 = vadd.f32 %v2919, %v2920
        %v2922 = vsel %vm2345, %v2836, 0.0
        %v2923 = vadd.f32 %v2921, %v2922
        %v2924 = vsel %vm2345, %v2837, 0.0
        %v2925 = vadd.f32 %v2923, %v2924
        %v2926 = vsel %vm2345, %v2838, 0.0
        %v2927 = vadd.f32 %v2925, %v2926
        %v2928 = vsel %vm2345, %v2839, 0.0
        %v2929 = vadd.f32 %v2927, %v2928
        %v2930 = vsel %vm2345, %v2840, 0.0
        %v2931 = vadd.f32 %v2929, %v2930
        %v2932 = vsel %vm2345, %v2841, 0.0
        %v2933 = vadd.f32 %v2931, %v2932
        %v2934 = vsel %vm2345, %v2842, 0.0
        %v2935 = vadd.f32 %v2933, %v2934
        %v2936 = vsel %vm2345, %v2843, 0.0
        %v2937 = vadd.f32 %v2935, %v2936
        %v2938 = vsel %vm2345, %v2844, 0.0
        %v2939 = vadd.f32 %v2937, %v2938
        %v2940 = vsel %vm2345, %v2845, 0.0
        %v2941 = vadd.f32 %v2939, %v2940
        %v2942 = vsel %vm2345, %v2846, 0.0
        %v2943 = vadd.f32 %v2941, %v2942
        %v2944 = vsel %vm2345, %v2847, 0.0
        %v2945 = vadd.f32 %v2943, %v2944
        %v2946 = vsel %vm2345, %v2848, 0.0
        %v2947 = vadd.f32 %v2945, %v2946
        %v2948 = vsel %vm2345, %v2849, 0.0
        %v2949 = vadd.f32 %v2947, %v2948
        %v2950 = vsel %vm2345, %v2850, 0.0
        %v2951 = vadd.f32 %v2949, %v2950
        %v2952 = vsel %vm2345, %v2851, 0.0
        %v2953 = vadd.f32 %v2951, %v2952
        %v2954 = vsel %vm2345, %v2852, 0.0
        %v2955 = vadd.f32 %v2953, %v2954
        %v2956 = vsel %vm2345, %v2853, 0.0
        %v2957 = vadd.f32 %v2955, %v2956
        %v2958 = vsel %vm2345, %v2854, 0.0
        %v2959 = vadd.f32 %v2957, %v2958
        %v2960 = vsel %vm2345, %v2855, 0.0
        %v2961 = vadd.f32 %v2959, %v2960
        %v2962 = vsel %vm2345, %v2856, 0.0
        %v2963 = vadd.f32 %v2961, %v2962
        %v2964 = vsel %vm2345, %v2857, 0.0
        %v2965 = vadd.f32 %v2963, %v2964
        %v2966 = vsel %vm2345, %v2858, 0.0
        %v2967 = vadd.f32 %v2965, %v2966
        %v2968 = vsel %vm2345, %v2859, 0.0
        %v2969 = vadd.f32 %v2967, %v2968
        %v2970 = vsel %vm2345, %v2860, 0.0
        %v2971 = vadd.f32 %v2969, %v2970
        %v2972 = vsel %vm2345, %v2861, 0.0
        %v2973 = vadd.f32 %v2971, %v2972
        %v2974 = vsel %vm2345, %v2862, 0.0
        %v2975 = vadd.f32 %v2973, %v2974
        %v2976 = vsel %vm2345, %v2863, 0.0
        %v2977 = vadd.f32 %v2975, %v2976
        %v2978 = vsel %vm2345, %v2864, 0.0
        %v2979 = vadd.f32 %v2977, %v2978
        %v2980 = vsel %vm2345, %v2865, 0.0
        %v2981 = vadd.f32 %v2979, %v2980
        %v2982 = vsel %vm2345, %v2866, 0.0
        %v2983 = vadd.f32 %v2981, %v2982
        %v2984 = vsel %vm2345, %v2867, 0.0
        %v2985 = vadd.f32 %v2983, %v2984
        %v2986 = vsel %vm2345, %v2868, 0.0
        %v2987 = vadd.f32 %v2985, %v2986
        %v2988 = vsel %vm2345, %v2869, 0.0
        %v2989 = vadd.f32 %v2987, %v2988
        %v2990 = vsel %vm2345, %v2870, 0.0
        %v2991 = vadd.f32 %v2989, %v2990
        %v2992 = vsel %vm2345, %v2871, 0.0
        %v2993 = vadd.f32 %v2991, %v2992
        %v2994 = vsel %vm2345, %v2872, 0.0
        %v2995 = vadd.f32 %v2993, %v2994
        %v2996 = vsel %vm2345, %v2873, 0.0
        %v2997 = vadd.f32 %v2995, %v2996
        %v2998 = vsel %vm2345, %v2874, 0.0
        %v2999 = vadd.f32 %v2997, %v2998
        %v3000 = vsel %vm2345, %v2875, 0.0
        %v3001 = vadd.f32 %v2999, %v3000
        %v3002 = vsel %vm2345, %v2876, 0.0
        %v3003 = vadd.f32 %v3001, %v3002
        %v3004 = vrot.slane %v3003, 4
        %v3005 = vadd.f32 %v3003, %v3004
        %v3006 = vrot.slane %v3005, 2
        %v3007 = vadd.f32 %v3005, %v3006
        %v3008 = vrot.slane %v3007, 1
        %v3009 = vadd.f32 %v3007, %v3008
        %3010 = vst.msk [vmem:[%s380] sm:$0x1] %vm2479, %v3009
        %s3011 = smul.u32 64, %s30
        %p3012 = scmp.lt.s32.totalorder %s3011, 127
        %s3013 = scalar_select %p3012, %s3011, 127
        %s3014 = smul.addr %s3013, 4
        %s3015 = scalar_lea.vmem %s4, %s3014
        %s3016 = smul.u32 64, %s30
        %p3017 = scmp.lt.s32.totalorder %s3016, 127
        %s3018 = scalar_select %p3017, %s3016, 127
        %s3019 = smul.addr %s3018, 4
        %s3020 = scalar_lea.vmem %s5, %s3019
        %s3021 = sand.u32 %s184, 1
        %s3022 = scalar_lea.sflag [#allocation3], %s3021
        %s3023 = sand.u32 %s184, 1
        %s3024 = scalar_lea.vmem [#allocation2], %s3023
        %s3025 = sand.u32 %s30, 1
        %s3026 = scalar_lea.sflag [#allocation5], %s3025
        %s3027 = sand.u32 %s210, 1
        %s3028 = scalar_lea.vmem [#allocation4], %s3027
        %s3029 = sand.u32 %s30, 1
        %s3030 = scalar_lea.sflag [#allocation5], %s3029
        %s3031 = sand.u32 %s236, 1
        %s3032 = scalar_lea.vmem [#allocation6], %s3031
        %s3033 = sand.u32 %s262, 1
        %s3034 = scalar_lea.sflag [#allocation8], %s3033
        %s3035 = sand.u32 %s262, 1
        %s3036 = scalar_lea.vmem [#allocation7], %s3035
        // Predicated region
        $region37: #{tpu_custom_call.1} parent=35 // pred_check
          %p3037 = pneg %p142
        $region38: #{tpu_custom_call.1} parent=35 // pred_check_branch
          %3039 = sbr.rel (%p3037) target = $region40
        $region39: #{tpu_custom_call.1} parent=35 // pred_region
          %s3040 = smul.u32 64, %s30
        $region40: #{tpu_custom_call.1} parent=35 // pred_fallthru
          _
        // Predicated region
        $region41: #{tpu_custom_call.1} parent=35 // pred_check
          %p3041 = pneg %p168
        $region42: #{tpu_custom_call.1} parent=35 // pred_check_branch
          %3043 = sbr.rel (%p3041) target = $region44
        $region43: #{tpu_custom_call.1} parent=35 // pred_region
          %s3044 = smul.u32 64, %s30
        $region44: #{tpu_custom_call.1} parent=35 // pred_fallthru
          _
        // Predicated region
        $region45: #{tpu_custom_call.1} parent=35 // pred_check
          %p3045 = pneg %p194
        $region46: #{tpu_custom_call.1} parent=35 // pred_check_branch
          %3047 = sbr.rel (%p3045) target = $region48
        $region47: #{tpu_custom_call.1} parent=35 // pred_region
          %s3049 = ssub.s32 16, 16
          %3050 = vsyncadd %s3022, %s3049
          %s3051 = smul.addr %s30, 16
          %s3052 = scalar_lea.hbm %s6, %s3051
          %s3054 = sshll.u32 %s3024, 4
          %s3055 = int_to_ptr.vmem [resolvable:$true] %s3054
          %3057 = dma.vmem_to_hbm [thread:$0]  %s3055, 16, %s3052, %s3022
        $region48: #{tpu_custom_call.1} parent=35 // pred_fallthru
          _
        // Predicated region
        $region49: #{tpu_custom_call.1} parent=35 // pred_check
          %p3058 = pneg %p220
        $region50: #{tpu_custom_call.1} parent=35 // pred_check_branch
          %3060 = sbr.rel (%p3058) target = $region52
        $region51: #{tpu_custom_call.1} parent=35 // pred_region
          %s3062 = ssub.s32 16, 16
          %3063 = vsyncadd %s3026, %s3062
          %s3064 = smul.addr %s30, 16
          %s3065 = scalar_lea.hbm %s7, %s3064
          %s3067 = sshll.u32 %s3028, 4
          %s3068 = int_to_ptr.vmem [resolvable:$true] %s3067
          %3070 = dma.vmem_to_hbm [thread:$0]  %s3068, 16, %s3065, %s3026
        $region52: #{tpu_custom_call.1} parent=35 // pred_fallthru
          _
        // Predicated region
        $region53: #{tpu_custom_call.1} parent=35 // pred_check
          %p3071 = pneg %p246
        $region54: #{tpu_custom_call.1} parent=35 // pred_check_branch
          %3073 = sbr.rel (%p3071) target = $region56
        $region55: #{tpu_custom_call.1} parent=35 // pred_region
          %s3075 = ssub.s32 16, 16
          %3076 = vsyncadd %s3030, %s3075
          %s3077 = smul.addr %s30, 16
          %s3078 = scalar_lea.hbm %s8, %s3077
          %s3080 = sshll.u32 %s3032, 4
          %s3081 = int_to_ptr.vmem [resolvable:$true] %s3080
          %3083 = dma.vmem_to_hbm [thread:$0]  %s3081, 16, %s3078, %s3030
        $region56: #{tpu_custom_call.1} parent=35 // pred_fallthru
          _
        // Predicated region
        $region57: #{tpu_custom_call.1} parent=35 // pred_check
          %p3084 = pneg %p272
        $region58: #{tpu_custom_call.1} parent=35 // pred_check_branch
          %3086 = sbr.rel (%p3084) target = $region60
        $region59: #{tpu_custom_call.1} parent=35 // pred_region
          %s3088 = ssub.s32 16, 16
          %3089 = vsyncadd %s3034, %s3088
          %s3090 = smul.addr %s30, 16
          %s3091 = scalar_lea.hbm %s9, %s3090
          %s3093 = sshll.u32 %s3036, 4
          %s3094 = int_to_ptr.vmem [resolvable:$true] %s3093
          %3096 = dma.vmem_to_hbm [thread:$0]  %s3094, 16, %s3091, %s3034
        $region60: #{tpu_custom_call.1} parent=35 // pred_fallthru
          _
      $region36: #{tpu_custom_call.1} parent=5 // pred_fallthru
        _
      %p3097 = scmp.le.s32.totalorder 2, %s25
      // Predicated region
      $region61: #{tpu_custom_call.1} parent=5 // pred_check
        %p3098 = pneg %p3097
      $region62: #{tpu_custom_call.1} parent=5 // pred_check_branch
        %3100 = sbr.rel (%p3098) target = $region64
      $region63: #{tpu_custom_call.1} parent=5 // pred_region
        %s3101 = ssub.s32 %s25, 2
        // Predicated region
        $region65: #{tpu_custom_call.1} parent=63 // pred_check
          %p3102 = pneg %p148
        $region66: #{tpu_custom_call.1} parent=63 // pred_check_branch
          %3104 = sbr.rel (%p3102) target = $region68
        $region67: #{tpu_custom_call.1} parent=63 // pred_region
          %s3105 = smul.u32 64, %s31
          %p3106 = scmp.lt.s32.totalorder %s3105, 127
          %s3107 = scalar_select %p3106, %s3105, 127
          %s3108 = smul.addr %s3107, 4
          %s3109 = scalar_lea.vmem %s4, %s3108
        $region68: #{tpu_custom_call.1} parent=63 // pred_fallthru
          _
        // Predicated region
        $region69: #{tpu_custom_call.1} parent=63 // pred_check
          %p3110 = pneg %p174
        $region70: #{tpu_custom_call.1} parent=63 // pred_check_branch
          %3112 = sbr.rel (%p3110) target = $region72
        $region71: #{tpu_custom_call.1} parent=63 // pred_region
          %s3113 = smul.u32 64, %s31
          %p3114 = scmp.lt.s32.totalorder %s3113, 127
          %s3115 = scalar_select %p3114, %s3113, 127
          %s3116 = smul.addr %s3115, 4
          %s3117 = scalar_lea.vmem %s5, %s3116
        $region72: #{tpu_custom_call.1} parent=63 // pred_fallthru
          _
        // Predicated region
        $region73: #{tpu_custom_call.1} parent=63 // pred_check
          %p3118 = pneg %p200
        $region74: #{tpu_custom_call.1} parent=63 // pred_check_branch
          %3120 = sbr.rel (%p3118) target = $region76
        $region75: #{tpu_custom_call.1} parent=63 // pred_region
          %s3121 = sand.u32 %s185, 1
          %s3122 = scalar_lea.sflag [#allocation3], %s3121
          %s3123 = sand.u32 %s185, 1
          %s3124 = scalar_lea.vmem [#allocation2], %s3123
          %3125 = dma.done %s3122, 16
        $region76: #{tpu_custom_call.1} parent=63 // pred_fallthru
          _
        // Predicated region
        $region77: #{tpu_custom_call.1} parent=63 // pred_check
          %p3126 = pneg %p226
        $region78: #{tpu_custom_call.1} parent=63 // pred_check_branch
          %3128 = sbr.rel (%p3126) target = $region80
        $region79: #{tpu_custom_call.1} parent=63 // pred_region
          %s3129 = sand.u32 %s31, 1
          %s3130 = scalar_lea.sflag [#allocation5], %s3129
          %s3131 = sand.u32 %s211, 1
          %s3132 = scalar_lea.vmem [#allocation4], %s3131
          %3133 = dma.done %s3130, 16
        $region80: #{tpu_custom_call.1} parent=63 // pred_fallthru
          _
        // Predicated region
        $region81: #{tpu_custom_call.1} parent=63 // pred_check
          %p3134 = pneg %p252
        $region82: #{tpu_custom_call.1} parent=63 // pred_check_branch
          %3136 = sbr.rel (%p3134) target = $region84
        $region83: #{tpu_custom_call.1} parent=63 // pred_region
          %s3137 = sand.u32 %s31, 1
          %s3138 = scalar_lea.sflag [#allocation5], %s3137
          %s3139 = sand.u32 %s237, 1
          %s3140 = scalar_lea.vmem [#allocation6], %s3139
          %3141 = dma.done %s3138, 16
        $region84: #{tpu_custom_call.1} parent=63 // pred_fallthru
          _
        // Predicated region
        $region85: #{tpu_custom_call.1} parent=63 // pred_check
          %p3142 = pneg %p278
        $region86: #{tpu_custom_call.1} parent=63 // pred_check_branch
          %3144 = sbr.rel (%p3142) target = $region88
        $region87: #{tpu_custom_call.1} parent=63 // pred_region
          %s3145 = sand.u32 %s263, 1
          %s3146 = scalar_lea.sflag [#allocation8], %s3145
          %s3147 = sand.u32 %s263, 1
          %s3148 = scalar_lea.vmem [#allocation7], %s3147
          %3149 = dma.done %s3146, 16
        $region88: #{tpu_custom_call.1} parent=63 // pred_fallthru
          _
      $region64: #{tpu_custom_call.1} parent=5 // pred_fallthru
        _
    $region6: #{tpu_custom_call.1} parent=1 // loop_footer
      %s29 = sadd.s32 1, %s25
    $region7: #{tpu_custom_call.1} parent=1 // loop_footer_branch
      %24 = sbr.rel target = $region3
    $region8: #{tpu_custom_call.1} parent=1 // loop_exit
      _
    %3150 = vsyncpa [#allocation3], 1
    %s3151 = scalar_lea.sflag [#allocation3], 1
    %3152 = vsyncpa %s3151, 1
    %3153 = vsyncpa [#allocation5], 1
    %s3154 = scalar_lea.sflag [#allocation5], 1
    %3155 = vsyncpa %s3154, 1
    %3156 = vsyncpa [#allocation8], 1
    %s3157 = scalar_lea.sflag [#allocation8], 1
    %3158 = vsyncpa %s3157, 1

</llo_original>
